<compile_context>
chip_gen: v6e
topology: v6e:2x2x1
jax: 0.10.0
libtpu: 0.0.40
codegen_flags: <defaults>
</compile_context>

<pallas_src>
import functools

import jax
import jax.numpy as jnp
from jax import lax
from jax.experimental import pallas as pl
from jax.experimental.pallas import tpu as pltpu


# --------------------------- Pallas kernels --------------------------------- #
def _mm_bias_act_kernel(x_ref, w_ref, b_ref, o_ref, *, act):
    """(TILE_M, K) @ (K, N) + (1, N), fused activation, f32 accumulate."""
    y = jnp.dot(x_ref[...], w_ref[...], preferred_element_type=jnp.float32)
    y = y + b_ref[...]
    if act == "relu":
        y = jnp.maximum(y, 0.0)
    elif act == "tanh":
        y = jnp.tanh(y)
    o_ref[...] = y.astype(o_ref.dtype)


def _tail_kernel(feat_ref, sens_ref,
                 w3_ref, b3_ref, wl_ref, bl_ref,
                 w0_ref, b0_ref, w1a_ref, w1b_ref, b1_ref,
                 w2_ref, b2_ref, w3m_ref, b3m_ref, w4_ref, b4_ref,
                 o_ref):
    """conv3(1x1) + flatten + ReLU + CNN Linear + fc0..fc4 heads, one branch per grid step."""
    f32 = jnp.float32
    dot = lambda a, b: jnp.dot(a, b, preferred_element_type=f32)
    relu = lambda v: jnp.maximum(v, 0.0)

    # conv3 (3x3 -> 1x1 spatial) expressed as a matmul, then Flatten + ReLU.
    h = relu(dot(feat_ref[...], w3_ref[...]) + b3_ref[...])        # (B, 64)
    # CNN head Linear (no activation inside the Sequential).
    x1 = dot(h, wl_ref[...]) + bl_ref[...]                         # (B, 5n)
    # fc0 on the sensor input.
    x2 = relu(dot(sens_ref[...], w0_ref[...]) + b0_ref[...])       # (B, 5n)
    # fc1(concat(x1, x2)) == x1 @ W1[:5n] + x2 @ W1[5n:]
    h = relu(dot(x1, w1a_ref[...]) + dot(x2, w1b_ref[...]) + b1_ref[...])  # (B, 20n)
    h = relu(dot(h, w2_ref[...]) + b2_ref[...])                    # (B, 10n)
    h = relu(dot(h, w3m_ref[...]) + b3m_ref[...])                  # (B, 5n)
    y = dot(h, w4_ref[...]) + b4_ref[...]                          # (B, n)

    branch = pl.program_id(0)

    @pl.when(branch == 0)          # actor head: tanh(mu)
    def _():
        o_ref[...] = jnp.tanh(y)

    @pl.when(branch != 0)          # critic head: raw value (column 0)
    def _():
        o_ref[...] = y


# ------------------------------ Wrappers ------------------------------------ #
_COMPILER_PARAMS_2D = pltpu.CompilerParams(
    dimension_semantics=("parallel", "parallel"),
    vmem_limit_bytes=48 * 1024 * 1024,
)
_COMPILER_PARAMS_1D = pltpu.CompilerParams(
    dimension_semantics=("parallel",),
    vmem_limit_bytes=48 * 1024 * 1024,
)


def branched_matmul(cols, w, b, act="relu", tile_m=512):
    """cols: (G, M, K), w: (G, K, N), b: (G, 1, N) -> (G, M, N) f32.

    Grid = (branch, M-tile). Weights stay resident across the M axis; the
    M tile (512) keeps 2x double-buffered cols+out well under v7x's 64 MiB VMEM.
    """
    G, M, K = cols.shape
    N = w.shape[-1]
    tm = min(tile_m, M)
    num_m = pl.cdiv(M, tm)
    m_pad = num_m * tm
    if m_pad != M:
        cols = jnp.pad(cols, ((0, 0), (0, m_pad - M), (0, 0)))

    out = pl.pallas_call(
        functools.partial(_mm_bias_act_kernel, act=act),
        out_shape=jax.ShapeDtypeStruct((G, m_pad, N), jnp.float32),
        grid=(G, num_m),
        in_specs=[
            pl.BlockSpec((None, tm, K), lambda g, i: (g, i, 0)),
            pl.BlockSpec((None, K, N), lambda g, i: (g, 0, 0)),
            pl.BlockSpec((None, 1, N), lambda g, i: (g, 0, 0)),
        ],
        out_specs=pl.BlockSpec((None, tm, N), lambda g, i: (g, i, 0)),
        compiler_params=_COMPILER_PARAMS_2D,
    )(cols, w, b)
    if m_pad != M:
        out = out[:, :M, :]
    return out


def fused_tail(feat, sens2, tail_ws, num_outputs):
    """feat: (2, B, 576), sens2: (B, S) -> (2, B, num_outputs)."""
    G, B, _ = feat.shape

    def branch_spec(arr):
        return pl.BlockSpec((None,) + arr.shape[1:],
                            lambda g: (g,) + (0,) * (arr.ndim - 1))

    in_specs = ([branch_spec(feat),
                 pl.BlockSpec(sens2.shape, lambda g: (0, 0))]
                + [branch_spec(a) for a in tail_ws])

    return pl.pallas_call(
        _tail_kernel,
        out_shape=jax.ShapeDtypeStruct((G, B, num_outputs), jnp.float32),
        grid=(G,),
        in_specs=in_specs,
        out_specs=pl.BlockSpec((None, B, num_outputs), lambda g: (g, 0, 0)),
        compiler_params=_COMPILER_PARAMS_1D,
    )(feat, sens2, *tail_ws)


# ----------------------------- im2col (NHWC) -------------------------------- #
def _im2col_nhwc(x, k, s):
    """x: (..., H, W, C) -> (..., OH, OW, k*k*C) with (kh, kw, c) feature order."""
    h, w = x.shape[-3], x.shape[-2]
    oh = (h - k) // s + 1
    ow = (w - k) // s + 1
    patches = []
    for kh in range(k):
        for kw in range(k):
            patches.append(x[..., kh:kh + s * oh:s, kw:kw + s * ow:s, :])
    return jnp.concatenate(patches, axis=-1), oh, ow


# ------------------------------ Parameters ---------------------------------- #
def output_size(in_size, kernel_size, stride, padding):
    h, w = in_size
    for k, s, p in zip(kernel_size, stride, padding):
        h = (h - k + 2 * p) // s + 1
        w = (w - k + 2 * p) // s + 1
    return [h, w]


def _xavier_conv(key, shape):
    # PyTorch xavier_normal_ on OIHW: std = sqrt(2 / (fan_in + fan_out)).
    fan_in = shape[1] * shape[2] * shape[3]
    fan_out = shape[0] * shape[2] * shape[3]
    std = (2.0 / (fan_in + fan_out)) ** 0.5
    return std * jax.random.normal(key, shape, jnp.float32)


def _linear(key, out_f, in_f):
    # PyTorch init: weight ~ N(0, 0.1), bias = 0.1.
    w = 0.1 * jax.random.normal(key, (out_f, in_f), jnp.float32)
    b = 0.1 * jnp.ones((out_f,), jnp.float32)
    return w, b


def make_raw_params(key, image_shape, sens2_shape, num_outputs, std=-0.5):
    """Parameters in the native PyTorch layouts (used by the f32 reference)."""
    fc_hw = output_size(image_shape, [8, 4, 3], [4, 2, 1], [0, 0, 0])
    fc_in = fc_hw[0] * fc_hw[1] * 64
    n5, n10, n20 = 5 * num_outputs, 10 * num_outputs, 20 * num_outputs

    def branch(bkey, head_out):
        ks = jax.random.split(bkey, 9)
        clw, clb = _linear(ks[3], n5, fc_in)
        f0w, f0b = _linear(ks[4], n5, sens2_shape)
        f1w, f1b = _linear(ks[5], n20, n10)
        f2w, f2b = _linear(ks[6], n10, n20)
        f3w, f3b = _linear(ks[7], n5, n10)
        f4w, f4b = _linear(ks[8], head_out, n5)
        return {
            "c1w": _xavier_conv(ks[0], (32, 3, 8, 8)), "c1b": jnp.zeros((32,), jnp.float32),
            "c2w": _xavier_conv(ks[1], (64, 32, 4, 4)), "c2b": jnp.zeros((64,), jnp.float32),
            "c3w": _xavier_conv(ks[2], (64, 64, 3, 3)), "c3b": jnp.zeros((64,), jnp.float32),
            "clw": clw, "clb": clb, "f0w": f0w, "f0b": f0b,
            "f1w": f1w, "f1b": f1b, "f2w": f2w, "f2b": f2b,
            "f3w": f3w, "f3b": f3b, "f4w": f4w, "f4b": f4b,
        }

    ka, kc = jax.random.split(key)
    return {
        "actor": branch(ka, num_outputs),
        "critic": branch(kc, 1),
        "log_std": jnp.ones((1, num_outputs), jnp.float32) * std,
    }


def _hwio_flat(w_oihw):
    """OIHW conv weight -> (kh*kw*C_in, O) matching the (kh, kw, c) im2col order."""
    o, i, kh, kw = w_oihw.shape
    return jnp.transpose(w_oihw, (2, 3, 1, 0)).reshape(kh * kw * i, o)


def prep_params(raw, image_shape, sens2_shape, num_outputs):
    """One-time weight prep: transpose/flatten, branch-merge/stack, norm-fold, bf16 cast."""
    fc_hw = output_size(image_shape, [8, 4, 3], [4, 2, 1], [0, 0, 0])
    assert fc_hw == [1, 1], "fused conv3+Linear tail assumes the standard 1x1 conv3 output"
    # TODO(synk): for fc spatial > 1x1 the tail needs an un-fused conv3 plus a
    # one-time NCHW->NHWC column permutation of the CNN Linear weight.

    a, c = raw["actor"], raw["critic"]
    n = num_outputs
    n5 = 5 * n
    bf16 = jnp.bfloat16

    # conv1: concat actor/critic output channels; fold (x - 127) / 255 into w/b.
    w1 = jnp.concatenate([_hwio_flat(a["c1w"]), _hwio_flat(c["c1w"])], axis=1) / 255.0  # (192, 64)
    b1 = jnp.concatenate([a["c1b"], c["c1b"]]) - 127.0 * jnp.sum(w1, axis=0)            # (64,)

    # conv2: per-branch, stacked along a leading branch axis.
    w2 = jnp.stack([_hwio_flat(a["c2w"]), _hwio_flat(c["c2w"])])                        # (2, 512, 64)
    b2 = jnp.stack([a["c2b"], c["c2b"]]).reshape(2, 1, 64)

    # Fused tail (conv3 + CNN Linear + fc0..fc4), f32, per-branch stacked.
    w3 = jnp.stack([_hwio_flat(a["c3w"]), _hwio_flat(c["c3w"])])                        # (2, 576, 64)
    b3 = jnp.stack([a["c3b"], c["c3b"]]).reshape(2, 1, 64)
    wl = jnp.stack([a["clw"].T, c["clw"].T])                                            # (2, 64, 5n)
    bl = jnp.stack([a["clb"], c["clb"]]).reshape(2, 1, n5)
    w0 = jnp.stack([a["f0w"].T, c["f0w"].T])                                            # (2, S, 5n)
    b0 = jnp.stack([a["f0b"], c["f0b"]]).reshape(2, 1, n5)
    f1a_t, f1c_t = a["f1w"].T, c["f1w"].T                                               # (10n, 20n)
    w1a = jnp.stack([f1a_t[:n5], f1c_t[:n5]])                                           # x1 rows
    w1b = jnp.stack([f1a_t[n5:], f1c_t[n5:]])                                           # x2 rows
    bf1 = jnp.stack([a["f1b"], c["f1b"]]).reshape(2, 1, 20 * n)
    w2m = jnp.stack([a["f2w"].T, c["f2w"].T])
    b2m = jnp.stack([a["f2b"], c["f2b"]]).reshape(2, 1, 10 * n)
    w3m = jnp.stack([a["f3w"].T, c["f3w"].T])
    b3m = jnp.stack([a["f3b"], c["f3b"]]).reshape(2, 1, n5)
    # Heads: pad the critic's (5n -> 1) head to width n with zeros (column 0 = value).
    w4 = jnp.stack([a["f4w"].T, jnp.pad(c["f4w"].T, ((0, 0), (0, n - 1)))])             # (2, 5n, n)
    b4 = jnp.stack([a["f4b"], jnp.pad(c["f4b"], (0, n - 1))]).reshape(2, 1, n)

    return {
        "c1w": w1.astype(bf16)[None],          # (1, 192, 64) bf16
        "c1b": b1.reshape(1, 1, 64),           # f32 bias (epilogue stays f32)
        "c2w": w2.astype(bf16),                # (2, 512, 64) bf16
        "c2b": b2,
        "tail": [w3, b3, wl, bl, w0, b0, w1a, w1b, bf1, w2m, b2m, w3m, b3m, w4, b4],
        "log_std": raw["log_std"],
    }


# -------------------------------- Forward ------------------------------------ #
def forward(prep, x_img, sens2):
    """x_img: (B, H, W, 3) raw pixels (NHWC), sens2: (B, S) -> (mu, std, value)."""
    batch = x_img.shape[0]
    num_outputs = prep["log_std"].shape[1]

    # conv1 (both branches merged along output channels; norm folded into weights).
    cols1, oh1, ow1 = _im2col_nhwc(x_img, 8, 4)
    cols1 = cols1.reshape(1, batch * oh1 * ow1, -1).astype(jnp.bfloat16)
    h1 = branched_matmul(cols1, prep["c1w"], prep["c1b"], act="relu")[0]   # (B*oh*ow, 64)
    h1 = h1.reshape(batch, oh1, ow1, 64)
    hb = jnp.stack([h1[..., :32], h1[..., 32:]], axis=0)                   # (2, B, oh, ow, 32)

    # conv2, one call for both branches (branch grid axis).
    cols2, oh2, ow2 = _im2col_nhwc(hb, 4, 2)
    cols2 = cols2.reshape(2, batch * oh2 * ow2, -1).astype(jnp.bfloat16)
    h2 = branched_matmul(cols2, prep["c2w"], prep["c2b"], act="relu")      # (2, B*oh*ow, 64)

    # conv3 + flatten + ReLU + CNN Linear + sensor fusion MLP + heads, fused.
    feat = h2.reshape(2, batch, oh2 * ow2 * 64)                            # (h, w, c) order
    out = fused_tail(feat, sens2, prep["tail"], num_outputs)               # (2, B, n)

    mu = out[0]                                                            # (B, n)
    value = out[1][:, :1]                                                  # (B, 1)
    std = jnp.broadcast_to(jnp.exp(prep["log_std"]), mu.shape)
    # TODO(synk): torch.distributions.Normal has no Pallas equivalent; we return
    # the distribution parameters (mu, std) plus value instead of (dist, value).
    return mu, std, value


# ------------------------ Pure-JAX f32 reference ----------------------------- #
def _ref_conv(x, w, b, s):
    y = lax.conv_general_dilated(x, w, (s, s), "VALID",
                                 dimension_numbers=("NCHW", "OIHW", "NCHW"))
    return y + b.reshape(1, -1, 1, 1)


def forward_ref(raw, x_img, sens2):
    x0 = jnp.transpose((x_img - 127.0) / 255.0, (0, 3, 1, 2))

    def branch(p):
        h = jax.nn.relu(_ref_conv(x0, p["c1w"], p["c1b"], 4))
        h = jax.nn.relu(_ref_conv(h, p["c2w"], p["c2b"], 2))
        h = _ref_conv(h, p["c3w"], p["c3b"], 1)
        h = jax.nn.relu(h.reshape(h.shape[0], -1))
        x1 = h @ p["clw"].T + p["clb"]
        x2 = jax.nn.relu(sens2 @ p["f0w"].T + p["f0b"])
        x = jnp.concatenate([x1, x2], axis=1)
        x = jax.nn.relu(x @ p["f1w"].T + p["f1b"])
        x = jax.nn.relu(x @ p["f2w"].T + p["f2b"])
        x = jax.nn.relu(x @ p["f3w"].T + p["f3b"])
        return x @ p["f4w"].T + p["f4b"]

    mu = jnp.tanh(branch(raw["actor"]))
    value = branch(raw["critic"])
    std = jnp.broadcast_to(jnp.exp(raw["log_std"]), mu.shape)
    return mu, std, value


# ---------------------------------- Main ------------------------------------- #
if __name__ == "__main__":
    batch = 2
    image_shape = [36, 36]     # -> conv spatial 8x8 -> 3x3 -> 1x1 (fc_in = 64)
    sens2_shape = 8
    num_outputs = 4

    key = jax.random.PRNGKey(0)
    kp, kx, ks = jax.random.split(key, 3)
    raw = make_raw_params(kp, image_shape, sens2_shape, num_outputs, std=-0.5)
    prep = prep_params(raw, image_shape, sens2_shape, num_outputs)

    x = jax.random.uniform(kx, (batch, image_shape[0], image_shape[1], 3),
                           dtype=jnp.float32, minval=0.0, maxval=255.0)
    s2 = jax.random.normal(ks, (batch, sens2_shape), dtype=jnp.float32)

    mu, std, value = jax.jit(forward)(prep, x, s2)
    jax.block_until_ready((mu, std, value))

    mu_r, std_r, value_r = jax.jit(forward_ref)(raw, x, s2)
    assert mu.shape == (batch, num_outputs) and value.shape == (batch, 1)
    # bf16 MXU operands (f32 accumulate/epilogue) on conv1/conv2 -> 2e-2 tolerance.
    assert jnp.allclose(mu, mu_r, atol=2e-2, rtol=2e-2)
    assert jnp.allclose(value, value_r, atol=2e-2, rtol=2e-2)
    assert jnp.allclose(std, std_r)

    print("KERNEL_OK")
</pallas_src>

<mosaic_0001>
module attributes {stable_mosaic.version = 11 : i64} {
  func.func @_mm_bias_act_kernel(%arg0: i32, %arg1: i32, %arg2: memref<1x128x192xbf16, #tpu.memory_space<vmem>>, %arg3: memref<1x192x64xbf16, #tpu.memory_space<vmem>>, %arg4: memref<1x1x64xf32, #tpu.memory_space<vmem>>, %arg5: memref<1x128x64xf32, #tpu.memory_space<vmem>>) attributes {dimension_semantics = [#tpu.dimension_semantics<parallel>, #tpu.dimension_semantics<parallel>], iteration_bounds = array<i64: 1, 1>, scalar_prefetch = 0 : i64, scratch_operands = 0 : i64, tpu.core_type = #tpu.core_type<tc>, window_params = [{transform_indices = @transform_0, window_bounds = array<i64: 1, 128, 192>}, {transform_indices = @transform_1, window_bounds = array<i64: 1, 192, 64>}, {transform_indices = @transform_2, window_bounds = array<i64: 1, 1, 64>}, {transform_indices = @transform_3, window_bounds = array<i64: 1, 128, 64>}]} {
    %c0 = arith.constant 0 : index
    %c0_0 = arith.constant 0 : index
    %c0_1 = arith.constant 0 : index
    %0 = vector.load %arg2[%c0, %c0_0, %c0_1] : memref<1x128x192xbf16, #tpu.memory_space<vmem>>, vector<1x128x192xbf16>
    %1 = vector.shape_cast %0 : vector<1x128x192xbf16> to vector<128x192xbf16>
    %c0_2 = arith.constant 0 : index
    %c0_3 = arith.constant 0 : index
    %c0_4 = arith.constant 0 : index
    %2 = vector.load %arg3[%c0_2, %c0_3, %c0_4] : memref<1x192x64xbf16, #tpu.memory_space<vmem>>, vector<1x192x64xbf16>
    %3 = vector.shape_cast %2 : vector<1x192x64xbf16> to vector<192x64xbf16>
    %cst = arith.constant dense<0.000000e+00> : vector<128x64xf32>
    %4 = tpu.matmul %1, %3, %cst {dimension_numbers = #tpu.dot_dimension_numbers<[1], [0], [0], [1], [0, 0, 1, 1], [], []>} : vector<128x192xbf16>, vector<192x64xbf16>, vector<128x64xf32> -> vector<128x64xf32>
    %c0_5 = arith.constant 0 : index
    %c0_6 = arith.constant 0 : index
    %c0_7 = arith.constant 0 : index
    %5 = vector.load %arg4[%c0_5, %c0_6, %c0_7] : memref<1x1x64xf32, #tpu.memory_space<vmem>>, vector<1x1x64xf32>
    %6 = vector.shape_cast %5 : vector<1x1x64xf32> to vector<1x64xf32>
    %7 = vector.broadcast %6 : vector<1x64xf32> to vector<128x64xf32>
    %8 = arith.addf %4, %7 : vector<128x64xf32>
    %cst_8 = arith.constant 0.000000e+00 : f32
    %9 = vector.broadcast %cst_8 : f32 to vector<128x64xf32>
    %10 = arith.maximumf %8, %9 : vector<128x64xf32>
    %c0_9 = arith.constant 0 : index
    %c0_10 = arith.constant 0 : index
    %c0_11 = arith.constant 0 : index
    %11 = vector.load %arg5[%c0_9, %c0_10, %c0_11] : memref<1x128x64xf32, #tpu.memory_space<vmem>>, vector<1x128x64xf32>
    %12 = vector.shape_cast %11 : vector<1x128x64xf32> to vector<128x64xf32>
    %13 = vector.shape_cast %10 : vector<128x64xf32> to vector<1x128x64xf32>
    tpu.vector_store %arg5[%c0_9, %c0_10, %c0_11], %13 {strides = array<i32>} : memref<1x128x64xf32, #tpu.memory_space<vmem>>, vector<1x128x64xf32>,
    return
  }
  func.func @transform_0(%arg0: i32, %arg1: i32) -> (i32, i32, i32) {
    %c0_i32 = arith.constant 0 : i32
    %c0_i32_0 = arith.constant 0 : i32
    return %arg0, %arg1, %c0_i32 : i32, i32, i32
  }
  func.func @transform_1(%arg0: i32, %arg1: i32) -> (i32, i32, i32) {
    %c0_i32 = arith.constant 0 : i32
    %c0_i32_0 = arith.constant 0 : i32
    %c0_i32_1 = arith.constant 0 : i32
    return %arg0, %c0_i32, %c0_i32_0 : i32, i32, i32
  }
  func.func @transform_2(%arg0: i32, %arg1: i32) -> (i32, i32, i32) {
    %c0_i32 = arith.constant 0 : i32
    %c0_i32_0 = arith.constant 0 : i32
    %c0_i32_1 = arith.constant 0 : i32
    return %arg0, %c0_i32, %c0_i32_0 : i32, i32, i32
  }
  func.func @transform_3(%arg0: i32, %arg1: i32) -> (i32, i32, i32) {
    %c0_i32 = arith.constant 0 : i32
    %c0_i32_0 = arith.constant 0 : i32
    return %arg0, %arg1, %c0_i32 : i32, i32, i32
  }
}

module attributes {stable_mosaic.version = 11 : i64} {
  func.func @_mm_bias_act_kernel(%arg0: i32, %arg1: i32, %arg2: memref<1x18x512xbf16, #tpu.memory_space<vmem>>, %arg3: memref<1x512x64xbf16, #tpu.memory_space<vmem>>, %arg4: memref<1x1x64xf32, #tpu.memory_space<vmem>>, %arg5: memref<1x18x64xf32, #tpu.memory_space<vmem>>) attributes {dimension_semantics = [#tpu.dimension_semantics<parallel>, #tpu.dimension_semantics<parallel>], iteration_bounds = array<i64: 2, 1>, scalar_prefetch = 0 : i64, scratch_operands = 0 : i64, tpu.core_type = #tpu.core_type<tc>, window_params = [{transform_indices = @transform_0, window_bounds = array<i64: 1, 18, 512>}, {transform_indices = @transform_1, window_bounds = array<i64: 1, 512, 64>}, {transform_indices = @transform_2, window_bounds = array<i64: 1, 1, 64>}, {transform_indices = @transform_3, window_bounds = array<i64: 1, 18, 64>}]} {
    %c0 = arith.constant 0 : index
    %c0_0 = arith.constant 0 : index
    %c0_1 = arith.constant 0 : index
    %0 = vector.load %arg2[%c0, %c0_0, %c0_1] : memref<1x18x512xbf16, #tpu.memory_space<vmem>>, vector<1x18x512xbf16>
    %1 = vector.shape_cast %0 : vector<1x18x512xbf16> to vector<18x512xbf16>
    %c0_2 = arith.constant 0 : index
    %c0_3 = arith.constant 0 : index
    %c0_4 = arith.constant 0 : index
    %2 = vector.load %arg3[%c0_2, %c0_3, %c0_4] : memref<1x512x64xbf16, #tpu.memory_space<vmem>>, vector<1x512x64xbf16>
    %3 = vector.shape_cast %2 : vector<1x512x64xbf16> to vector<512x64xbf16>
    %cst = arith.constant dense<0.000000e+00> : vector<18x64xf32>
    %4 = tpu.matmul %1, %3, %cst {dimension_numbers = #tpu.dot_dimension_numbers<[1], [0], [0], [1], [0, 0, 1, 1], [], []>} : vector<18x512xbf16>, vector<512x64xbf16>, vector<18x64xf32> -> vector<18x64xf32>
    %c0_5 = arith.constant 0 : index
    %c0_6 = arith.constant 0 : index
    %c0_7 = arith.constant 0 : index
    %5 = vector.load %arg4[%c0_5, %c0_6, %c0_7] : memref<1x1x64xf32, #tpu.memory_space<vmem>>, vector<1x1x64xf32>
    %6 = vector.shape_cast %5 : vector<1x1x64xf32> to vector<1x64xf32>
    %7 = vector.broadcast %6 : vector<1x64xf32> to vector<18x64xf32>
    %8 = arith.addf %4, %7 : vector<18x64xf32>
    %cst_8 = arith.constant 0.000000e+00 : f32
    %9 = vector.broadcast %cst_8 : f32 to vector<18x64xf32>
    %10 = arith.maximumf %8, %9 : vector<18x64xf32>
    %c0_9 = arith.constant 0 : index
    %c0_10 = arith.constant 0 : index
    %c0_11 = arith.constant 0 : index
    %11 = vector.load %arg5[%c0_9, %c0_10, %c0_11] : memref<1x18x64xf32, #tpu.memory_space<vmem>>, vector<1x18x64xf32>
    %12 = vector.shape_cast %11 : vector<1x18x64xf32> to vector<18x64xf32>
    %13 = vector.shape_cast %10 : vector<18x64xf32> to vector<1x18x64xf32>
    tpu.vector_store %arg5[%c0_9, %c0_10, %c0_11], %13 {strides = array<i32>} : memref<1x18x64xf32, #tpu.memory_space<vmem>>, vector<1x18x64xf32>,
    return
  }
  func.func @transform_0(%arg0: i32, %arg1: i32) -> (i32, i32, i32) {
    %c0_i32 = arith.constant 0 : i32
    %c0_i32_0 = arith.constant 0 : i32
    return %arg0, %arg1, %c0_i32 : i32, i32, i32
  }
  func.func @transform_1(%arg0: i32, %arg1: i32) -> (i32, i32, i32) {
    %c0_i32 = arith.constant 0 : i32
    %c0_i32_0 = arith.constant 0 : i32
    %c0_i32_1 = arith.constant 0 : i32
    return %arg0, %c0_i32, %c0_i32_0 : i32, i32, i32
  }
  func.func @transform_2(%arg0: i32, %arg1: i32) -> (i32, i32, i32) {
    %c0_i32 = arith.constant 0 : i32
    %c0_i32_0 = arith.constant 0 : i32
    %c0_i32_1 = arith.constant 0 : i32
    return %arg0, %c0_i32, %c0_i32_0 : i32, i32, i32
  }
  func.func @transform_3(%arg0: i32, %arg1: i32) -> (i32, i32, i32) {
    %c0_i32 = arith.constant 0 : i32
    %c0_i32_0 = arith.constant 0 : i32
    return %arg0, %arg1, %c0_i32 : i32, i32, i32
  }
}

module attributes {stable_mosaic.version = 11 : i64} {
  func.func @_tail_kernel(%arg0: i32, %arg1: memref<1x2x576xf32, #tpu.memory_space<vmem>>, %arg2: memref<2x8xf32, #tpu.memory_space<vmem>>, %arg3: memref<1x576x64xf32, #tpu.memory_space<vmem>>, %arg4: memref<1x1x64xf32, #tpu.memory_space<vmem>>, %arg5: memref<1x64x20xf32, #tpu.memory_space<vmem>>, %arg6: memref<1x1x20xf32, #tpu.memory_space<vmem>>, %arg7: memref<1x8x20xf32, #tpu.memory_space<vmem>>, %arg8: memref<1x1x20xf32, #tpu.memory_space<vmem>>, %arg9: memref<1x20x80xf32, #tpu.memory_space<vmem>>, %arg10: memref<1x20x80xf32, #tpu.memory_space<vmem>>, %arg11: memref<1x1x80xf32, #tpu.memory_space<vmem>>, %arg12: memref<1x80x40xf32, #tpu.memory_space<vmem>>, %arg13: memref<1x1x40xf32, #tpu.memory_space<vmem>>, %arg14: memref<1x40x20xf32, #tpu.memory_space<vmem>>, %arg15: memref<1x1x20xf32, #tpu.memory_space<vmem>>, %arg16: memref<1x20x4xf32, #tpu.memory_space<vmem>>, %arg17: memref<1x1x4xf32, #tpu.memory_space<vmem>>, %arg18: memref<1x2x4xf32, #tpu.memory_space<vmem>>) attributes {dimension_semantics = [#tpu.dimension_semantics<parallel>], iteration_bounds = array<i64: 2>, scalar_prefetch = 0 : i64, scratch_operands = 0 : i64, tpu.core_type = #tpu.core_type<tc>, window_params = [{transform_indices = @transform_0, window_bounds = array<i64: 1, 2, 576>}, {pipeline_mode = #tpu.pipeline_mode<synchronous>, transform_indices = @transform_1, window_bounds = array<i64: 2, 8>}, {transform_indices = @transform_2, window_bounds = array<i64: 1, 576, 64>}, {transform_indices = @transform_3, window_bounds = array<i64: 1, 1, 64>}, {transform_indices = @transform_4, window_bounds = array<i64: 1, 64, 20>}, {transform_indices = @transform_5, window_bounds = array<i64: 1, 1, 20>}, {transform_indices = @transform_6, window_bounds = array<i64: 1, 8, 20>}, {transform_indices = @transform_7, window_bounds = array<i64: 1, 1, 20>}, {transform_indices = @transform_8, window_bounds = array<i64: 1, 20, 80>}, {transform_indices = @transform_9, window_bounds = array<i64: 1, 20, 80>}, {transform_indices = @transform_10, window_bounds = array<i64: 1, 1, 80>}, {transform_indices = @transform_11, window_bounds = array<i64: 1, 80, 40>}, {transform_indices = @transform_12, window_bounds = array<i64: 1, 1, 40>}, {transform_indices = @transform_13, window_bounds = array<i64: 1, 40, 20>}, {transform_indices = @transform_14, window_bounds = array<i64: 1, 1, 20>}, {transform_indices = @transform_15, window_bounds = array<i64: 1, 20, 4>}, {transform_indices = @transform_16, window_bounds = array<i64: 1, 1, 4>}, {transform_indices = @transform_17, window_bounds = array<i64: 1, 2, 4>}]} {
    %c0 = arith.constant 0 : index
    %c0_0 = arith.constant 0 : index
    %c0_1 = arith.constant 0 : index
    %0 = vector.load %arg1[%c0, %c0_0, %c0_1] : memref<1x2x576xf32, #tpu.memory_space<vmem>>, vector<1x2x576xf32>
    %1 = vector.shape_cast %0 : vector<1x2x576xf32> to vector<2x576xf32>
    %c0_2 = arith.constant 0 : index
    %c0_3 = arith.constant 0 : index
    %c0_4 = arith.constant 0 : index
    %2 = vector.load %arg3[%c0_2, %c0_3, %c0_4] : memref<1x576x64xf32, #tpu.memory_space<vmem>>, vector<1x576x64xf32>
    %3 = vector.shape_cast %2 : vector<1x576x64xf32> to vector<576x64xf32>
    %cst = arith.constant dense<0.000000e+00> : vector<2x64xf32>
    %4 = tpu.matmul %1, %3, %cst {dimension_numbers = #tpu.dot_dimension_numbers<[1], [0], [0], [1], [0, 0, 1, 1], [], []>} : vector<2x576xf32>, vector<576x64xf32>, vector<2x64xf32> -> vector<2x64xf32>
    %c0_5 = arith.constant 0 : index
    %c0_6 = arith.constant 0 : index
    %c0_7 = arith.constant 0 : index
    %5 = vector.load %arg4[%c0_5, %c0_6, %c0_7] : memref<1x1x64xf32, #tpu.memory_space<vmem>>, vector<1x1x64xf32>
    %6 = vector.shape_cast %5 : vector<1x1x64xf32> to vector<1x64xf32>
    %7 = vector.broadcast %6 : vector<1x64xf32> to vector<2x64xf32>
    %8 = arith.addf %4, %7 : vector<2x64xf32>
    %cst_8 = arith.constant 0.000000e+00 : f32
    %9 = vector.broadcast %cst_8 : f32 to vector<2x64xf32>
    %10 = arith.maximumf %8, %9 : vector<2x64xf32>
    %c0_9 = arith.constant 0 : index
    %c0_10 = arith.constant 0 : index
    %c0_11 = arith.constant 0 : index
    %11 = vector.load %arg5[%c0_9, %c0_10, %c0_11] : memref<1x64x20xf32, #tpu.memory_space<vmem>>, vector<1x64x20xf32>
    %12 = vector.shape_cast %11 : vector<1x64x20xf32> to vector<64x20xf32>
    %cst_12 = arith.constant dense<0.000000e+00> : vector<2x20xf32>
    %13 = tpu.matmul %10, %12, %cst_12 {dimension_numbers = #tpu.dot_dimension_numbers<[1], [0], [0], [1], [0, 0, 1, 1], [], []>} : vector<2x64xf32>, vector<64x20xf32>, vector<2x20xf32> -> vector<2x20xf32>
    %c0_13 = arith.constant 0 : index
    %c0_14 = arith.constant 0 : index
    %c0_15 = arith.constant 0 : index
    %14 = vector.load %arg6[%c0_13, %c0_14, %c0_15] : memref<1x1x20xf32, #tpu.memory_space<vmem>>, vector<1x1x20xf32>
    %15 = vector.shape_cast %14 : vector<1x1x20xf32> to vector<1x20xf32>
    %16 = vector.broadcast %15 : vector<1x20xf32> to vector<2x20xf32>
    %17 = arith.addf %13, %16 : vector<2x20xf32>
    %c0_16 = arith.constant 0 : index
    %c0_17 = arith.constant 0 : index
    %18 = vector.load %arg2[%c0_16, %c0_17] : memref<2x8xf32, #tpu.memory_space<vmem>>, vector<2x8xf32>
    %c0_18 = arith.constant 0 : index
    %c0_19 = arith.constant 0 : index
    %c0_20 = arith.constant 0 : index
    %19 = vector.load %arg7[%c0_18, %c0_19, %c0_20] : memref<1x8x20xf32, #tpu.memory_space<vmem>>, vector<1x8x20xf32>
    %20 = vector.shape_cast %19 : vector<1x8x20xf32> to vector<8x20xf32>
    %cst_21 = arith.constant dense<0.000000e+00> : vector<2x20xf32>
    %21 = tpu.matmul %18, %20, %cst_21 {dimension_numbers = #tpu.dot_dimension_numbers<[1], [0], [0], [1], [0, 0, 1, 1], [], []>} : vector<2x8xf32>, vector<8x20xf32>, vector<2x20xf32> -> vector<2x20xf32>
    %c0_22 = arith.constant 0 : index
    %c0_23 = arith.constant 0 : index
    %c0_24 = arith.constant 0 : index
    %22 = vector.load %arg8[%c0_22, %c0_23, %c0_24] : memref<1x1x20xf32, #tpu.memory_space<vmem>>, vector<1x1x20xf32>
    %23 = vector.shape_cast %22 : vector<1x1x20xf32> to vector<1x20xf32>
    %24 = vector.broadcast %23 : vector<1x20xf32> to vector<2x20xf32>
    %25 = arith.addf %21, %24 : vector<2x20xf32>
    %cst_25 = arith.constant 0.000000e+00 : f32
    %26 = vector.broadcast %cst_25 : f32 to vector<2x20xf32>
    %27 = arith.maximumf %25, %26 : vector<2x20xf32>
    %c0_26 = arith.constant 0 : index
    %c0_27 = arith.constant 0 : index
    %c0_28 = arith.constant 0 : index
    %28 = vector.load %arg9[%c0_26, %c0_27, %c0_28] : memref<1x20x80xf32, #tpu.memory_space<vmem>>, vector<1x20x80xf32>
    %29 = vector.shape_cast %28 : vector<1x20x80xf32> to vector<20x80xf32>
    %cst_29 = arith.constant dense<0.000000e+00> : vector<2x80xf32>
    %30 = tpu.matmul %17, %29, %cst_29 {dimension_numbers = #tpu.dot_dimension_numbers<[1], [0], [0], [1], [0, 0, 1, 1], [], []>} : vector<2x20xf32>, vector<20x80xf32>, vector<2x80xf32> -> vector<2x80xf32>
    %c0_30 = arith.constant 0 : index
    %c0_31 = arith.constant 0 : index
    %c0_32 = arith.constant 0 : index
    %31 = vector.load %arg10[%c0_30, %c0_31, %c0_32] : memref<1x20x80xf32, #tpu.memory_space<vmem>>, vector<1x20x80xf32>
    %32 = vector.shape_cast %31 : vector<1x20x80xf32> to vector<20x80xf32>
    %cst_33 = arith.constant dense<0.000000e+00> : vector<2x80xf32>
    %33 = tpu.matmul %27, %32, %cst_33 {dimension_numbers = #tpu.dot_dimension_numbers<[1], [0], [0], [1], [0, 0, 1, 1], [], []>} : vector<2x20xf32>, vector<20x80xf32>, vector<2x80xf32> -> vector<2x80xf32>
    %34 = arith.addf %30, %33 : vector<2x80xf32>
    %c0_34 = arith.constant 0 : index
    %c0_35 = arith.constant 0 : index
    %c0_36 = arith.constant 0 : index
    %35 = vector.load %arg11[%c0_34, %c0_35, %c0_36] : memref<1x1x80xf32, #tpu.memory_space<vmem>>, vector<1x1x80xf32>
    %36 = vector.shape_cast %35 : vector<1x1x80xf32> to vector<1x80xf32>
    %37 = vector.broadcast %36 : vector<1x80xf32> to vector<2x80xf32>
    %38 = arith.addf %34, %37 : vector<2x80xf32>
    %cst_37 = arith.constant 0.000000e+00 : f32
    %39 = vector.broadcast %cst_37 : f32 to vector<2x80xf32>
    %40 = arith.maximumf %38, %39 : vector<2x80xf32>
    %c0_38 = arith.constant 0 : index
    %c0_39 = arith.constant 0 : index
    %c0_40 = arith.constant 0 : index
    %41 = vector.load %arg12[%c0_38, %c0_39, %c0_40] : memref<1x80x40xf32, #tpu.memory_space<vmem>>, vector<1x80x40xf32>
    %42 = vector.shape_cast %41 : vector<1x80x40xf32> to vector<80x40xf32>
    %cst_41 = arith.constant dense<0.000000e+00> : vector<2x40xf32>
    %43 = tpu.matmul %40, %42, %cst_41 {dimension_numbers = #tpu.dot_dimension_numbers<[1], [0], [0], [1], [0, 0, 1, 1], [], []>} : vector<2x80xf32>, vector<80x40xf32>, vector<2x40xf32> -> vector<2x40xf32>
    %c0_42 = arith.constant 0 : index
    %c0_43 = arith.constant 0 : index
    %c0_44 = arith.constant 0 : index
    %44 = vector.load %arg13[%c0_42, %c0_43, %c0_44] : memref<1x1x40xf32, #tpu.memory_space<vmem>>, vector<1x1x40xf32>
    %45 = vector.shape_cast %44 : vector<1x1x40xf32> to vector<1x40xf32>
    %46 = vector.broadcast %45 : vector<1x40xf32> to vector<2x40xf32>
    %47 = arith.addf %43, %46 : vector<2x40xf32>
    %cst_45 = arith.constant 0.000000e+00 : f32
    %48 = vector.broadcast %cst_45 : f32 to vector<2x40xf32>
    %49 = arith.maximumf %47, %48 : vector<2x40xf32>
    %c0_46 = arith.constant 0 : index
    %c0_47 = arith.constant 0 : index
    %c0_48 = arith.constant 0 : index
    %50 = vector.load %arg14[%c0_46, %c0_47, %c0_48] : memref<1x40x20xf32, #tpu.memory_space<vmem>>, vector<1x40x20xf32>
    %51 = vector.shape_cast %50 : vector<1x40x20xf32> to vector<40x20xf32>
    %cst_49 = arith.constant dense<0.000000e+00> : vector<2x20xf32>
    %52 = tpu.matmul %49, %51, %cst_49 {dimension_numbers = #tpu.dot_dimension_numbers<[1], [0], [0], [1], [0, 0, 1, 1], [], []>} : vector<2x40xf32>, vector<40x20xf32>, vector<2x20xf32> -> vector<2x20xf32>
    %c0_50 = arith.constant 0 : index
    %c0_51 = arith.constant 0 : index
    %c0_52 = arith.constant 0 : index
    %53 = vector.load %arg15[%c0_50, %c0_51, %c0_52] : memref<1x1x20xf32, #tpu.memory_space<vmem>>, vector<1x1x20xf32>
    %54 = vector.shape_cast %53 : vector<1x1x20xf32> to vector<1x20xf32>
    %55 = vector.broadcast %54 : vector<1x20xf32> to vector<2x20xf32>
    %56 = arith.addf %52, %55 : vector<2x20xf32>
    %cst_53 = arith.constant 0.000000e+00 : f32
    %57 = vector.broadcast %cst_53 : f32 to vector<2x20xf32>
    %58 = arith.maximumf %56, %57 : vector<2x20xf32>
    %c0_54 = arith.constant 0 : index
    %c0_55 = arith.constant 0 : index
    %c0_56 = arith.constant 0 : index
    %59 = vector.load %arg16[%c0_54, %c0_55, %c0_56] : memref<1x20x4xf32, #tpu.memory_space<vmem>>, vector<1x20x4xf32>
    %60 = vector.shape_cast %59 : vector<1x20x4xf32> to vector<20x4xf32>
    %cst_57 = arith.constant dense<0.000000e+00> : vector<2x4xf32>
    %61 = tpu.matmul %58, %60, %cst_57 {dimension_numbers = #tpu.dot_dimension_numbers<[1], [0], [0], [1], [0, 0, 1, 1], [], []>} : vector<2x20xf32>, vector<20x4xf32>, vector<2x4xf32> -> vector<2x4xf32>
    %c0_58 = arith.constant 0 : index
    %c0_59 = arith.constant 0 : index
    %c0_60 = arith.constant 0 : index
    %62 = vector.load %arg17[%c0_58, %c0_59, %c0_60] : memref<1x1x4xf32, #tpu.memory_space<vmem>>, vector<1x1x4xf32>
    %63 = vector.shape_cast %62 : vector<1x1x4xf32> to vector<1x4xf32>
    %64 = vector.broadcast %63 : vector<1x4xf32> to vector<2x4xf32>
    %65 = arith.addf %61, %64 : vector<2x4xf32>
    %c0_i32 = arith.constant 0 : i32
    %66 = arith.cmpi eq, %arg0, %c0_i32 : i32
    %67 = arith.extui %66 : i1 to i32
    %c0_i32_61 = arith.constant 0 : i32
    %68 = arith.cmpi ne, %67, %c0_i32_61 : i32
    scf.if %68 {
      %72 = math.tanh %65 : vector<2x4xf32>
      %c0_64 = arith.constant 0 : index
      %c0_65 = arith.constant 0 : index
      %c0_66 = arith.constant 0 : index
      %73 = vector.load %arg18[%c0_64, %c0_65, %c0_66] : memref<1x2x4xf32, #tpu.memory_space<vmem>>, vector<1x2x4xf32>
      %74 = vector.shape_cast %73 : vector<1x2x4xf32> to vector<2x4xf32>
      %75 = vector.shape_cast %72 : vector<2x4xf32> to vector<1x2x4xf32>
      tpu.vector_store %arg18[%c0_64, %c0_65, %c0_66], %75 {strides = array<i32>} : memref<1x2x4xf32, #tpu.memory_space<vmem>>, vector<1x2x4xf32>,
    } else {
    }
    %c0_i32_62 = arith.constant 0 : i32
    %69 = arith.cmpi ne, %arg0, %c0_i32_62 : i32
    %70 = arith.extui %69 : i1 to i32
    %c0_i32_63 = arith.constant 0 : i32
    %71 = arith.cmpi ne, %70, %c0_i32_63 : i32
    scf.if %71 {
      %c0_64 = arith.constant 0 : index
      %c0_65 = arith.constant 0 : index
      %c0_66 = arith.constant 0 : index
      %72 = vector.load %arg18[%c0_64, %c0_65, %c0_66] : memref<1x2x4xf32, #tpu.memory_space<vmem>>, vector<1x2x4xf32>
      %73 = vector.shape_cast %72 : vector<1x2x4xf32> to vector<2x4xf32>
      %74 = vector.shape_cast %65 : vector<2x4xf32> to vector<1x2x4xf32>
      tpu.vector_store %arg18[%c0_64, %c0_65, %c0_66], %74 {strides = array<i32>} : memref<1x2x4xf32, #tpu.memory_space<vmem>>, vector<1x2x4xf32>,
    } else {
    }
    return
  }
  func.func @transform_0(%arg0: i32) -> (i32, i32, i32) {
    %c0_i32 = arith.constant 0 : i32
    %c0_i32_0 = arith.constant 0 : i32
    %c0_i32_1 = arith.constant 0 : i32
    return %arg0, %c0_i32, %c0_i32_0 : i32, i32, i32
  }
  func.func @transform_1(%arg0: i32) -> (i32, i32) {
    %c0_i32 = arith.constant 0 : i32
    %c0_i32_0 = arith.constant 0 : i32
    %c0_i32_1 = arith.constant 0 : i32
    return %c0_i32, %c0_i32_0 : i32, i32
  }
  func.func @transform_2(%arg0: i32) -> (i32, i32, i32) {
    %c0_i32 = arith.constant 0 : i32
    %c0_i32_0 = arith.constant 0 : i32
    %c0_i32_1 = arith.constant 0 : i32
    return %arg0, %c0_i32, %c0_i32_0 : i32, i32, i32
  }
  func.func @transform_3(%arg0: i32) -> (i32, i32, i32) {
    %c0_i32 = arith.constant 0 : i32
    %c0_i32_0 = arith.constant 0 : i32
    %c0_i32_1 = arith.constant 0 : i32
    return %arg0, %c0_i32, %c0_i32_0 : i32, i32, i32
  }
  func.func @transform_4(%arg0: i32) -> (i32, i32, i32) {
    %c0_i32 = arith.constant 0 : i32
    %c0_i32_0 = arith.constant 0 : i32
    %c0_i32_1 = arith.constant 0 : i32
    return %arg0, %c0_i32, %c0_i32_0 : i32, i32, i32
  }
  func.func @transform_5(%arg0: i32) -> (i32, i32, i32) {
    %c0_i32 = arith.constant 0 : i32
    %c0_i32_0 = arith.constant 0 : i32
    %c0_i32_1 = arith.constant 0 : i32
    return %arg0, %c0_i32, %c0_i32_0 : i32, i32, i32
  }
  func.func @transform_6(%arg0: i32) -> (i32, i32, i32) {
    %c0_i32 = arith.constant 0 : i32
    %c0_i32_0 = arith.constant 0 : i32
    %c0_i32_1 = arith.constant 0 : i32
    return %arg0, %c0_i32, %c0_i32_0 : i32, i32, i32
  }
  func.func @transform_7(%arg0: i32) -> (i32, i32, i32) {
    %c0_i32 = arith.constant 0 : i32
    %c0_i32_0 = arith.constant 0 : i32
    %c0_i32_1 = arith.constant 0 : i32
    return %arg0, %c0_i32, %c0_i32_0 : i32, i32, i32
  }
  func.func @transform_8(%arg0: i32) -> (i32, i32, i32) {
    %c0_i32 = arith.constant 0 : i32
    %c0_i32_0 = arith.constant 0 : i32
    %c0_i32_1 = arith.constant 0 : i32
    return %arg0, %c0_i32, %c0_i32_0 : i32, i32, i32
  }
  func.func @transform_9(%arg0: i32) -> (i32, i32, i32) {
    %c0_i32 = arith.constant 0 : i32
    %c0_i32_0 = arith.constant 0 : i32
    %c0_i32_1 = arith.constant 0 : i32
    return %arg0, %c0_i32, %c0_i32_0 : i32, i32, i32
  }
  func.func @transform_10(%arg0: i32) -> (i32, i32, i32) {
    %c0_i32 = arith.constant 0 : i32
    %c0_i32_0 = arith.constant 0 : i32
    %c0_i32_1 = arith.constant 0 : i32
    return %arg0, %c0_i32, %c0_i32_0 : i32, i32, i32
  }
  func.func @transform_11(%arg0: i32) -> (i32, i32, i32) {
    %c0_i32 = arith.constant 0 : i32
    %c0_i32_0 = arith.constant 0 : i32
    %c0_i32_1 = arith.constant 0 : i32
    return %arg0, %c0_i32, %c0_i32_0 : i32, i32, i32
  }
  func.func @transform_12(%arg0: i32) -> (i32, i32, i32) {
    %c0_i32 = arith.constant 0 : i32
    %c0_i32_0 = arith.constant 0 : i32
    %c0_i32_1 = arith.constant 0 : i32
    return %arg0, %c0_i32, %c0_i32_0 : i32, i32, i32
  }
  func.func @transform_13(%arg0: i32) -> (i32, i32, i32) {
    %c0_i32 = arith.constant 0 : i32
    %c0_i32_0 = arith.constant 0 : i32
    %c0_i32_1 = arith.constant 0 : i32
    return %arg0, %c0_i32, %c0_i32_0 : i32, i32, i32
  }
  func.func @transform_14(%arg0: i32) -> (i32, i32, i32) {
    %c0_i32 = arith.constant 0 : i32
    %c0_i32_0 = arith.constant 0 : i32
    %c0_i32_1 = arith.constant 0 : i32
    return %arg0, %c0_i32, %c0_i32_0 : i32, i32, i32
  }
  func.func @transform_15(%arg0: i32) -> (i32, i32, i32) {
    %c0_i32 = arith.constant 0 : i32
    %c0_i32_0 = arith.constant 0 : i32
    %c0_i32_1 = arith.constant 0 : i32
    return %arg0, %c0_i32, %c0_i32_0 : i32, i32, i32
  }
  func.func @transform_16(%arg0: i32) -> (i32, i32, i32) {
    %c0_i32 = arith.constant 0 : i32
    %c0_i32_0 = arith.constant 0 : i32
    %c0_i32_1 = arith.constant 0 : i32
    return %arg0, %c0_i32, %c0_i32_0 : i32, i32, i32
  }
  func.func @transform_17(%arg0: i32) -> (i32, i32, i32) {
    %c0_i32 = arith.constant 0 : i32
    %c0_i32_0 = arith.constant 0 : i32
    %c0_i32_1 = arith.constant 0 : i32
    return %arg0, %c0_i32, %c0_i32_0 : i32, i32, i32
  }
}

</mosaic_0001>

<llo_original>
// kernel: forward.3
$region0: #{forward.3}
  #allocation0 [shape = 'u32[]', space=smem, size = 0x4, offset = 0x4, fixed_abs, tag = 'smem constant byte address 0x4 - core index']
  #allocation1 [shape = 'u32[144,128]{1,0:T(1,128)}', space=vmem, size = 0x12000, scoped, tag = 'internal scratch']
  %s0 = inlined_call_operand.vmem [shape: bf16[1,128,192], index: 0, kind: input, shape index: {}]
  %s1 = inlined_call_operand.vmem [shape: bf16[1,192,64], index: 1, kind: input, shape index: {}]
  %s2 = inlined_call_operand.vmem [shape: f32[1,1,64], index: 2, kind: input, shape index: {}]
  %s3 = inlined_call_operand.vmem [shape: f32[1,128,64], index: 3, kind: output, shape index: {}]
  %s4 = sld [smem:[#allocation0]]
  $region22: #{forward.3} parent=0
    _
  %s6 = ssub.s32 1, %s4
  %s7 = scalar_select 0, %s6, %s4
  // Predicated region
  $region2: #{forward.3} parent=0 // pred_check
    _
  $region3: #{forward.3} parent=0 // pred_check_branch
    %9 = sbr.rel (0) target = $region5
  $region4: #{forward.3} parent=0 // pred_region
    _
  $region5: #{forward.3} parent=0 // pred_fallthru
    _
  // Predicated region
  $region6: #{forward.3} parent=0 // pred_check
    _
  $region7: #{forward.3} parent=0 // pred_check_branch
    %11 = sbr.rel (0) target = $region9
  $region8: #{forward.3} parent=0 // pred_region
    _
  $region9: #{forward.3} parent=0 // pred_fallthru
    _
  // Predicated region
  $region10: #{forward.3} parent=0 // pred_check
    _
  $region11: #{forward.3} parent=0 // pred_check_branch
    %13 = sbr.rel (0) target = $region13
  $region12: #{forward.3} parent=0 // pred_region
    _
  $region13: #{forward.3} parent=0 // pred_fallthru
    _
  %v15 = vld [vmem:[%s0] sm:$0xff]
  %v16 = vld [vmem:[%s0 + $0x8] sm:$0xff]
  %v17 = vld [vmem:[%s0 + $0x10] sm:$0xff]
  %v18 = vld [vmem:[%s0 + $0x18] sm:$0xff]
  %v19 = vld [vmem:[%s0 + $0x20] sm:$0xff]
  %v20 = vld [vmem:[%s0 + $0x28] sm:$0xff]
  %v21 = vld [vmem:[%s0 + $0x30] sm:$0xff]
  %v22 = vld [vmem:[%s0 + $0x38] sm:$0xff]
  %v23 = vld [vmem:[%s0 + $0x40] sm:$0xff]
  %v24 = vld [vmem:[%s0 + $0x48] sm:$0xff]
  %v25 = vld [vmem:[%s0 + $0x50] sm:$0xff]
  %v26 = vld [vmem:[%s0 + $0x58] sm:$0xff]
  %v27 = vld [vmem:[%s0 + $0x60] sm:$0xff]
  %v28 = vld [vmem:[%s0 + $0x68] sm:$0xff]
  %v29 = vld [vmem:[%s0 + $0x70] sm:$0xff]
  %v30 = vld [vmem:[%s0 + $0x78] sm:$0xff]
  %v31 = vld [vmem:[%s1] sm:$0xf]
  %v32 = vld [vmem:[%s1 + $0x4] sm:$0xf]
  %v33 = vld [vmem:[%s1 + $0x8] sm:$0xf]
  %v34 = vld [vmem:[%s1 + $0xc] sm:$0xf]
  %v35 = vld [vmem:[%s1 + $0x10] sm:$0xf]
  %v36 = vld [vmem:[%s1 + $0x14] sm:$0xf]
  %v37 = vld [vmem:[%s1 + $0x18] sm:$0xf]
  %v38 = vld [vmem:[%s1 + $0x1c] sm:$0xf]
  %v39 = vld [vmem:[%s1 + $0x20] sm:$0xf]
  %v40 = vld [vmem:[%s1 + $0x24] sm:$0xf]
  %v41 = vld [vmem:[%s1 + $0x28] sm:$0xf]
  %v42 = vld [vmem:[%s1 + $0x2c] sm:$0xf]
  %v43 = vld [vmem:[%s1 + $0x30] sm:$0xf]
  %v44 = vld [vmem:[%s1 + $0x34] sm:$0xf]
  %v45 = vld [vmem:[%s1 + $0x38] sm:$0xf]
  %v46 = vld [vmem:[%s1 + $0x3c] sm:$0xf]
  %v47 = vld [vmem:[%s1 + $0x40] sm:$0xf]
  %v48 = vld [vmem:[%s1 + $0x44] sm:$0xf]
  %v49 = vld [vmem:[%s1 + $0x48] sm:$0xf]
  %v50 = vld [vmem:[%s1 + $0x4c] sm:$0xf]
  %v51 = vld [vmem:[%s1 + $0x50] sm:$0xf]
  %v52 = vld [vmem:[%s1 + $0x54] sm:$0xf]
  %v53 = vld [vmem:[%s1 + $0x58] sm:$0xf]
  %v54 = vld [vmem:[%s1 + $0x5c] sm:$0xf]
  %v55 = vld [vmem:[%s2] sm:$0x1]
  %v57 = vlaneseq
  %v58 = vshrl.u32 %v57, 7
  %v59 = vsub.s32 0, %v58
  %v60 = vrot.slane %v55, %v59
  %v78 = vunpack.c.l.b16 %v15
  %v79 = vunpack.c.h.b16 %v15
  %v80 = vunpack.c.l.b16 %v16
  %v81 = vunpack.c.h.b16 %v16
  %v82 = vunpack.c.l.b16 %v17
  %v83 = vunpack.c.h.b16 %v17
  %v84 = vunpack.c.l.b16 %v18
  %v85 = vunpack.c.h.b16 %v18
  %v86 = vunpack.c.l.b16 %v19
  %v87 = vunpack.c.h.b16 %v19
  %v88 = vunpack.c.l.b16 %v20
  %v89 = vunpack.c.h.b16 %v20
  %v90 = vunpack.c.l.b16 %v21
  %v91 = vunpack.c.h.b16 %v21
  %v92 = vunpack.c.l.b16 %v22
  %v93 = vunpack.c.h.b16 %v22
  %v94 = vunpack.c.l.b16 %v23
  %v95 = vunpack.c.h.b16 %v23
  %v96 = vunpack.c.l.b16 %v24
  %v97 = vunpack.c.h.b16 %v24
  %v98 = vunpack.c.l.b16 %v25
  %v99 = vunpack.c.h.b16 %v25
  %v100 = vunpack.c.l.b16 %v26
  %v101 = vunpack.c.h.b16 %v26
  %v102 = vunpack.c.l.b16 %v27
  %v103 = vunpack.c.h.b16 %v27
  %v104 = vunpack.c.l.b16 %v28
  %v105 = vunpack.c.h.b16 %v28
  %v106 = vunpack.c.l.b16 %v29
  %v107 = vunpack.c.h.b16 %v29
  %v108 = vunpack.c.l.b16 %v30
  %v109 = vunpack.c.h.b16 %v30
  %v110 = vpack.c.b16 %v80, %v78
  %v111 = vpack.c.b16 %v81, %v79
  %v112 = vpack.c.b16 %v84, %v82
  %v113 = vpack.c.b16 %v85, %v83
  %v114 = vpack.c.b16 %v88, %v86
  %v115 = vpack.c.b16 %v89, %v87
  %v116 = vpack.c.b16 %v92, %v90
  %v117 = vpack.c.b16 %v93, %v91
  %v118 = vpack.c.b16 %v96, %v94
  %v119 = vpack.c.b16 %v97, %v95
  %v120 = vpack.c.b16 %v100, %v98
  %v121 = vpack.c.b16 %v101, %v99
  %v122 = vpack.c.b16 %v104, %v102
  %v123 = vpack.c.b16 %v105, %v103
  %v124 = vpack.c.b16 %v108, %v106
  %v125 = vpack.c.b16 %v109, %v107
  %v158 = vunpack.c.l.b16 %v31
  %v159 = vunpack.c.l.b16 %v32
  %v160 = vunpack.c.l.b16 %v33
  %v161 = vunpack.c.l.b16 %v34
  %v162 = vunpack.c.l.b16 %v35
  %v163 = vunpack.c.l.b16 %v36
  %v164 = vunpack.c.l.b16 %v37
  %v165 = vunpack.c.l.b16 %v38
  %v166 = vunpack.c.l.b16 %v39
  %v167 = vunpack.c.l.b16 %v40
  %v168 = vunpack.c.l.b16 %v41
  %v169 = vunpack.c.l.b16 %v42
  %v170 = vunpack.c.l.b16 %v43
  %v171 = vunpack.c.l.b16 %v44
  %v172 = vunpack.c.l.b16 %v45
  %v173 = vunpack.c.l.b16 %v46
  %v174 = vunpack.c.l.b16 %v47
  %v175 = vunpack.c.l.b16 %v48
  %v176 = vunpack.c.l.b16 %v49
  %v177 = vunpack.c.l.b16 %v50
  %v178 = vunpack.c.l.b16 %v51
  %v179 = vunpack.c.l.b16 %v52
  %v180 = vunpack.c.l.b16 %v53
  %v181 = vunpack.c.l.b16 %v54
  %v182 = vpack.c.b16 %v159, %v158
  %v183 = vpack.c.b16 %v161, %v160
  %v184 = vpack.c.b16 %v163, %v162
  %v185 = vpack.c.b16 %v165, %v164
  %v186 = vpack.c.b16 %v167, %v166
  %v187 = vpack.c.b16 %v169, %v168
  %v188 = vpack.c.b16 %v171, %v170
  %v189 = vpack.c.b16 %v173, %v172
  %v190 = vpack.c.b16 %v175, %v174
  %v191 = vpack.c.b16 %v177, %v176
  %v192 = vpack.c.b16 %v179, %v178
  %v193 = vpack.c.b16 %v181, %v180
  %vm206 = vcmask 523264
  %v208 = vsel %vm206, %v111, 0
  %v211 = vsel %vm206, %v113, 0
  %v214 = vsel %vm206, %v115, 0
  %v217 = vsel %vm206, %v117, 0
  %v220 = vsel %vm206, %v119, 0
  %v223 = vsel %vm206, %v121, 0
  %v226 = vsel %vm206, %v123, 0
  %v229 = vsel %vm206, %v125, 0
  %231 = vmatprep.subr.bf16.mxu0 0
  %232 = vmatpush1.bf16.msra.mxu0 %v189
  %233 = vmatprep.subr.bf16.mxu0 0
  %234 = vmatpush1.bf16.msra.mxu0 %v188
  %235 = vmatprep.subr.bf16.mxu0 0
  %236 = vmatpush1.bf16.msra.mxu0 %v187
  %237 = vmatprep.subr.bf16.mxu0 0
  %238 = vmatpush1.bf16.msra.mxu0 %v186
  %239 = vmatprep.subr.bf16.mxu0 0
  %240 = vmatpush1.bf16.msra.mxu0 %v185
  %241 = vmatprep.subr.bf16.mxu0 0
  %242 = vmatpush1.bf16.msra.mxu0 %v184
  %243 = vmatprep.subr.bf16.mxu0 0
  %244 = vmatpush1.bf16.msra.mxu0 %v183
  %245 = vmatprep.subr.bf16.mxu0 0
  %246 = vmatpush1.bf16.msra.mxu0 %v182
  %247 = vmatprep.subr.bf16.mxu0 0
  %248 = vmatpush2.bf16.msra.mxu0 0
  %249 = vmatprep.subr.bf16.mxu0 0
  %250 = vmatpush2.bf16.msra.mxu0 0
  %251 = vmatprep.subr.bf16.mxu0 0
  %252 = vmatpush2.bf16.msra.mxu0 0
  %253 = vmatprep.subr.bf16.mxu0 0
  %254 = vmatpush2.bf16.msra.mxu0 0
  %255 = vmatprep.subr.bf16.mxu0 0
  %256 = vmatpush2.bf16.msra.mxu0 %v193
  %257 = vmatprep.subr.bf16.mxu0 0
  %258 = vmatpush2.bf16.msra.mxu0 %v192
  %259 = vmatprep.subr.bf16.mxu0 0
  %260 = vmatpush2.bf16.msra.mxu0 %v191
  %261 = vmatprep.subr.bf16.mxu0 0
  %262 = vmatpush2.bf16.msra.mxu0 %v190
  %263 = vmatprep.mubr.bf16.mxu0 %v208
  %264 = vmatmul.mubr.bf16.gmra.mxu0 %v110
  %v265 = vpop.f32.mrf.mxu0
  %v266 = vadd.f32 %v60, %v265
  %v267 = vpop.f32.mrf.mxu0
  %v268 = vpop.f32.mrf.mxu0
  %v269 = vadd.f32 %v60, %v268
  %v270 = vpop.f32.mrf.mxu0
  %271 = vmatprep.mubr.bf16.mxu0 %v211
  %272 = vmatmul.mubr.bf16.gmra.mxu0 %v112
  %v273 = vpop.f32.mrf.mxu0
  %v274 = vadd.f32 %v60, %v273
  %v275 = vpop.f32.mrf.mxu0
  %v276 = vpop.f32.mrf.mxu0
  %v277 = vadd.f32 %v60, %v276
  %v278 = vpop.f32.mrf.mxu0
  %279 = vmatprep.mubr.bf16.mxu0 %v214
  %280 = vmatmul.mubr.bf16.gmra.mxu0 %v114
  %v281 = vpop.f32.mrf.mxu0
  %v282 = vadd.f32 %v60, %v281
  %v283 = vpop.f32.mrf.mxu0
  %v284 = vpop.f32.mrf.mxu0
  %v285 = vadd.f32 %v60, %v284
  %v286 = vpop.f32.mrf.mxu0
  %287 = vmatprep.mubr.bf16.mxu0 %v217
  %288 = vmatmul.mubr.bf16.gmra.mxu0 %v116
  %v289 = vpop.f32.mrf.mxu0
  %v290 = vadd.f32 %v60, %v289
  %v291 = vpop.f32.mrf.mxu0
  %v292 = vpop.f32.mrf.mxu0
  %v293 = vadd.f32 %v60, %v292
  %v294 = vpop.f32.mrf.mxu0
  %295 = vmatprep.mubr.bf16.mxu0 %v220
  %296 = vmatmul.mubr.bf16.gmra.mxu0 %v118
  %v297 = vpop.f32.mrf.mxu0
  %v298 = vadd.f32 %v60, %v297
  %v299 = vpop.f32.mrf.mxu0
  %v300 = vpop.f32.mrf.mxu0
  %v301 = vadd.f32 %v60, %v300
  %v302 = vpop.f32.mrf.mxu0
  %303 = vmatprep.mubr.bf16.mxu0 %v223
  %304 = vmatmul.mubr.bf16.gmra.mxu0 %v120
  %v305 = vpop.f32.mrf.mxu0
  %v306 = vadd.f32 %v60, %v305
  %v307 = vpop.f32.mrf.mxu0
  %v308 = vpop.f32.mrf.mxu0
  %v309 = vadd.f32 %v60, %v308
  %v310 = vpop.f32.mrf.mxu0
  %311 = vmatprep.mubr.bf16.mxu0 %v226
  %312 = vmatmul.mubr.bf16.gmra.mxu0 %v122
  %v313 = vpop.f32.mrf.mxu0
  %v314 = vadd.f32 %v60, %v313
  %v315 = vpop.f32.mrf.mxu0
  %v316 = vpop.f32.mrf.mxu0
  %v317 = vadd.f32 %v60, %v316
  %v318 = vpop.f32.mrf.mxu0
  %319 = vmatprep.mubr.bf16.mxu0 %v229
  %320 = vmatmul.mubr.bf16.gmra.mxu0 %v124
  %v321 = vpop.f32.mrf.mxu0
  %v322 = vadd.f32 %v60, %v321
  %v323 = vpop.f32.mrf.mxu0
  %v324 = vpop.f32.mrf.mxu0
  %v325 = vadd.f32 %v60, %v324
  %v326 = vpop.f32.mrf.mxu0
  %327 = vdwg.mxu0
  %v328 = vmax.f32 %v266, 0.0
  %v329 = vmax.f32 %v269, 0.0
  %v330 = vmax.f32 %v274, 0.0
  %v331 = vmax.f32 %v277, 0.0
  %v332 = vmax.f32 %v282, 0.0
  %v333 = vmax.f32 %v285, 0.0
  %v334 = vmax.f32 %v290, 0.0
  %v335 = vmax.f32 %v293, 0.0
  %v336 = vmax.f32 %v298, 0.0
  %v337 = vmax.f32 %v301, 0.0
  %v338 = vmax.f32 %v306, 0.0
  %v339 = vmax.f32 %v309, 0.0
  %v340 = vmax.f32 %v314, 0.0
  %v341 = vmax.f32 %v317, 0.0
  %v342 = vmax.f32 %v322, 0.0
  %v343 = vmax.f32 %v325, 0.0
  %344 = vst.msk [vmem:[%s3] sm:$0xff] %vm206, %v328
  %345 = vst.msk [vmem:[%s3 + $0x8] sm:$0xff] %vm206, %v329
  %346 = vst.msk [vmem:[%s3 + $0x10] sm:$0xff] %vm206, %v330
  %347 = vst.msk [vmem:[%s3 + $0x18] sm:$0xff] %vm206, %v331
  %348 = vst.msk [vmem:[%s3 + $0x20] sm:$0xff] %vm206, %v332
  %349 = vst.msk [vmem:[%s3 + $0x28] sm:$0xff] %vm206, %v333
  %350 = vst.msk [vmem:[%s3 + $0x30] sm:$0xff] %vm206, %v334
  %351 = vst.msk [vmem:[%s3 + $0x38] sm:$0xff] %vm206, %v335
  %352 = vst.msk [vmem:[%s3 + $0x40] sm:$0xff] %vm206, %v336
  %353 = vst.msk [vmem:[%s3 + $0x48] sm:$0xff] %vm206, %v337
  %354 = vst.msk [vmem:[%s3 + $0x50] sm:$0xff] %vm206, %v338
  %355 = vst.msk [vmem:[%s3 + $0x58] sm:$0xff] %vm206, %v339
  %356 = vst.msk [vmem:[%s3 + $0x60] sm:$0xff] %vm206, %v340
  %357 = vst.msk [vmem:[%s3 + $0x68] sm:$0xff] %vm206, %v341
  %358 = vst.msk [vmem:[%s3 + $0x70] sm:$0xff] %vm206, %v342
  %359 = vst.msk [vmem:[%s3 + $0x78] sm:$0xff] %vm206, %v343
  // Predicated region
  $region14: #{forward.3} parent=0 // pred_check
    _
  $region15: #{forward.3} parent=0 // pred_check_branch
    %361 = sbr.rel (0) target = $region17
  $region16: #{forward.3} parent=0 // pred_region
    _
  $region17: #{forward.3} parent=0 // pred_fallthru
    _
  // Predicated region
  $region18: #{forward.3} parent=0 // pred_check
    _
  $region19: #{forward.3} parent=0 // pred_check_branch
    %363 = sbr.rel (0) target = $region21
  $region20: #{forward.3} parent=0 // pred_region
    _
  $region21: #{forward.3} parent=0 // pred_fallthru
    _

// kernel: forward.4
$region0: #{forward.4}
  #allocation0 [shape = 'u32[]', space=smem, size = 0x4, offset = 0x4, fixed_abs, tag = 'smem constant byte address 0x4 - core index']
  #allocation1 [shape = 'u32[144,128]{1,0:T(1,128)}', space=vmem, size = 0x12000, scoped, tag = 'internal scratch']
  %s0 = inlined_call_operand.vmem [shape: bf16[2,18,512], index: 0, kind: input, shape index: {}]
  %s1 = inlined_call_operand.vmem [shape: bf16[2,512,64], index: 1, kind: input, shape index: {}]
  %s2 = inlined_call_operand.vmem [shape: f32[2,1,64], index: 2, kind: input, shape index: {}]
  %s3 = inlined_call_operand.vmem [shape: f32[2,18,64], index: 3, kind: output, shape index: {}]
  %s4 = sld [smem:[#allocation0]]
  $region45: #{forward.4} parent=0
    _
  %s6 = ssub.s32 1, %s4
  %s7 = scalar_select 0, %s6, %s4
  loop: start=0, step=1, limit=4
  $region2: #{forward.4} parent=0 // loop_pre_header
    _
  $region3: #{forward.4} parent=0 // loop_header
    %s9 = sphi 0, %s13
    %p10 = scmp.ge.s32.totalorder %s9, 4
    %s16 = sphi 0, %s28
    %s17 = sphi 0, %s24
    %s18 = sphi 0, %s16
    %s19 = sphi 0, %s17
    %s20 = sphi 0, %s18
    %s21 = sphi 0, %s19
    %s33 = sphi 0, %s35
    %s36 = sphi 0, %s33
    %s37 = sphi 0, %s36
    %s53 = sphi 0, %s37
    %s59 = sphi 0, %s61
    %s62 = sphi 0, %s59
    %s63 = sphi 0, %s62
    %s79 = sphi 0, %s63
    %s85 = sphi 0, %s87
    %s88 = sphi 0, %s85
    %s89 = sphi 0, %s88
    %s105 = sphi 0, %s89
    %s113 = sphi 0, %s115
    %s116 = sphi 0, %s113
    %s117 = sphi 0, %s116
    %s133 = sphi 0, %s117
  $region4: #{forward.4} parent=0 // loop_header_branch
    %12 = sbr.rel (%p10) target = $region8
  $region5: #{forward.4} parent=0 // loop_body
    %s14 = ssub.s32 %s9, 1
    %s15 = ssub.s32 %s9, 2
    %s22 = sadd.s32 1, %s17
    %p23 = scmp.ge.s32.totalorder %s22, 1
    %s24 = scalar_select %p23, 0, %s22
    %s25 = sadd.s32 1, %s16
    %s26 = scalar_select %p23, %s25, %s16
    %p27 = scmp.ge.s32.totalorder %s26, 2
    %s28 = scalar_select %p27, 0, %s26
    %s29 = ssub.s32 %s16, %s28
    %s30 = ssub.s32 %s17, %s24
    %s31 = sor.u32 %s29, %s30
    %p32 = scmp.eq.s32.totalorder %s31, 0
    %s34 = sadd.s32 %s33, 1
    %s35 = scalar_select %p32, %s33, %s34
    %p38 = pneg %p32
    %p39 = scmp.eq.s32.totalorder %s9, 1
    %p40 = por %p38, %p39
    %p41 = scmp.ne.s32.totalorder %s33, %s36
    %p42 = scmp.eq.s32.totalorder %s9, 0
    %p43 = por %p41, %p42
    %p44 = scmp.ne.s32.totalorder %s33, %s36
    %p45 = scmp.eq.s32.totalorder %s14, 1
    %p46 = por %p44, %p45
    %p47 = scmp.ne.s32.totalorder %s36, %s37
    %p48 = scmp.eq.s32.totalorder %s14, 0
    %p49 = por %p47, %p48
    %p50 = scmp.ne.s32.totalorder %s36, %s37
    %p51 = scmp.eq.s32.totalorder %s15, 1
    %p52 = por %p50, %p51
    %p54 = scmp.ne.s32.totalorder %s37, %s53
    %p55 = scmp.eq.s32.totalorder %s15, 0
    %p56 = por %p54, %p55
    %s57 = ssub.s32 %s16, %s28
    %p58 = scmp.eq.s32.totalorder %s57, 0
    %s60 = sadd.s32 %s59, 1
    %s61 = scalar_select %p58, %s59, %s60
    %p64 = pneg %p58
    %p65 = scmp.eq.s32.totalorder %s9, 1
    %p66 = por %p64, %p65
    %p67 = scmp.ne.s32.totalorder %s59, %s62
    %p68 = scmp.eq.s32.totalorder %s9, 0
    %p69 = por %p67, %p68
    %p70 = scmp.ne.s32.totalorder %s59, %s62
    %p71 = scmp.eq.s32.totalorder %s14, 1
    %p72 = por %p70, %p71
    %p73 = scmp.ne.s32.totalorder %s62, %s63
    %p74 = scmp.eq.s32.totalorder %s14, 0
    %p75 = por %p73, %p74
    %p76 = scmp.ne.s32.totalorder %s62, %s63
    %p77 = scmp.eq.s32.totalorder %s15, 1
    %p78 = por %p76, %p77
    %p80 = scmp.ne.s32.totalorder %s63, %s79
    %p81 = scmp.eq.s32.totalorder %s15, 0
    %p82 = por %p80, %p81
    %s83 = ssub.s32 %s16, %s28
    %p84 = scmp.eq.s32.totalorder %s83, 0
    %s86 = sadd.s32 %s85, 1
    %s87 = scalar_select %p84, %s85, %s86
    %p90 = pneg %p84
    %p91 = scmp.eq.s32.totalorder %s9, 1
    %p92 = por %p90, %p91
    %p93 = scmp.ne.s32.totalorder %s85, %s88
    %p94 = scmp.eq.s32.totalorder %s9, 0
    %p95 = por %p93, %p94
    %p96 = scmp.ne.s32.totalorder %s85, %s88
    %p97 = scmp.eq.s32.totalorder %s14, 1
    %p98 = por %p96, %p97
    %p99 = scmp.ne.s32.totalorder %s88, %s89
    %p100 = scmp.eq.s32.totalorder %s14, 0
    %p101 = por %p99, %p100
    %p102 = scmp.ne.s32.totalorder %s88, %s89
    %p103 = scmp.eq.s32.totalorder %s15, 1
    %p104 = por %p102, %p103
    %p106 = scmp.ne.s32.totalorder %s89, %s105
    %p107 = scmp.eq.s32.totalorder %s15, 0
    %p108 = por %p106, %p107
    %s109 = ssub.s32 %s16, %s28
    %s110 = ssub.s32 %s17, %s24
    %s111 = sor.u32 %s109, %s110
    %p112 = scmp.eq.s32.totalorder %s111, 0
    %s114 = sadd.s32 %s113, 1
    %s115 = scalar_select %p112, %s113, %s114
    %p118 = pneg %p112
    %p119 = scmp.eq.s32.totalorder %s9, 1
    %p120 = por %p118, %p119
    %p121 = scmp.ne.s32.totalorder %s113, %s116
    %p122 = scmp.eq.s32.totalorder %s9, 0
    %p123 = por %p121, %p122
    %p124 = scmp.ne.s32.totalorder %s113, %s116
    %p125 = scmp.eq.s32.totalorder %s14, 1
    %p126 = por %p124, %p125
    %p127 = scmp.ne.s32.totalorder %s116, %s117
    %p128 = scmp.eq.s32.totalorder %s14, 0
    %p129 = por %p127, %p128
    %p130 = scmp.ne.s32.totalorder %s116, %s117
    %p131 = scmp.eq.s32.totalorder %s15, 1
    %p132 = por %p130, %p131
    %p134 = scmp.ne.s32.totalorder %s117, %s133
    %p135 = scmp.eq.s32.totalorder %s15, 0
    %p136 = por %p134, %p135
    %p137 = scmp.le.s32.totalorder 1, %s9
    %p138 = scmp.lt.s32.totalorder %s9, 3
    %p139 = pnand %p137, %p138
    %p140 = pneg %p139
    // Predicated region
    $region9: #{forward.4} parent=5 // pred_check
      _
    $region10: #{forward.4} parent=5 // pred_check_branch
      %142 = sbr.rel (%p139) target = $region12
    $region11: #{forward.4} parent=5 // pred_region
      %s143 = ssub.s32 %s9, 1
    $region12: #{forward.4} parent=5 // pred_fallthru
      _
    %p144 = scmp.lt.s32.totalorder %s9, 2
    // Predicated region
    $region13: #{forward.4} parent=5 // pred_check
      %p145 = pneg %p144
    $region14: #{forward.4} parent=5 // pred_check_branch
      %147 = sbr.rel (%p145) target = $region16
    $region15: #{forward.4} parent=5 // pred_region
      // Predicated region
      $region17: #{forward.4} parent=15 // pred_check
        %p148 = pneg %p43
      $region18: #{forward.4} parent=15 // pred_check_branch
        %150 = sbr.rel (%p148) target = $region20
      $region19: #{forward.4} parent=15 // pred_region
        %s151 = smul.u32 3, %s17
        %p152 = scmp.lt.s32.totalorder %s16, 1
        %s153 = scalar_select %p152, %s16, 1
        %p154 = scmp.lt.s32.totalorder %s151, 2
        %s155 = scalar_select %p154, %s151, 2
        %s156 = smul.addr %s155, 4
        %s157 = smul.addr %s153, 12
        %s158 = sadd.s32 %s156, %s157
        %s159 = smul.addr %s158, 4
        %s160 = scalar_lea.vmem %s0, %s159
        %s161 = smul.u32 3, %s17
      $region20: #{forward.4} parent=15 // pred_fallthru
        _
      // Predicated region
      $region21: #{forward.4} parent=15 // pred_check
        %p162 = pneg %p69
      $region22: #{forward.4} parent=15 // pred_check_branch
        %164 = sbr.rel (%p162) target = $region24
      $region23: #{forward.4} parent=15 // pred_region
        %p165 = scmp.lt.s32.totalorder %s16, 1
        %s166 = scalar_select %p165, %s16, 1
        %s167 = smul.addr %s166, 64
        %s168 = smul.addr %s167, 4
        %s169 = scalar_lea.vmem %s1, %s168
      $region24: #{forward.4} parent=15 // pred_fallthru
        _
      // Predicated region
      $region25: #{forward.4} parent=15 // pred_check
        %p170 = pneg %p95
      $region26: #{forward.4} parent=15 // pred_check_branch
        %172 = sbr.rel (%p170) target = $region28
      $region27: #{forward.4} parent=15 // pred_region
        %p173 = scmp.lt.s32.totalorder %s16, 1
        %s174 = scalar_select %p173, %s16, 1
        %s175 = scalar_lea.vmem %s2, %s174
      $region28: #{forward.4} parent=15 // pred_fallthru
        _
    $region16: #{forward.4} parent=5 // pred_fallthru
      _
    %p176 = scmp.le.s32.totalorder 1, %s9
    %p177 = scmp.lt.s32.totalorder %s9, 3
    %p178 = pnand %p176, %p177
    %p179 = pneg %p178
    // Predicated region
    $region29: #{forward.4} parent=5 // pred_check
      _
    $region30: #{forward.4} parent=5 // pred_check_branch
      %181 = sbr.rel (%p178) target = $region32
    $region31: #{forward.4} parent=5 // pred_region
      %s182 = ssub.s32 %s9, 1
      %s183 = smul.u32 3, %s19
      %p184 = scmp.lt.s32.totalorder %s18, 1
      %s185 = scalar_select %p184, %s18, 1
      %p186 = scmp.lt.s32.totalorder %s183, 2
      %s187 = scalar_select %p186, %s183, 2
      %s188 = smul.addr %s187, 4
      %s189 = smul.addr %s185, 12
      %s190 = sadd.s32 %s188, %s189
      %s191 = smul.addr %s190, 4
      %s192 = scalar_lea.vmem %s0, %s191
      %p193 = pneg %p49
      %p194 = pneg %p46
      %p195 = scmp.lt.s32.totalorder %s18, 1
      %s196 = scalar_select %p195, %s18, 1
      %s197 = smul.addr %s196, 64
      %s198 = smul.addr %s197, 4
      %s199 = scalar_lea.vmem %s1, %s198
      %p200 = pneg %p75
      %p201 = pneg %p72
      %p202 = scmp.lt.s32.totalorder %s18, 1
      %s203 = scalar_select %p202, %s18, 1
      %s204 = scalar_lea.vmem %s2, %s203
      %p205 = pneg %p101
      %p206 = pneg %p98
      %p207 = pneg %p129
      %p208 = pneg %p126
      %s209 = smul.u32 3, %s19
      %p210 = scmp.lt.s32.totalorder %s18, 1
      %s211 = scalar_select %p210, %s18, 1
      %p212 = scmp.lt.s32.totalorder %s209, 2
      %s213 = scalar_select %p212, %s209, 2
      %s214 = smul.addr %s211, 3
      %s215 = sadd.s32 %s213, %s214
      %s216 = smul.addr %s215, 8
      %s217 = scalar_lea.vmem %s3, %s216
      %s218 = smul.u32 3, %s19
      %p219 = scmp.lt.s32.totalorder %s18, 1
      %s220 = scalar_select %p219, %s18, 1
      %p221 = scmp.lt.s32.totalorder %s218, 2
      %s222 = scalar_select %p221, %s218, 2
      %s223 = smul.addr %s222, 4
      %s224 = smul.addr %s220, 12
      %s225 = sadd.s32 %s223, %s224
      %s226 = smul.addr %s225, 4
      %s227 = scalar_lea.vmem %s0, %s226
      %s228 = smul.u32 3, %s19
      %p229 = scmp.lt.s32.totalorder %s18, 1
      %s230 = scalar_select %p229, %s18, 1
      %s231 = smul.addr %s230, 64
      %s232 = smul.addr %s231, 4
      %s233 = scalar_lea.vmem %s1, %s232
      %p234 = scmp.lt.s32.totalorder %s18, 1
      %s235 = scalar_select %p234, %s18, 1
      %s236 = scalar_lea.vmem %s2, %s235
      %s237 = smul.u32 3, %s19
      %p238 = scmp.lt.s32.totalorder %s18, 1
      %s239 = scalar_select %p238, %s18, 1
      %p240 = scmp.lt.s32.totalorder %s237, 2
      %s241 = scalar_select %p240, %s237, 2
      %s242 = smul.addr %s239, 3
      %s243 = sadd.s32 %s241, %s242
      %s244 = smul.addr %s243, 8
      %s245 = scalar_lea.vmem %s3, %s244
      %s246 = smul.u32 3, %s19
      %v248 = vld [vmem:[%s227] sm:$0xff]
      %v249 = vld [vmem:[%s227 + $0x8] sm:$0xff]
      %v250 = vld [vmem:[%s227 + $0x10] sm:$0xff]
      %v251 = vld [vmem:[%s227 + $0x18] sm:$0xff]
      %v252 = vld [vmem:[%s227 + $0x20] sm:$0x11]
      %v253 = vld [vmem:[%s227 + $0x28] sm:$0x11]
      %v254 = vld [vmem:[%s233] sm:$0xf]
      %v255 = vld [vmem:[%s233 + $0x4] sm:$0xf]
      %v256 = vld [vmem:[%s233 + $0x8] sm:$0xf]
      %v257 = vld [vmem:[%s233 + $0xc] sm:$0xf]
      %v258 = vld [vmem:[%s233 + $0x10] sm:$0xf]
      %v259 = vld [vmem:[%s233 + $0x14] sm:$0xf]
      %v260 = vld [vmem:[%s233 + $0x18] sm:$0xf]
      %v261 = vld [vmem:[%s233 + $0x1c] sm:$0xf]
      %v262 = vld [vmem:[%s233 + $0x20] sm:$0xf]
      %v263 = vld [vmem:[%s233 + $0x24] sm:$0xf]
      %v264 = vld [vmem:[%s233 + $0x28] sm:$0xf]
      %v265 = vld [vmem:[%s233 + $0x2c] sm:$0xf]
      %v266 = vld [vmem:[%s233 + $0x30] sm:$0xf]
      %v267 = vld [vmem:[%s233 + $0x34] sm:$0xf]
      %v268 = vld [vmem:[%s233 + $0x38] sm:$0xf]
      %v269 = vld [vmem:[%s233 + $0x3c] sm:$0xf]
      %v270 = vld [vmem:[%s233 + $0x40] sm:$0xf]
      %v271 = vld [vmem:[%s233 + $0x44] sm:$0xf]
      %v272 = vld [vmem:[%s233 + $0x48] sm:$0xf]
      %v273 = vld [vmem:[%s233 + $0x4c] sm:$0xf]
      %v274 = vld [vmem:[%s233 + $0x50] sm:$0xf]
      %v275 = vld [vmem:[%s233 + $0x54] sm:$0xf]
      %v276 = vld [vmem:[%s233 + $0x58] sm:$0xf]
      %v277 = vld [vmem:[%s233 + $0x5c] sm:$0xf]
      %v278 = vld [vmem:[%s233 + $0x60] sm:$0xf]
      %v279 = vld [vmem:[%s233 + $0x64] sm:$0xf]
      %v280 = vld [vmem:[%s233 + $0x68] sm:$0xf]
      %v281 = vld [vmem:[%s233 + $0x6c] sm:$0xf]
      %v282 = vld [vmem:[%s233 + $0x70] sm:$0xf]
      %v283 = vld [vmem:[%s233 + $0x74] sm:$0xf]
      %v284 = vld [vmem:[%s233 + $0x78] sm:$0xf]
      %v285 = vld [vmem:[%s233 + $0x7c] sm:$0xf]
      %v286 = vld [vmem:[%s233 + $0x80] sm:$0xf]
      %v287 = vld [vmem:[%s233 + $0x84] sm:$0xf]
      %v288 = vld [vmem:[%s233 + $0x88] sm:$0xf]
      %v289 = vld [vmem:[%s233 + $0x8c] sm:$0xf]
      %v290 = vld [vmem:[%s233 + $0x90] sm:$0xf]
      %v291 = vld [vmem:[%s233 + $0x94] sm:$0xf]
      %v292 = vld [vmem:[%s233 + $0x98] sm:$0xf]
      %v293 = vld [vmem:[%s233 + $0x9c] sm:$0xf]
      %v294 = vld [vmem:[%s233 + $0xa0] sm:$0xf]
      %v295 = vld [vmem:[%s233 + $0xa4] sm:$0xf]
      %v296 = vld [vmem:[%s233 + $0xa8] sm:$0xf]
      %v297 = vld [vmem:[%s233 + $0xac] sm:$0xf]
      %v298 = vld [vmem:[%s233 + $0xb0] sm:$0xf]
      %v299 = vld [vmem:[%s233 + $0xb4] sm:$0xf]
      %v300 = vld [vmem:[%s233 + $0xb8] sm:$0xf]
      %v301 = vld [vmem:[%s233 + $0xbc] sm:$0xf]
      %v302 = vld [vmem:[%s233 + $0xc0] sm:$0xf]
      %v303 = vld [vmem:[%s233 + $0xc4] sm:$0xf]
      %v304 = vld [vmem:[%s233 + $0xc8] sm:$0xf]
      %v305 = vld [vmem:[%s233 + $0xcc] sm:$0xf]
      %v306 = vld [vmem:[%s233 + $0xd0] sm:$0xf]
      %v307 = vld [vmem:[%s233 + $0xd4] sm:$0xf]
      %v308 = vld [vmem:[%s233 + $0xd8] sm:$0xf]
      %v309 = vld [vmem:[%s233 + $0xdc] sm:$0xf]
      %v310 = vld [vmem:[%s233 + $0xe0] sm:$0xf]
      %v311 = vld [vmem:[%s233 + $0xe4] sm:$0xf]
      %v312 = vld [vmem:[%s233 + $0xe8] sm:$0xf]
      %v313 = vld [vmem:[%s233 + $0xec] sm:$0xf]
      %v314 = vld [vmem:[%s233 + $0xf0] sm:$0xf]
      %v315 = vld [vmem:[%s233 + $0xf4] sm:$0xf]
      %v316 = vld [vmem:[%s233 + $0xf8] sm:$0xf]
      %v317 = vld [vmem:[%s233 + $0xfc] sm:$0xf]
      %v318 = vld [vmem:[%s236] sm:$0x1]
      %v320 = vlaneseq
      %v321 = vshrl.u32 %v320, 7
      %v322 = vsub.s32 0, %v321
      %v323 = vrot.slane %v318, %v322
      %v331 = vunpack.c.l.b16 %v248
      %v332 = vunpack.c.h.b16 %v248
      %v333 = vunpack.c.l.b16 %v249
      %v334 = vunpack.c.h.b16 %v249
      %v335 = vunpack.c.l.b16 %v250
      %v336 = vunpack.c.h.b16 %v250
      %v337 = vunpack.c.l.b16 %v251
      %v338 = vunpack.c.h.b16 %v251
      %v339 = vunpack.c.l.b16 %v252
      %v340 = vunpack.c.h.b16 %v252
      %v341 = vunpack.c.l.b16 %v253
      %v342 = vunpack.c.h.b16 %v253
      %v343 = vpack.c.b16 %v335, %v331
      %v344 = vpack.c.b16 %v336, %v332
      %v345 = vpack.c.b16 %v337, %v333
      %v346 = vpack.c.b16 %v338, %v334
      %v347 = vpack.c.b16 %v339, %v339
      %v348 = vpack.c.b16 %v340, %v340
      %v349 = vpack.c.b16 %v341, %v341
      %v350 = vpack.c.b16 %v342, %v342
      %v423 = vunpack.c.l.b16 %v254
      %v424 = vunpack.c.l.b16 %v255
      %v425 = vunpack.c.l.b16 %v256
      %v426 = vunpack.c.l.b16 %v257
      %v427 = vunpack.c.l.b16 %v258
      %v428 = vunpack.c.l.b16 %v259
      %v429 = vunpack.c.l.b16 %v260
      %v430 = vunpack.c.l.b16 %v261
      %v431 = vunpack.c.l.b16 %v262
      %v432 = vunpack.c.l.b16 %v263
      %v433 = vunpack.c.l.b16 %v264
      %v434 = vunpack.c.l.b16 %v265
      %v435 = vunpack.c.l.b16 %v266
      %v436 = vunpack.c.l.b16 %v267
      %v437 = vunpack.c.l.b16 %v268
      %v438 = vunpack.c.l.b16 %v269
      %v439 = vunpack.c.l.b16 %v270
      %v440 = vunpack.c.l.b16 %v271
      %v441 = vunpack.c.l.b16 %v272
      %v442 = vunpack.c.l.b16 %v273
      %v443 = vunpack.c.l.b16 %v274
      %v444 = vunpack.c.l.b16 %v275
      %v445 = vunpack.c.l.b16 %v276
      %v446 = vunpack.c.l.b16 %v277
      %v447 = vunpack.c.l.b16 %v278
      %v448 = vunpack.c.l.b16 %v279
      %v449 = vunpack.c.l.b16 %v280
      %v450 = vunpack.c.l.b16 %v281
      %v451 = vunpack.c.l.b16 %v282
      %v452 = vunpack.c.l.b16 %v283
      %v453 = vunpack.c.l.b16 %v284
      %v454 = vunpack.c.l.b16 %v285
      %v455 = vunpack.c.l.b16 %v286
      %v456 = vunpack.c.l.b16 %v287
      %v457 = vunpack.c.l.b16 %v288
      %v458 = vunpack.c.l.b16 %v289
      %v459 = vunpack.c.l.b16 %v290
      %v460 = vunpack.c.l.b16 %v291
      %v461 = vunpack.c.l.b16 %v292
      %v462 = vunpack.c.l.b16 %v293
      %v463 = vunpack.c.l.b16 %v294
      %v464 = vunpack.c.l.b16 %v295
      %v465 = vunpack.c.l.b16 %v296
      %v466 = vunpack.c.l.b16 %v297
      %v467 = vunpack.c.l.b16 %v298
      %v468 = vunpack.c.l.b16 %v299
      %v469 = vunpack.c.l.b16 %v300
      %v470 = vunpack.c.l.b16 %v301
      %v471 = vunpack.c.l.b16 %v302
      %v472 = vunpack.c.l.b16 %v303
      %v473 = vunpack.c.l.b16 %v304
      %v474 = vunpack.c.l.b16 %v305
      %v475 = vunpack.c.l.b16 %v306
      %v476 = vunpack.c.l.b16 %v307
      %v477 = vunpack.c.l.b16 %v308
      %v478 = vunpack.c.l.b16 %v309
      %v479 = vunpack.c.l.b16 %v310
      %v480 = vunpack.c.l.b16 %v311
      %v481 = vunpack.c.l.b16 %v312
      %v482 = vunpack.c.l.b16 %v313
      %v483 = vunpack.c.l.b16 %v314
      %v484 = vunpack.c.l.b16 %v315
      %v485 = vunpack.c.l.b16 %v316
      %v486 = vunpack.c.l.b16 %v317
      %v487 = vpack.c.b16 %v424, %v423
      %v488 = vpack.c.b16 %v426, %v425
      %v489 = vpack.c.b16 %v428, %v427
      %v490 = vpack.c.b16 %v430, %v429
      %v491 = vpack.c.b16 %v432, %v431
      %v492 = vpack.c.b16 %v434, %v433
      %v493 = vpack.c.b16 %v436, %v435
      %v494 = vpack.c.b16 %v438, %v437
      %v495 = vpack.c.b16 %v440, %v439
      %v496 = vpack.c.b16 %v442, %v441
      %v497 = vpack.c.b16 %v444, %v443
      %v498 = vpack.c.b16 %v446, %v445
      %v499 = vpack.c.b16 %v448, %v447
      %v500 = vpack.c.b16 %v450, %v449
      %v501 = vpack.c.b16 %v452, %v451
      %v502 = vpack.c.b16 %v454, %v453
      %v503 = vpack.c.b16 %v456, %v455
      %v504 = vpack.c.b16 %v458, %v457
      %v505 = vpack.c.b16 %v460, %v459
      %v506 = vpack.c.b16 %v462, %v461
      %v507 = vpack.c.b16 %v464, %v463
      %v508 = vpack.c.b16 %v466, %v465
      %v509 = vpack.c.b16 %v468, %v467
      %v510 = vpack.c.b16 %v470, %v469
      %v511 = vpack.c.b16 %v472, %v471
      %v512 = vpack.c.b16 %v474, %v473
      %v513 = vpack.c.b16 %v476, %v475
      %v514 = vpack.c.b16 %v478, %v477
      %v515 = vpack.c.b16 %v480, %v479
      %v516 = vpack.c.b16 %v482, %v481
      %v517 = vpack.c.b16 %v484, %v483
      %v518 = vpack.c.b16 %v486, %v485
      %551 = vmatprep.subr.bf16.mxu0 0
      %552 = vmatpush1.bf16.msra.mxu0 %v494
      %553 = vmatprep.subr.bf16.mxu0 0
      %554 = vmatpush1.bf16.msra.mxu0 %v493
      %555 = vmatprep.subr.bf16.mxu0 0
      %556 = vmatpush1.bf16.msra.mxu0 %v492
      %557 = vmatprep.subr.bf16.mxu0 0
      %558 = vmatpush1.bf16.msra.mxu0 %v491
      %559 = vmatprep.subr.bf16.mxu0 0
      %560 = vmatpush1.bf16.msra.mxu0 %v490
      %561 = vmatprep.subr.bf16.mxu0 0
      %562 = vmatpush1.bf16.msra.mxu0 %v489
      %563 = vmatprep.subr.bf16.mxu0 0
      %564 = vmatpush1.bf16.msra.mxu0 %v488
      %565 = vmatprep.subr.bf16.mxu0 0
      %566 = vmatpush1.bf16.msra.mxu0 %v487
      %567 = vmatprep.subr.bf16.mxu0 0
      %568 = vmatpush2.bf16.msra.mxu0 %v502
      %569 = vmatprep.subr.bf16.mxu0 0
      %570 = vmatpush2.bf16.msra.mxu0 %v501
      %571 = vmatprep.subr.bf16.mxu0 0
      %572 = vmatpush2.bf16.msra.mxu0 %v500
      %573 = vmatprep.subr.bf16.mxu0 0
      %574 = vmatpush2.bf16.msra.mxu0 %v499
      %575 = vmatprep.subr.bf16.mxu0 0
      %576 = vmatpush2.bf16.msra.mxu0 %v498
      %577 = vmatprep.subr.bf16.mxu0 0
      %578 = vmatpush2.bf16.msra.mxu0 %v497
      %579 = vmatprep.subr.bf16.mxu0 0
      %580 = vmatpush2.bf16.msra.mxu0 %v496
      %581 = vmatprep.subr.bf16.mxu0 0
      %582 = vmatpush2.bf16.msra.mxu0 %v495
      %583 = vmatprep.mubr.bf16.mxu0 %v344
      %584 = vmatmul.mubr.bf16.gmra.mxu0 %v343
      %v585 = vpop.f32.mrf.mxu0
      %v586 = vadd.f32 %v323, %v585
      %v587 = vpop.f32.mrf.mxu0
      %v588 = vpop.f32.mrf.mxu0
      %v589 = vadd.f32 %v323, %v588
      %v590 = vpop.f32.mrf.mxu0
      %591 = vmatprep.mubr.bf16.mxu0 %v348
      %592 = vmatmul.mubr.bf16.gmra.mxu0 %v347
      %v593 = vpop.f32.mrf.mxu0
      %v594 = vadd.f32 %v323, %v593
      %v595 = vpop.f32.mrf.mxu0
      %v596 = vpop.f32.mrf.mxu0
      %v597 = vpop.f32.mrf.mxu0
      %598 = vdwg.mxu0
      %599 = vmatprep.subr.bf16.mxu0 0
      %600 = vmatpush1.bf16.msra.mxu0 %v510
      %601 = vmatprep.subr.bf16.mxu0 0
      %602 = vmatpush1.bf16.msra.mxu0 %v509
      %603 = vmatprep.subr.bf16.mxu0 0
      %604 = vmatpush1.bf16.msra.mxu0 %v508
      %605 = vmatprep.subr.bf16.mxu0 0
      %606 = vmatpush1.bf16.msra.mxu0 %v507
      %607 = vmatprep.subr.bf16.mxu0 0
      %608 = vmatpush1.bf16.msra.mxu0 %v506
      %609 = vmatprep.subr.bf16.mxu0 0
      %610 = vmatpush1.bf16.msra.mxu0 %v505
      %611 = vmatprep.subr.bf16.mxu0 0
      %612 = vmatpush1.bf16.msra.mxu0 %v504
      %613 = vmatprep.subr.bf16.mxu0 0
      %614 = vmatpush1.bf16.msra.mxu0 %v503
      %615 = vmatprep.subr.bf16.mxu0 0
      %616 = vmatpush2.bf16.msra.mxu0 %v518
      %617 = vmatprep.subr.bf16.mxu0 0
      %618 = vmatpush2.bf16.msra.mxu0 %v517
      %619 = vmatprep.subr.bf16.mxu0 0
      %620 = vmatpush2.bf16.msra.mxu0 %v516
      %621 = vmatprep.subr.bf16.mxu0 0
      %622 = vmatpush2.bf16.msra.mxu0 %v515
      %623 = vmatprep.subr.bf16.mxu0 0
      %624 = vmatpush2.bf16.msra.mxu0 %v514
      %625 = vmatprep.subr.bf16.mxu0 0
      %626 = vmatpush2.bf16.msra.mxu0 %v513
      %627 = vmatprep.subr.bf16.mxu0 0
      %628 = vmatpush2.bf16.msra.mxu0 %v512
      %629 = vmatprep.subr.bf16.mxu0 0
      %630 = vmatpush2.bf16.msra.mxu0 %v511
      %631 = vmatprep.mubr.bf16.mxu0 %v346
      %632 = vmatmul.mubr.bf16.gmra.mxu0 %v345
      %v633 = vpop.f32.mrf.mxu0
      %v634 = vadd.f32 %v586, %v633
      %v635 = vpop.f32.mrf.mxu0
      %v636 = vpop.f32.mrf.mxu0
      %v637 = vadd.f32 %v589, %v636
      %v638 = vpop.f32.mrf.mxu0
      %639 = vmatprep.mubr.bf16.mxu0 %v350
      %640 = vmatmul.mubr.bf16.gmra.mxu0 %v349
      %v641 = vpop.f32.mrf.mxu0
      %v642 = vadd.f32 %v594, %v641
      %v643 = vpop.f32.mrf.mxu0
      %v644 = vpop.f32.mrf.mxu0
      %v645 = vpop.f32.mrf.mxu0
      %646 = vdwg.mxu0
      %v647 = vmax.f32 %v634, 0.0
      %v648 = vmax.f32 %v637, 0.0
      %v649 = vmax.f32 %v642, 0.0
      %vm650 = vcmask 523264
      %651 = vst.msk [vmem:[%s245] sm:$0xff] %vm650, %v647
      %652 = vst.msk [vmem:[%s245 + $0x8] sm:$0xff] %vm650, %v648
      %vm653 = vcmask 517120
      %654 = vst.msk [vmem:[%s245 + $0x10] sm:$0x3] %vm653, %v649
      %s655 = smul.u32 3, %s19
      %p656 = scmp.lt.s32.totalorder %s18, 1
      %s657 = scalar_select %p656, %s18, 1
      %p658 = scmp.lt.s32.totalorder %s655, 2
      %s659 = scalar_select %p658, %s655, 2
      %s660 = smul.addr %s657, 3
      %s661 = sadd.s32 %s659, %s660
      %s662 = smul.addr %s661, 8
      %s663 = scalar_lea.vmem %s3, %s662
      // Predicated region
      $region33: #{forward.4} parent=31 // pred_check
        %p664 = pneg %p126
      $region34: #{forward.4} parent=31 // pred_check_branch
        %666 = sbr.rel (%p664) target = $region36
      $region35: #{forward.4} parent=31 // pred_region
        %s667 = smul.u32 3, %s19
      $region36: #{forward.4} parent=31 // pred_fallthru
        _
    $region32: #{forward.4} parent=5 // pred_fallthru
      _
    %p668 = scmp.le.s32.totalorder 2, %s9
    // Predicated region
    $region37: #{forward.4} parent=5 // pred_check
      %p669 = pneg %p668
    $region38: #{forward.4} parent=5 // pred_check_branch
      %671 = sbr.rel (%p669) target = $region40
    $region39: #{forward.4} parent=5 // pred_region
      %s672 = ssub.s32 %s9, 2
      // Predicated region
      $region41: #{forward.4} parent=39 // pred_check
        %p673 = pneg %p132
      $region42: #{forward.4} parent=39 // pred_check_branch
        %675 = sbr.rel (%p673) target = $region44
      $region43: #{forward.4} parent=39 // pred_region
        %s676 = smul.u32 3, %s21
        %p677 = scmp.lt.s32.totalorder %s20, 1
        %s678 = scalar_select %p677, %s20, 1
        %p679 = scmp.lt.s32.totalorder %s676, 2
        %s680 = scalar_select %p679, %s676, 2
        %s681 = smul.addr %s678, 3
        %s682 = sadd.s32 %s680, %s681
        %s683 = smul.addr %s682, 8
        %s684 = scalar_lea.vmem %s3, %s683
      $region44: #{forward.4} parent=39 // pred_fallthru
        _
    $region40: #{forward.4} parent=5 // pred_fallthru
      _
  $region6: #{forward.4} parent=0 // loop_footer
    %s13 = sadd.s32 1, %s9
  $region7: #{forward.4} parent=0 // loop_footer_branch
    %8 = sbr.rel target = $region3
  $region8: #{forward.4} parent=0 // loop_exit
    _

// kernel: forward.5
$region0: #{forward.5}
  #allocation0 [shape = 'u32[]', space=smem, size = 0x4, offset = 0x4, fixed_abs, tag = 'smem constant byte address 0x4 - core index']
  #allocation1 [shape = 'u32[144,128]{1,0:T(1,128)}', space=vmem, size = 0x12000, scoped, tag = 'internal scratch']
  %s0 = inlined_call_operand.vmem [shape: f32[2,2,576], index: 0, kind: input, shape index: {}]
  %s1 = inlined_call_operand.vmem [shape: f32[2,8], index: 1, kind: input, shape index: {}]
  %s2 = inlined_call_operand.vmem [shape: f32[2,576,64], index: 2, kind: input, shape index: {}]
  %s3 = inlined_call_operand.vmem [shape: f32[2,1,64], index: 3, kind: input, shape index: {}]
  %s4 = inlined_call_operand.vmem [shape: f32[2,64,20], index: 4, kind: input, shape index: {}]
  %s5 = inlined_call_operand.vmem [shape: f32[2,1,20], index: 5, kind: input, shape index: {}]
  %s6 = inlined_call_operand.vmem [shape: f32[2,8,20], index: 6, kind: input, shape index: {}]
  %s7 = inlined_call_operand.vmem [shape: f32[2,1,20], index: 7, kind: input, shape index: {}]
  %s8 = inlined_call_operand.vmem [shape: f32[2,20,80], index: 8, kind: input, shape index: {}]
  %s9 = inlined_call_operand.vmem [shape: f32[2,20,80], index: 9, kind: input, shape index: {}]
  %s10 = inlined_call_operand.vmem [shape: f32[2,1,80], index: 10, kind: input, shape index: {}]
  %s11 = inlined_call_operand.vmem [shape: f32[2,80,40], index: 11, kind: input, shape index: {}]
  %s12 = inlined_call_operand.vmem [shape: f32[2,1,40], index: 12, kind: input, shape index: {}]
  %s13 = inlined_call_operand.vmem [shape: f32[2,40,20], index: 13, kind: input, shape index: {}]
  %s14 = inlined_call_operand.vmem [shape: f32[2,1,20], index: 14, kind: input, shape index: {}]
  %s15 = inlined_call_operand.vmem [shape: f32[2,20,4], index: 15, kind: input, shape index: {}]
  %s16 = inlined_call_operand.vmem [shape: f32[2,1,4], index: 16, kind: input, shape index: {}]
  %s17 = inlined_call_operand.vmem [shape: f32[2,2,4], index: 17, kind: output, shape index: {}]
  %s18 = sld [smem:[#allocation0]]
  $region109: #{forward.5} parent=0
    _
  %s20 = ssub.s32 1, %s18
  %s21 = scalar_select 0, %s20, %s18
  loop: start=0, step=1, limit=4
  $region2: #{forward.5} parent=0 // loop_pre_header
    _
  $region3: #{forward.5} parent=0 // loop_header
    %s23 = sphi 0, %s27
    %p24 = scmp.ge.s32.totalorder %s23, 4
    %s33 = sphi 0, %s35
    %s36 = sphi 0, %s33
    %s37 = sphi 0, %s36
    %s53 = sphi 0, %s37
    %s57 = sphi 0, %s57
    %s59 = sphi 0, %s57
    %s60 = sphi 0, %s59
    %s74 = sphi 0, %s60
    %s80 = sphi 0, %s82
    %s83 = sphi 0, %s80
    %s84 = sphi 0, %s83
    %s100 = sphi 0, %s84
    %s106 = sphi 0, %s108
    %s109 = sphi 0, %s106
    %s110 = sphi 0, %s109
    %s126 = sphi 0, %s110
    %s132 = sphi 0, %s134
    %s135 = sphi 0, %s132
    %s136 = sphi 0, %s135
    %s152 = sphi 0, %s136
    %s158 = sphi 0, %s160
    %s161 = sphi 0, %s158
    %s162 = sphi 0, %s161
    %s178 = sphi 0, %s162
    %s184 = sphi 0, %s186
    %s187 = sphi 0, %s184
    %s188 = sphi 0, %s187
    %s204 = sphi 0, %s188
    %s210 = sphi 0, %s212
    %s213 = sphi 0, %s210
    %s214 = sphi 0, %s213
    %s230 = sphi 0, %s214
    %s236 = sphi 0, %s238
    %s239 = sphi 0, %s236
    %s240 = sphi 0, %s239
    %s256 = sphi 0, %s240
    %s262 = sphi 0, %s264
    %s265 = sphi 0, %s262
    %s266 = sphi 0, %s265
    %s282 = sphi 0, %s266
    %s288 = sphi 0, %s290
    %s291 = sphi 0, %s288
    %s292 = sphi 0, %s291
    %s308 = sphi 0, %s292
    %s314 = sphi 0, %s316
    %s317 = sphi 0, %s314
    %s318 = sphi 0, %s317
    %s334 = sphi 0, %s318
    %s340 = sphi 0, %s342
    %s343 = sphi 0, %s340
    %s344 = sphi 0, %s343
    %s360 = sphi 0, %s344
    %s366 = sphi 0, %s368
    %s369 = sphi 0, %s366
    %s370 = sphi 0, %s369
    %s386 = sphi 0, %s370
    %s392 = sphi 0, %s394
    %s395 = sphi 0, %s392
    %s396 = sphi 0, %s395
    %s412 = sphi 0, %s396
    %s418 = sphi 0, %s420
    %s421 = sphi 0, %s418
    %s422 = sphi 0, %s421
    %s438 = sphi 0, %s422
    %s444 = sphi 0, %s446
    %s447 = sphi 0, %s444
    %s448 = sphi 0, %s447
    %s464 = sphi 0, %s448
    %s470 = sphi 0, %s472
    %s473 = sphi 0, %s470
    %s474 = sphi 0, %s473
    %s490 = sphi 0, %s474
  $region4: #{forward.5} parent=0 // loop_header_branch
    %26 = sbr.rel (%p24) target = $region8
  $region5: #{forward.5} parent=0 // loop_body
    %s28 = ssub.s32 %s23, 1
    %s29 = ssub.s32 %s23, 2
    %s30 = sadd.s32 %s23, 1
    %s31 = ssub.s32 %s23, %s30
    %p32 = scmp.eq.s32.totalorder %s31, 0
    %s34 = sadd.s32 %s33, 1
    %s35 = scalar_select %p32, %s33, %s34
    %p38 = pneg %p32
    %p39 = scmp.eq.s32.totalorder %s23, 1
    %p40 = por %p38, %p39
    %p41 = scmp.ne.s32.totalorder %s33, %s36
    %p42 = scmp.eq.s32.totalorder %s23, 0
    %p43 = por %p41, %p42
    %p44 = scmp.ne.s32.totalorder %s33, %s36
    %p45 = scmp.eq.s32.totalorder %s28, 1
    %p46 = por %p44, %p45
    %p47 = scmp.ne.s32.totalorder %s36, %s37
    %p48 = scmp.eq.s32.totalorder %s28, 0
    %p49 = por %p47, %p48
    %p50 = scmp.ne.s32.totalorder %s36, %s37
    %p51 = scmp.eq.s32.totalorder %s29, 1
    %p52 = por %p50, %p51
    %p54 = scmp.ne.s32.totalorder %s37, %s53
    %p55 = scmp.eq.s32.totalorder %s29, 0
    %p56 = por %p54, %p55
    %s58 = sadd.s32 %s57, 1
    %p61 = scmp.eq.s32.totalorder %s23, 1
    %p62 = scmp.ne.s32.totalorder %s57, %s59
    %p63 = scmp.eq.s32.totalorder %s23, 0
    %p64 = por %p62, %p63
    %p65 = scmp.ne.s32.totalorder %s57, %s59
    %p66 = scmp.eq.s32.totalorder %s28, 1
    %p67 = por %p65, %p66
    %p68 = scmp.ne.s32.totalorder %s59, %s60
    %p69 = scmp.eq.s32.totalorder %s28, 0
    %p70 = por %p68, %p69
    %p71 = scmp.ne.s32.totalorder %s59, %s60
    %p72 = scmp.eq.s32.totalorder %s29, 1
    %p73 = por %p71, %p72
    %p75 = scmp.ne.s32.totalorder %s60, %s74
    %p76 = scmp.eq.s32.totalorder %s29, 0
    %p77 = por %p75, %p76
    %s78 = ssub.s32 %s23, %s30
    %p79 = scmp.eq.s32.totalorder %s78, 0
    %s81 = sadd.s32 %s80, 1
    %s82 = scalar_select %p79, %s80, %s81
    %p85 = pneg %p79
    %p86 = scmp.eq.s32.totalorder %s23, 1
    %p87 = por %p85, %p86
    %p88 = scmp.ne.s32.totalorder %s80, %s83
    %p89 = scmp.eq.s32.totalorder %s23, 0
    %p90 = por %p88, %p89
    %p91 = scmp.ne.s32.totalorder %s80, %s83
    %p92 = scmp.eq.s32.totalorder %s28, 1
    %p93 = por %p91, %p92
    %p94 = scmp.ne.s32.totalorder %s83, %s84
    %p95 = scmp.eq.s32.totalorder %s28, 0
    %p96 = por %p94, %p95
    %p97 = scmp.ne.s32.totalorder %s83, %s84
    %p98 = scmp.eq.s32.totalorder %s29, 1
    %p99 = por %p97, %p98
    %p101 = scmp.ne.s32.totalorder %s84, %s100
    %p102 = scmp.eq.s32.totalorder %s29, 0
    %p103 = por %p101, %p102
    %s104 = ssub.s32 %s23, %s30
    %p105 = scmp.eq.s32.totalorder %s104, 0
    %s107 = sadd.s32 %s106, 1
    %s108 = scalar_select %p105, %s106, %s107
    %p111 = pneg %p105
    %p112 = scmp.eq.s32.totalorder %s23, 1
    %p113 = por %p111, %p112
    %p114 = scmp.ne.s32.totalorder %s106, %s109
    %p115 = scmp.eq.s32.totalorder %s23, 0
    %p116 = por %p114, %p115
    %p117 = scmp.ne.s32.totalorder %s106, %s109
    %p118 = scmp.eq.s32.totalorder %s28, 1
    %p119 = por %p117, %p118
    %p120 = scmp.ne.s32.totalorder %s109, %s110
    %p121 = scmp.eq.s32.totalorder %s28, 0
    %p122 = por %p120, %p121
    %p123 = scmp.ne.s32.totalorder %s109, %s110
    %p124 = scmp.eq.s32.totalorder %s29, 1
    %p125 = por %p123, %p124
    %p127 = scmp.ne.s32.totalorder %s110, %s126
    %p128 = scmp.eq.s32.totalorder %s29, 0
    %p129 = por %p127, %p128
    %s130 = ssub.s32 %s23, %s30
    %p131 = scmp.eq.s32.totalorder %s130, 0
    %s133 = sadd.s32 %s132, 1
    %s134 = scalar_select %p131, %s132, %s133
    %p137 = pneg %p131
    %p138 = scmp.eq.s32.totalorder %s23, 1
    %p139 = por %p137, %p138
    %p140 = scmp.ne.s32.totalorder %s132, %s135
    %p141 = scmp.eq.s32.totalorder %s23, 0
    %p142 = por %p140, %p141
    %p143 = scmp.ne.s32.totalorder %s132, %s135
    %p144 = scmp.eq.s32.totalorder %s28, 1
    %p145 = por %p143, %p144
    %p146 = scmp.ne.s32.totalorder %s135, %s136
    %p147 = scmp.eq.s32.totalorder %s28, 0
    %p148 = por %p146, %p147
    %p149 = scmp.ne.s32.totalorder %s135, %s136
    %p150 = scmp.eq.s32.totalorder %s29, 1
    %p151 = por %p149, %p150
    %p153 = scmp.ne.s32.totalorder %s136, %s152
    %p154 = scmp.eq.s32.totalorder %s29, 0
    %p155 = por %p153, %p154
    %s156 = ssub.s32 %s23, %s30
    %p157 = scmp.eq.s32.totalorder %s156, 0
    %s159 = sadd.s32 %s158, 1
    %s160 = scalar_select %p157, %s158, %s159
    %p163 = pneg %p157
    %p164 = scmp.eq.s32.totalorder %s23, 1
    %p165 = por %p163, %p164
    %p166 = scmp.ne.s32.totalorder %s158, %s161
    %p167 = scmp.eq.s32.totalorder %s23, 0
    %p168 = por %p166, %p167
    %p169 = scmp.ne.s32.totalorder %s158, %s161
    %p170 = scmp.eq.s32.totalorder %s28, 1
    %p171 = por %p169, %p170
    %p172 = scmp.ne.s32.totalorder %s161, %s162
    %p173 = scmp.eq.s32.totalorder %s28, 0
    %p174 = por %p172, %p173
    %p175 = scmp.ne.s32.totalorder %s161, %s162
    %p176 = scmp.eq.s32.totalorder %s29, 1
    %p177 = por %p175, %p176
    %p179 = scmp.ne.s32.totalorder %s162, %s178
    %p180 = scmp.eq.s32.totalorder %s29, 0
    %p181 = por %p179, %p180
    %s182 = ssub.s32 %s23, %s30
    %p183 = scmp.eq.s32.totalorder %s182, 0
    %s185 = sadd.s32 %s184, 1
    %s186 = scalar_select %p183, %s184, %s185
    %p189 = pneg %p183
    %p190 = scmp.eq.s32.totalorder %s23, 1
    %p191 = por %p189, %p190
    %p192 = scmp.ne.s32.totalorder %s184, %s187
    %p193 = scmp.eq.s32.totalorder %s23, 0
    %p194 = por %p192, %p193
    %p195 = scmp.ne.s32.totalorder %s184, %s187
    %p196 = scmp.eq.s32.totalorder %s28, 1
    %p197 = por %p195, %p196
    %p198 = scmp.ne.s32.totalorder %s187, %s188
    %p199 = scmp.eq.s32.totalorder %s28, 0
    %p200 = por %p198, %p199
    %p201 = scmp.ne.s32.totalorder %s187, %s188
    %p202 = scmp.eq.s32.totalorder %s29, 1
    %p203 = por %p201, %p202
    %p205 = scmp.ne.s32.totalorder %s188, %s204
    %p206 = scmp.eq.s32.totalorder %s29, 0
    %p207 = por %p205, %p206
    %s208 = ssub.s32 %s23, %s30
    %p209 = scmp.eq.s32.totalorder %s208, 0
    %s211 = sadd.s32 %s210, 1
    %s212 = scalar_select %p209, %s210, %s211
    %p215 = pneg %p209
    %p216 = scmp.eq.s32.totalorder %s23, 1
    %p217 = por %p215, %p216
    %p218 = scmp.ne.s32.totalorder %s210, %s213
    %p219 = scmp.eq.s32.totalorder %s23, 0
    %p220 = por %p218, %p219
    %p221 = scmp.ne.s32.totalorder %s210, %s213
    %p222 = scmp.eq.s32.totalorder %s28, 1
    %p223 = por %p221, %p222
    %p224 = scmp.ne.s32.totalorder %s213, %s214
    %p225 = scmp.eq.s32.totalorder %s28, 0
    %p226 = por %p224, %p225
    %p227 = scmp.ne.s32.totalorder %s213, %s214
    %p228 = scmp.eq.s32.totalorder %s29, 1
    %p229 = por %p227, %p228
    %p231 = scmp.ne.s32.totalorder %s214, %s230
    %p232 = scmp.eq.s32.totalorder %s29, 0
    %p233 = por %p231, %p232
    %s234 = ssub.s32 %s23, %s30
    %p235 = scmp.eq.s32.totalorder %s234, 0
    %s237 = sadd.s32 %s236, 1
    %s238 = scalar_select %p235, %s236, %s237
    %p241 = pneg %p235
    %p242 = scmp.eq.s32.totalorder %s23, 1
    %p243 = por %p241, %p242
    %p244 = scmp.ne.s32.totalorder %s236, %s239
    %p245 = scmp.eq.s32.totalorder %s23, 0
    %p246 = por %p244, %p245
    %p247 = scmp.ne.s32.totalorder %s236, %s239
    %p248 = scmp.eq.s32.totalorder %s28, 1
    %p249 = por %p247, %p248
    %p250 = scmp.ne.s32.totalorder %s239, %s240
    %p251 = scmp.eq.s32.totalorder %s28, 0
    %p252 = por %p250, %p251
    %p253 = scmp.ne.s32.totalorder %s239, %s240
    %p254 = scmp.eq.s32.totalorder %s29, 1
    %p255 = por %p253, %p254
    %p257 = scmp.ne.s32.totalorder %s240, %s256
    %p258 = scmp.eq.s32.totalorder %s29, 0
    %p259 = por %p257, %p258
    %s260 = ssub.s32 %s23, %s30
    %p261 = scmp.eq.s32.totalorder %s260, 0
    %s263 = sadd.s32 %s262, 1
    %s264 = scalar_select %p261, %s262, %s263
    %p267 = pneg %p261
    %p268 = scmp.eq.s32.totalorder %s23, 1
    %p269 = por %p267, %p268
    %p270 = scmp.ne.s32.totalorder %s262, %s265
    %p271 = scmp.eq.s32.totalorder %s23, 0
    %p272 = por %p270, %p271
    %p273 = scmp.ne.s32.totalorder %s262, %s265
    %p274 = scmp.eq.s32.totalorder %s28, 1
    %p275 = por %p273, %p274
    %p276 = scmp.ne.s32.totalorder %s265, %s266
    %p277 = scmp.eq.s32.totalorder %s28, 0
    %p278 = por %p276, %p277
    %p279 = scmp.ne.s32.totalorder %s265, %s266
    %p280 = scmp.eq.s32.totalorder %s29, 1
    %p281 = por %p279, %p280
    %p283 = scmp.ne.s32.totalorder %s266, %s282
    %p284 = scmp.eq.s32.totalorder %s29, 0
    %p285 = por %p283, %p284
    %s286 = ssub.s32 %s23, %s30
    %p287 = scmp.eq.s32.totalorder %s286, 0
    %s289 = sadd.s32 %s288, 1
    %s290 = scalar_select %p287, %s288, %s289
    %p293 = pneg %p287
    %p294 = scmp.eq.s32.totalorder %s23, 1
    %p295 = por %p293, %p294
    %p296 = scmp.ne.s32.totalorder %s288, %s291
    %p297 = scmp.eq.s32.totalorder %s23, 0
    %p298 = por %p296, %p297
    %p299 = scmp.ne.s32.totalorder %s288, %s291
    %p300 = scmp.eq.s32.totalorder %s28, 1
    %p301 = por %p299, %p300
    %p302 = scmp.ne.s32.totalorder %s291, %s292
    %p303 = scmp.eq.s32.totalorder %s28, 0
    %p304 = por %p302, %p303
    %p305 = scmp.ne.s32.totalorder %s291, %s292
    %p306 = scmp.eq.s32.totalorder %s29, 1
    %p307 = por %p305, %p306
    %p309 = scmp.ne.s32.totalorder %s292, %s308
    %p310 = scmp.eq.s32.totalorder %s29, 0
    %p311 = por %p309, %p310
    %s312 = ssub.s32 %s23, %s30
    %p313 = scmp.eq.s32.totalorder %s312, 0
    %s315 = sadd.s32 %s314, 1
    %s316 = scalar_select %p313, %s314, %s315
    %p319 = pneg %p313
    %p320 = scmp.eq.s32.totalorder %s23, 1
    %p321 = por %p319, %p320
    %p322 = scmp.ne.s32.totalorder %s314, %s317
    %p323 = scmp.eq.s32.totalorder %s23, 0
    %p324 = por %p322, %p323
    %p325 = scmp.ne.s32.totalorder %s314, %s317
    %p326 = scmp.eq.s32.totalorder %s28, 1
    %p327 = por %p325, %p326
    %p328 = scmp.ne.s32.totalorder %s317, %s318
    %p329 = scmp.eq.s32.totalorder %s28, 0
    %p330 = por %p328, %p329
    %p331 = scmp.ne.s32.totalorder %s317, %s318
    %p332 = scmp.eq.s32.totalorder %s29, 1
    %p333 = por %p331, %p332
    %p335 = scmp.ne.s32.totalorder %s318, %s334
    %p336 = scmp.eq.s32.totalorder %s29, 0
    %p337 = por %p335, %p336
    %s338 = ssub.s32 %s23, %s30
    %p339 = scmp.eq.s32.totalorder %s338, 0
    %s341 = sadd.s32 %s340, 1
    %s342 = scalar_select %p339, %s340, %s341
    %p345 = pneg %p339
    %p346 = scmp.eq.s32.totalorder %s23, 1
    %p347 = por %p345, %p346
    %p348 = scmp.ne.s32.totalorder %s340, %s343
    %p349 = scmp.eq.s32.totalorder %s23, 0
    %p350 = por %p348, %p349
    %p351 = scmp.ne.s32.totalorder %s340, %s343
    %p352 = scmp.eq.s32.totalorder %s28, 1
    %p353 = por %p351, %p352
    %p354 = scmp.ne.s32.totalorder %s343, %s344
    %p355 = scmp.eq.s32.totalorder %s28, 0
    %p356 = por %p354, %p355
    %p357 = scmp.ne.s32.totalorder %s343, %s344
    %p358 = scmp.eq.s32.totalorder %s29, 1
    %p359 = por %p357, %p358
    %p361 = scmp.ne.s32.totalorder %s344, %s360
    %p362 = scmp.eq.s32.totalorder %s29, 0
    %p363 = por %p361, %p362
    %s364 = ssub.s32 %s23, %s30
    %p365 = scmp.eq.s32.totalorder %s364, 0
    %s367 = sadd.s32 %s366, 1
    %s368 = scalar_select %p365, %s366, %s367
    %p371 = pneg %p365
    %p372 = scmp.eq.s32.totalorder %s23, 1
    %p373 = por %p371, %p372
    %p374 = scmp.ne.s32.totalorder %s366, %s369
    %p375 = scmp.eq.s32.totalorder %s23, 0
    %p376 = por %p374, %p375
    %p377 = scmp.ne.s32.totalorder %s366, %s369
    %p378 = scmp.eq.s32.totalorder %s28, 1
    %p379 = por %p377, %p378
    %p380 = scmp.ne.s32.totalorder %s369, %s370
    %p381 = scmp.eq.s32.totalorder %s28, 0
    %p382 = por %p380, %p381
    %p383 = scmp.ne.s32.totalorder %s369, %s370
    %p384 = scmp.eq.s32.totalorder %s29, 1
    %p385 = por %p383, %p384
    %p387 = scmp.ne.s32.totalorder %s370, %s386
    %p388 = scmp.eq.s32.totalorder %s29, 0
    %p389 = por %p387, %p388
    %s390 = ssub.s32 %s23, %s30
    %p391 = scmp.eq.s32.totalorder %s390, 0
    %s393 = sadd.s32 %s392, 1
    %s394 = scalar_select %p391, %s392, %s393
    %p397 = pneg %p391
    %p398 = scmp.eq.s32.totalorder %s23, 1
    %p399 = por %p397, %p398
    %p400 = scmp.ne.s32.totalorder %s392, %s395
    %p401 = scmp.eq.s32.totalorder %s23, 0
    %p402 = por %p400, %p401
    %p403 = scmp.ne.s32.totalorder %s392, %s395
    %p404 = scmp.eq.s32.totalorder %s28, 1
    %p405 = por %p403, %p404
    %p406 = scmp.ne.s32.totalorder %s395, %s396
    %p407 = scmp.eq.s32.totalorder %s28, 0
    %p408 = por %p406, %p407
    %p409 = scmp.ne.s32.totalorder %s395, %s396
    %p410 = scmp.eq.s32.totalorder %s29, 1
    %p411 = por %p409, %p410
    %p413 = scmp.ne.s32.totalorder %s396, %s412
    %p414 = scmp.eq.s32.totalorder %s29, 0
    %p415 = por %p413, %p414
    %s416 = ssub.s32 %s23, %s30
    %p417 = scmp.eq.s32.totalorder %s416, 0
    %s419 = sadd.s32 %s418, 1
    %s420 = scalar_select %p417, %s418, %s419
    %p423 = pneg %p417
    %p424 = scmp.eq.s32.totalorder %s23, 1
    %p425 = por %p423, %p424
    %p426 = scmp.ne.s32.totalorder %s418, %s421
    %p427 = scmp.eq.s32.totalorder %s23, 0
    %p428 = por %p426, %p427
    %p429 = scmp.ne.s32.totalorder %s418, %s421
    %p430 = scmp.eq.s32.totalorder %s28, 1
    %p431 = por %p429, %p430
    %p432 = scmp.ne.s32.totalorder %s421, %s422
    %p433 = scmp.eq.s32.totalorder %s28, 0
    %p434 = por %p432, %p433
    %p435 = scmp.ne.s32.totalorder %s421, %s422
    %p436 = scmp.eq.s32.totalorder %s29, 1
    %p437 = por %p435, %p436
    %p439 = scmp.ne.s32.totalorder %s422, %s438
    %p440 = scmp.eq.s32.totalorder %s29, 0
    %p441 = por %p439, %p440
    %s442 = ssub.s32 %s23, %s30
    %p443 = scmp.eq.s32.totalorder %s442, 0
    %s445 = sadd.s32 %s444, 1
    %s446 = scalar_select %p443, %s444, %s445
    %p449 = pneg %p443
    %p450 = scmp.eq.s32.totalorder %s23, 1
    %p451 = por %p449, %p450
    %p452 = scmp.ne.s32.totalorder %s444, %s447
    %p453 = scmp.eq.s32.totalorder %s23, 0
    %p454 = por %p452, %p453
    %p455 = scmp.ne.s32.totalorder %s444, %s447
    %p456 = scmp.eq.s32.totalorder %s28, 1
    %p457 = por %p455, %p456
    %p458 = scmp.ne.s32.totalorder %s447, %s448
    %p459 = scmp.eq.s32.totalorder %s28, 0
    %p460 = por %p458, %p459
    %p461 = scmp.ne.s32.totalorder %s447, %s448
    %p462 = scmp.eq.s32.totalorder %s29, 1
    %p463 = por %p461, %p462
    %p465 = scmp.ne.s32.totalorder %s448, %s464
    %p466 = scmp.eq.s32.totalorder %s29, 0
    %p467 = por %p465, %p466
    %s468 = ssub.s32 %s23, %s30
    %p469 = scmp.eq.s32.totalorder %s468, 0
    %s471 = sadd.s32 %s470, 1
    %s472 = scalar_select %p469, %s470, %s471
    %p475 = pneg %p469
    %p476 = scmp.eq.s32.totalorder %s23, 1
    %p477 = por %p475, %p476
    %p478 = scmp.ne.s32.totalorder %s470, %s473
    %p479 = scmp.eq.s32.totalorder %s23, 0
    %p480 = por %p478, %p479
    %p481 = scmp.ne.s32.totalorder %s470, %s473
    %p482 = scmp.eq.s32.totalorder %s28, 1
    %p483 = por %p481, %p482
    %p484 = scmp.ne.s32.totalorder %s473, %s474
    %p485 = scmp.eq.s32.totalorder %s28, 0
    %p486 = por %p484, %p485
    %p487 = scmp.ne.s32.totalorder %s473, %s474
    %p488 = scmp.eq.s32.totalorder %s29, 1
    %p489 = por %p487, %p488
    %p491 = scmp.ne.s32.totalorder %s474, %s490
    %p492 = scmp.eq.s32.totalorder %s29, 0
    %p493 = por %p491, %p492
    %p494 = scmp.le.s32.totalorder 1, %s23
    %p495 = scmp.lt.s32.totalorder %s23, 3
    %p496 = pnand %p494, %p495
    %p497 = pneg %p496
    // Predicated region
    $region9: #{forward.5} parent=5 // pred_check
      _
    $region10: #{forward.5} parent=5 // pred_check_branch
      %499 = sbr.rel (%p496) target = $region12
    $region11: #{forward.5} parent=5 // pred_region
      %s500 = ssub.s32 %s23, 1
      // Predicated region
      $region13: #{forward.5} parent=11 // pred_check
        %p501 = pneg %p70
      $region14: #{forward.5} parent=11 // pred_check_branch
        %503 = sbr.rel (%p501) target = $region16
      $region15: #{forward.5} parent=11 // pred_region
        _
      $region16: #{forward.5} parent=11 // pred_fallthru
        _
    $region12: #{forward.5} parent=5 // pred_fallthru
      _
    %p504 = scmp.lt.s32.totalorder %s23, 2
    // Predicated region
    $region17: #{forward.5} parent=5 // pred_check
      %p505 = pneg %p504
    $region18: #{forward.5} parent=5 // pred_check_branch
      %507 = sbr.rel (%p505) target = $region20
    $region19: #{forward.5} parent=5 // pred_region
      // Predicated region
      $region21: #{forward.5} parent=19 // pred_check
        %p508 = pneg %p43
      $region22: #{forward.5} parent=19 // pred_check_branch
        %510 = sbr.rel (%p508) target = $region24
      $region23: #{forward.5} parent=19 // pred_region
        %p511 = scmp.lt.s32.totalorder %s23, 1
        %s512 = scalar_select %p511, %s23, 1
        %s513 = smul.addr %s512, 5
        %s514 = smul.addr %s513, 2
        %s515 = scalar_lea.vmem %s0, %s514
      $region24: #{forward.5} parent=19 // pred_fallthru
        _
      // Predicated region
      $region25: #{forward.5} parent=19 // pred_check
        %p516 = pneg %p90
      $region26: #{forward.5} parent=19 // pred_check_branch
        %518 = sbr.rel (%p516) target = $region28
      $region27: #{forward.5} parent=19 // pred_region
        %p519 = scmp.lt.s32.totalorder %s23, 1
        %s520 = scalar_select %p519, %s23, 1
        %s521 = smul.addr %s520, 72
        %s522 = smul.addr %s521, 8
        %s523 = scalar_lea.vmem %s2, %s522
      $region28: #{forward.5} parent=19 // pred_fallthru
        _
      // Predicated region
      $region29: #{forward.5} parent=19 // pred_check
        %p524 = pneg %p116
      $region30: #{forward.5} parent=19 // pred_check_branch
        %526 = sbr.rel (%p524) target = $region32
      $region31: #{forward.5} parent=19 // pred_region
        %p527 = scmp.lt.s32.totalorder %s23, 1
        %s528 = scalar_select %p527, %s23, 1
        %s529 = scalar_lea.vmem %s3, %s528
      $region32: #{forward.5} parent=19 // pred_fallthru
        _
      // Predicated region
      $region33: #{forward.5} parent=19 // pred_check
        %p530 = pneg %p142
      $region34: #{forward.5} parent=19 // pred_check_branch
        %532 = sbr.rel (%p530) target = $region36
      $region35: #{forward.5} parent=19 // pred_region
        %p533 = scmp.lt.s32.totalorder %s23, 1
        %s534 = scalar_select %p533, %s23, 1
        %s535 = smul.addr %s534, 8
        %s536 = smul.addr %s535, 8
        %s537 = scalar_lea.vmem %s4, %s536
      $region36: #{forward.5} parent=19 // pred_fallthru
        _
      // Predicated region
      $region37: #{forward.5} parent=19 // pred_check
        %p538 = pneg %p168
      $region38: #{forward.5} parent=19 // pred_check_branch
        %540 = sbr.rel (%p538) target = $region40
      $region39: #{forward.5} parent=19 // pred_region
        %p541 = scmp.lt.s32.totalorder %s23, 1
        %s542 = scalar_select %p541, %s23, 1
        %s543 = scalar_lea.vmem %s5, %s542
      $region40: #{forward.5} parent=19 // pred_fallthru
        _
      // Predicated region
      $region41: #{forward.5} parent=19 // pred_check
        %p544 = pneg %p194
      $region42: #{forward.5} parent=19 // pred_check_branch
        %546 = sbr.rel (%p544) target = $region44
      $region43: #{forward.5} parent=19 // pred_region
        %p547 = scmp.lt.s32.totalorder %s23, 1
        %s548 = scalar_select %p547, %s23, 1
        %s549 = smul.addr %s548, 8
        %s550 = scalar_lea.vmem %s6, %s549
      $region44: #{forward.5} parent=19 // pred_fallthru
        _
      // Predicated region
      $region45: #{forward.5} parent=19 // pred_check
        %p551 = pneg %p220
      $region46: #{forward.5} parent=19 // pred_check_branch
        %553 = sbr.rel (%p551) target = $region48
      $region47: #{forward.5} parent=19 // pred_region
        %p554 = scmp.lt.s32.totalorder %s23, 1
        %s555 = scalar_select %p554, %s23, 1
        %s556 = scalar_lea.vmem %s7, %s555
      $region48: #{forward.5} parent=19 // pred_fallthru
        _
      // Predicated region
      $region49: #{forward.5} parent=19 // pred_check
        %p557 = pneg %p246
      $region50: #{forward.5} parent=19 // pred_check_branch
        %559 = sbr.rel (%p557) target = $region52
      $region51: #{forward.5} parent=19 // pred_region
        %p560 = scmp.lt.s32.totalorder %s23, 1
        %s561 = scalar_select %p560, %s23, 1
        %s562 = smul.addr %s561, 3
        %s563 = smul.addr %s562, 8
        %s564 = scalar_lea.vmem %s8, %s563
      $region52: #{forward.5} parent=19 // pred_fallthru
        _
      // Predicated region
      $region53: #{forward.5} parent=19 // pred_check
        %p565 = pneg %p272
      $region54: #{forward.5} parent=19 // pred_check_branch
        %567 = sbr.rel (%p565) target = $region56
      $region55: #{forward.5} parent=19 // pred_region
        %p568 = scmp.lt.s32.totalorder %s23, 1
        %s569 = scalar_select %p568, %s23, 1
        %s570 = smul.addr %s569, 3
        %s571 = smul.addr %s570, 8
        %s572 = scalar_lea.vmem %s9, %s571
      $region56: #{forward.5} parent=19 // pred_fallthru
        _
      // Predicated region
      $region57: #{forward.5} parent=19 // pred_check
        %p573 = pneg %p298
      $region58: #{forward.5} parent=19 // pred_check_branch
        %575 = sbr.rel (%p573) target = $region60
      $region59: #{forward.5} parent=19 // pred_region
        %p576 = scmp.lt.s32.totalorder %s23, 1
        %s577 = scalar_select %p576, %s23, 1
        %s578 = scalar_lea.vmem %s10, %s577
      $region60: #{forward.5} parent=19 // pred_fallthru
        _
      // Predicated region
      $region61: #{forward.5} parent=19 // pred_check
        %p579 = pneg %p324
      $region62: #{forward.5} parent=19 // pred_check_branch
        %581 = sbr.rel (%p579) target = $region64
      $region63: #{forward.5} parent=19 // pred_region
        %p582 = scmp.lt.s32.totalorder %s23, 1
        %s583 = scalar_select %p582, %s23, 1
        %s584 = smul.addr %s583, 10
        %s585 = smul.addr %s584, 8
        %s586 = scalar_lea.vmem %s11, %s585
      $region64: #{forward.5} parent=19 // pred_fallthru
        _
      // Predicated region
      $region65: #{forward.5} parent=19 // pred_check
        %p587 = pneg %p350
      $region66: #{forward.5} parent=19 // pred_check_branch
        %589 = sbr.rel (%p587) target = $region68
      $region67: #{forward.5} parent=19 // pred_region
        %p590 = scmp.lt.s32.totalorder %s23, 1
        %s591 = scalar_select %p590, %s23, 1
        %s592 = scalar_lea.vmem %s12, %s591
      $region68: #{forward.5} parent=19 // pred_fallthru
        _
      // Predicated region
      $region69: #{forward.5} parent=19 // pred_check
        %p593 = pneg %p376
      $region70: #{forward.5} parent=19 // pred_check_branch
        %595 = sbr.rel (%p593) target = $region72
      $region71: #{forward.5} parent=19 // pred_region
        %p596 = scmp.lt.s32.totalorder %s23, 1
        %s597 = scalar_select %p596, %s23, 1
        %s598 = smul.addr %s597, 5
        %s599 = smul.addr %s598, 8
        %s600 = scalar_lea.vmem %s13, %s599
      $region72: #{forward.5} parent=19 // pred_fallthru
        _
      // Predicated region
      $region73: #{forward.5} parent=19 // pred_check
        %p601 = pneg %p402
      $region74: #{forward.5} parent=19 // pred_check_branch
        %603 = sbr.rel (%p601) target = $region76
      $region75: #{forward.5} parent=19 // pred_region
        %p604 = scmp.lt.s32.totalorder %s23, 1
        %s605 = scalar_select %p604, %s23, 1
        %s606 = scalar_lea.vmem %s14, %s605
      $region76: #{forward.5} parent=19 // pred_fallthru
        _
      // Predicated region
      $region77: #{forward.5} parent=19 // pred_check
        %p607 = pneg %p428
      $region78: #{forward.5} parent=19 // pred_check_branch
        %609 = sbr.rel (%p607) target = $region80
      $region79: #{forward.5} parent=19 // pred_region
        %p610 = scmp.lt.s32.totalorder %s23, 1
        %s611 = scalar_select %p610, %s23, 1
        %s612 = smul.addr %s611, 3
        %s613 = smul.addr %s612, 8
        %s614 = scalar_lea.vmem %s15, %s613
      $region80: #{forward.5} parent=19 // pred_fallthru
        _
      // Predicated region
      $region81: #{forward.5} parent=19 // pred_check
        %p615 = pneg %p454
      $region82: #{forward.5} parent=19 // pred_check_branch
        %617 = sbr.rel (%p615) target = $region84
      $region83: #{forward.5} parent=19 // pred_region
        %p618 = scmp.lt.s32.totalorder %s23, 1
        %s619 = scalar_select %p618, %s23, 1
        %s620 = scalar_lea.vmem %s16, %s619
      $region84: #{forward.5} parent=19 // pred_fallthru
        _
    $region20: #{forward.5} parent=5 // pred_fallthru
      _
    %p621 = scmp.le.s32.totalorder 1, %s23
    %p622 = scmp.lt.s32.totalorder %s23, 3
    %p623 = pnand %p621, %p622
    %p624 = pneg %p623
    // Predicated region
    $region85: #{forward.5} parent=5 // pred_check
      _
    $region86: #{forward.5} parent=5 // pred_check_branch
      %626 = sbr.rel (%p623) target = $region88
    $region87: #{forward.5} parent=5 // pred_region
      %s627 = ssub.s32 %s23, 1
      %p628 = scmp.lt.s32.totalorder %s28, 1
      %s629 = scalar_select %p628, %s28, 1
      %s630 = smul.addr %s629, 5
      %s631 = smul.addr %s630, 2
      %s632 = scalar_lea.vmem %s0, %s631
      %p633 = pneg %p49
      %p634 = pneg %p46
      %p635 = pneg %p70
      %p636 = pneg %p67
      %p637 = scmp.lt.s32.totalorder %s28, 1
      %s638 = scalar_select %p637, %s28, 1
      %s639 = smul.addr %s638, 72
      %s640 = smul.addr %s639, 8
      %s641 = scalar_lea.vmem %s2, %s640
      %p642 = pneg %p96
      %p643 = pneg %p93
      %p644 = scmp.lt.s32.totalorder %s28, 1
      %s645 = scalar_select %p644, %s28, 1
      %s646 = scalar_lea.vmem %s3, %s645
      %p647 = pneg %p122
      %p648 = pneg %p119
      %p649 = scmp.lt.s32.totalorder %s28, 1
      %s650 = scalar_select %p649, %s28, 1
      %s651 = smul.addr %s650, 8
      %s652 = smul.addr %s651, 8
      %s653 = scalar_lea.vmem %s4, %s652
      %p654 = pneg %p148
      %p655 = pneg %p145
      %p656 = scmp.lt.s32.totalorder %s28, 1
      %s657 = scalar_select %p656, %s28, 1
      %s658 = scalar_lea.vmem %s5, %s657
      %p659 = pneg %p174
      %p660 = pneg %p171
      %p661 = scmp.lt.s32.totalorder %s28, 1
      %s662 = scalar_select %p661, %s28, 1
      %s663 = smul.addr %s662, 8
      %s664 = scalar_lea.vmem %s6, %s663
      %p665 = pneg %p200
      %p666 = pneg %p197
      %p667 = scmp.lt.s32.totalorder %s28, 1
      %s668 = scalar_select %p667, %s28, 1
      %s669 = scalar_lea.vmem %s7, %s668
      %p670 = pneg %p226
      %p671 = pneg %p223
      %p672 = scmp.lt.s32.totalorder %s28, 1
      %s673 = scalar_select %p672, %s28, 1
      %s674 = smul.addr %s673, 3
      %s675 = smul.addr %s674, 8
      %s676 = scalar_lea.vmem %s8, %s675
      %p677 = pneg %p252
      %p678 = pneg %p249
      %p679 = scmp.lt.s32.totalorder %s28, 1
      %s680 = scalar_select %p679, %s28, 1
      %s681 = smul.addr %s680, 3
      %s682 = smul.addr %s681, 8
      %s683 = scalar_lea.vmem %s9, %s682
      %p684 = pneg %p278
      %p685 = pneg %p275
      %p686 = scmp.lt.s32.totalorder %s28, 1
      %s687 = scalar_select %p686, %s28, 1
      %s688 = scalar_lea.vmem %s10, %s687
      %p689 = pneg %p304
      %p690 = pneg %p301
      %p691 = scmp.lt.s32.totalorder %s28, 1
      %s692 = scalar_select %p691, %s28, 1
      %s693 = smul.addr %s692, 10
      %s694 = smul.addr %s693, 8
      %s695 = scalar_lea.vmem %s11, %s694
      %p696 = pneg %p330
      %p697 = pneg %p327
      %p698 = scmp.lt.s32.totalorder %s28, 1
      %s699 = scalar_select %p698, %s28, 1
      %s700 = scalar_lea.vmem %s12, %s699
      %p701 = pneg %p356
      %p702 = pneg %p353
      %p703 = scmp.lt.s32.totalorder %s28, 1
      %s704 = scalar_select %p703, %s28, 1
      %s705 = smul.addr %s704, 5
      %s706 = smul.addr %s705, 8
      %s707 = scalar_lea.vmem %s13, %s706
      %p708 = pneg %p382
      %p709 = pneg %p379
      %p710 = scmp.lt.s32.totalorder %s28, 1
      %s711 = scalar_select %p710, %s28, 1
      %s712 = scalar_lea.vmem %s14, %s711
      %p713 = pneg %p408
      %p714 = pneg %p405
      %p715 = scmp.lt.s32.totalorder %s28, 1
      %s716 = scalar_select %p715, %s28, 1
      %s717 = smul.addr %s716, 3
      %s718 = smul.addr %s717, 8
      %s719 = scalar_lea.vmem %s15, %s718
      %p720 = pneg %p434
      %p721 = pneg %p431
      %p722 = scmp.lt.s32.totalorder %s28, 1
      %s723 = scalar_select %p722, %s28, 1
      %s724 = scalar_lea.vmem %s16, %s723
      %p725 = pneg %p460
      %p726 = pneg %p457
      %p727 = pneg %p486
      %p728 = pneg %p483
      %p729 = scmp.lt.s32.totalorder %s28, 1
      %s730 = scalar_select %p729, %s28, 1
      %s731 = smul.addr %s730, 2
      %s732 = scalar_lea.vmem %s17, %s731
      %p733 = scmp.lt.s32.totalorder %s28, 1
      %s734 = scalar_select %p733, %s28, 1
      %s735 = smul.addr %s734, 5
      %s736 = smul.addr %s735, 2
      %s737 = scalar_lea.vmem %s0, %s736
      %p738 = scmp.lt.s32.totalorder %s28, 1
      %s739 = scalar_select %p738, %s28, 1
      %s740 = smul.addr %s739, 72
      %s741 = smul.addr %s740, 8
      %s742 = scalar_lea.vmem %s2, %s741
      %p743 = scmp.lt.s32.totalorder %s28, 1
      %s744 = scalar_select %p743, %s28, 1
      %s745 = scalar_lea.vmem %s3, %s744
      %p746 = scmp.lt.s32.totalorder %s28, 1
      %s747 = scalar_select %p746, %s28, 1
      %s748 = smul.addr %s747, 8
      %s749 = smul.addr %s748, 8
      %s750 = scalar_lea.vmem %s4, %s749
      %p751 = scmp.lt.s32.totalorder %s28, 1
      %s752 = scalar_select %p751, %s28, 1
      %s753 = scalar_lea.vmem %s5, %s752
      %p754 = scmp.lt.s32.totalorder %s28, 1
      %s755 = scalar_select %p754, %s28, 1
      %s756 = smul.addr %s755, 8
      %s757 = scalar_lea.vmem %s6, %s756
      %p758 = scmp.lt.s32.totalorder %s28, 1
      %s759 = scalar_select %p758, %s28, 1
      %s760 = scalar_lea.vmem %s7, %s759
      %p761 = scmp.lt.s32.totalorder %s28, 1
      %s762 = scalar_select %p761, %s28, 1
      %s763 = smul.addr %s762, 3
      %s764 = smul.addr %s763, 8
      %s765 = scalar_lea.vmem %s8, %s764
      %p766 = scmp.lt.s32.totalorder %s28, 1
      %s767 = scalar_select %p766, %s28, 1
      %s768 = smul.addr %s767, 3
      %s769 = smul.addr %s768, 8
      %s770 = scalar_lea.vmem %s9, %s769
      %p771 = scmp.lt.s32.totalorder %s28, 1
      %s772 = scalar_select %p771, %s28, 1
      %s773 = scalar_lea.vmem %s10, %s772
      %p774 = scmp.lt.s32.totalorder %s28, 1
      %s775 = scalar_select %p774, %s28, 1
      %s776 = smul.addr %s775, 10
      %s777 = smul.addr %s776, 8
      %s778 = scalar_lea.vmem %s11, %s777
      %p779 = scmp.lt.s32.totalorder %s28, 1
      %s780 = scalar_select %p779, %s28, 1
      %s781 = scalar_lea.vmem %s12, %s780
      %p782 = scmp.lt.s32.totalorder %s28, 1
      %s783 = scalar_select %p782, %s28, 1
      %s784 = smul.addr %s783, 5
      %s785 = smul.addr %s784, 8
      %s786 = scalar_lea.vmem %s13, %s785
      %p787 = scmp.lt.s32.totalorder %s28, 1
      %s788 = scalar_select %p787, %s28, 1
      %s789 = scalar_lea.vmem %s14, %s788
      %p790 = scmp.lt.s32.totalorder %s28, 1
      %s791 = scalar_select %p790, %s28, 1
      %s792 = smul.addr %s791, 3
      %s793 = smul.addr %s792, 8
      %s794 = scalar_lea.vmem %s15, %s793
      %p795 = scmp.lt.s32.totalorder %s28, 1
      %s796 = scalar_select %p795, %s28, 1
      %s797 = scalar_lea.vmem %s16, %s796
      %p798 = scmp.lt.s32.totalorder %s28, 1
      %s799 = scalar_select %p798, %s28, 1
      %s800 = smul.addr %s799, 2
      %s801 = scalar_lea.vmem %s17, %s800
      %v802 = vld [vmem:[%s737] sm:$0xff]
      %v803 = vld [vmem:[%s737 + $0x8] sm:$0x3]
      %v804 = vld [vmem:[%s742] sm:$0xff]
      %v805 = vld [vmem:[%s742 + $0x8] sm:$0xff]
      %v806 = vld [vmem:[%s742 + $0x10] sm:$0xff]
      %v807 = vld [vmem:[%s742 + $0x18] sm:$0xff]
      %v808 = vld [vmem:[%s742 + $0x20] sm:$0xff]
      %v809 = vld [vmem:[%s742 + $0x28] sm:$0xff]
      %v810 = vld [vmem:[%s742 + $0x30] sm:$0xff]
      %v811 = vld [vmem:[%s742 + $0x38] sm:$0xff]
      %v812 = vld [vmem:[%s742 + $0x40] sm:$0xff]
      %v813 = vld [vmem:[%s742 + $0x48] sm:$0xff]
      %v814 = vld [vmem:[%s742 + $0x50] sm:$0xff]
      %v815 = vld [vmem:[%s742 + $0x58] sm:$0xff]
      %v816 = vld [vmem:[%s742 + $0x60] sm:$0xff]
      %v817 = vld [vmem:[%s742 + $0x68] sm:$0xff]
      %v818 = vld [vmem:[%s742 + $0x70] sm:$0xff]
      %v819 = vld [vmem:[%s742 + $0x78] sm:$0xff]
      %v820 = vld [vmem:[%s742 + $0x80] sm:$0xff]
      %v821 = vld [vmem:[%s742 + $0x88] sm:$0xff]
      %v822 = vld [vmem:[%s742 + $0x90] sm:$0xff]
      %v823 = vld [vmem:[%s742 + $0x98] sm:$0xff]
      %v824 = vld [vmem:[%s742 + $0xa0] sm:$0xff]
      %v825 = vld [vmem:[%s742 + $0xa8] sm:$0xff]
      %v826 = vld [vmem:[%s742 + $0xb0] sm:$0xff]
      %v827 = vld [vmem:[%s742 + $0xb8] sm:$0xff]
      %v828 = vld [vmem:[%s742 + $0xc0] sm:$0xff]
      %v829 = vld [vmem:[%s742 + $0xc8] sm:$0xff]
      %v830 = vld [vmem:[%s742 + $0xd0] sm:$0xff]
      %v831 = vld [vmem:[%s742 + $0xd8] sm:$0xff]
      %v832 = vld [vmem:[%s742 + $0xe0] sm:$0xff]
      %v833 = vld [vmem:[%s742 + $0xe8] sm:$0xff]
      %v834 = vld [vmem:[%s742 + $0xf0] sm:$0xff]
      %v835 = vld [vmem:[%s742 + $0xf8] sm:$0xff]
      %v836 = vld [vmem:[%s742 + $0x100] sm:$0xff]
      %v837 = vld [vmem:[%s742 + $0x108] sm:$0xff]
      %v838 = vld [vmem:[%s742 + $0x110] sm:$0xff]
      %v839 = vld [vmem:[%s742 + $0x118] sm:$0xff]
      %v840 = vld [vmem:[%s742 + $0x120] sm:$0xff]
      %v841 = vld [vmem:[%s742 + $0x128] sm:$0xff]
      %v842 = vld [vmem:[%s742 + $0x130] sm:$0xff]
      %v843 = vld [vmem:[%s742 + $0x138] sm:$0xff]
      %v844 = vld [vmem:[%s742 + $0x140] sm:$0xff]
      %v845 = vld [vmem:[%s742 + $0x148] sm:$0xff]
      %v846 = vld [vmem:[%s742 + $0x150] sm:$0xff]
      %v847 = vld [vmem:[%s742 + $0x158] sm:$0xff]
      %v848 = vld [vmem:[%s742 + $0x160] sm:$0xff]
      %v849 = vld [vmem:[%s742 + $0x168] sm:$0xff]
      %v850 = vld [vmem:[%s742 + $0x170] sm:$0xff]
      %v851 = vld [vmem:[%s742 + $0x178] sm:$0xff]
      %v852 = vld [vmem:[%s742 + $0x180] sm:$0xff]
      %v853 = vld [vmem:[%s742 + $0x188] sm:$0xff]
      %v854 = vld [vmem:[%s742 + $0x190] sm:$0xff]
      %v855 = vld [vmem:[%s742 + $0x198] sm:$0xff]
      %v856 = vld [vmem:[%s742 + $0x1a0] sm:$0xff]
      %v857 = vld [vmem:[%s742 + $0x1a8] sm:$0xff]
      %v858 = vld [vmem:[%s742 + $0x1b0] sm:$0xff]
      %v859 = vld [vmem:[%s742 + $0x1b8] sm:$0xff]
      %v860 = vld [vmem:[%s742 + $0x1c0] sm:$0xff]
      %v861 = vld [vmem:[%s742 + $0x1c8] sm:$0xff]
      %v862 = vld [vmem:[%s742 + $0x1d0] sm:$0xff]
      %v863 = vld [vmem:[%s742 + $0x1d8] sm:$0xff]
      %v864 = vld [vmem:[%s742 + $0x1e0] sm:$0xff]
      %v865 = vld [vmem:[%s742 + $0x1e8] sm:$0xff]
      %v866 = vld [vmem:[%s742 + $0x1f0] sm:$0xff]
      %v867 = vld [vmem:[%s742 + $0x1f8] sm:$0xff]
      %v868 = vld [vmem:[%s742 + $0x200] sm:$0xff]
      %v869 = vld [vmem:[%s742 + $0x208] sm:$0xff]
      %v870 = vld [vmem:[%s742 + $0x210] sm:$0xff]
      %v871 = vld [vmem:[%s742 + $0x218] sm:$0xff]
      %v872 = vld [vmem:[%s742 + $0x220] sm:$0xff]
      %v873 = vld [vmem:[%s742 + $0x228] sm:$0xff]
      %v874 = vld [vmem:[%s742 + $0x230] sm:$0xff]
      %v875 = vld [vmem:[%s742 + $0x238] sm:$0xff]
      %v876 = vld [vmem:[%s745] sm:$0x1]
      %v878 = vlaneseq
      %v879 = vshrl.u32 %v878, 7
      %v880 = vsub.s32 0, %v879
      %v881 = vrot.slane %v876, %v880
      %v885 = vcombine.high %v802, %v802
      %v887 = vunpack.c.l.s4 1983009808
      %v888 = vunpack.c.0.s8 %v887
      %v889 = vlaneseq
      %v890 = vshrl.u32 %v889, 7
      %v891 = vsub.s32 %v888, %v890
      %v892 = vrot.slane %v802, %v891
      %v894 = vunpack.c.l.s4 1983009808
      %v895 = vunpack.c.0.s8 %v894
      %v896 = vlaneseq
      %v897 = vshrl.u32 %v896, 7
      %v898 = vsub.s32 %v895, %v897
      %v899 = vrot.slane %v885, %v898
      %v900 = vcombine.high %v892, %v892
      %v901 = vcombine.high %v899, %v899
      %v903 = vunpack.c.l.s4 1983009808
      %v904 = vunpack.c.0.s8 %v903
      %v905 = vlaneseq
      %v906 = vshrl.u32 %v905, 7
      %v907 = vsub.s32 %v904, %v906
      %v908 = vrot.slane %v803, %v907
      %vm913 = vcmask 523264
      %v914 = vsel %vm913, %v908, 0
      %916 = vmatprep.subr.mxu0 0.0
      %917 = vmatpush1.msra.mxu0 %v819
      %918 = vmatprep.subr.mxu0 0.0
      %919 = vmatpush1.msra.mxu0 %v818
      %920 = vmatprep.subr.mxu0 0.0
      %921 = vmatpush1.msra.mxu0 %v817
      %922 = vmatprep.subr.mxu0 0.0
      %923 = vmatpush1.msra.mxu0 %v816
      %924 = vmatprep.subr.mxu0 0.0
      %925 = vmatpush1.msra.mxu0 %v815
      %926 = vmatprep.subr.mxu0 0.0
      %927 = vmatpush1.msra.mxu0 %v814
      %928 = vmatprep.subr.mxu0 0.0
      %929 = vmatpush1.msra.mxu0 %v813
      %930 = vmatprep.subr.mxu0 0.0
      %931 = vmatpush1.msra.mxu0 %v812
      %932 = vmatprep.subr.mxu0 0.0
      %933 = vmatpush1.msra.mxu0 %v811
      %934 = vmatprep.subr.mxu0 0.0
      %935 = vmatpush1.msra.mxu0 %v810
      %936 = vmatprep.subr.mxu0 0.0
      %937 = vmatpush1.msra.mxu0 %v809
      %938 = vmatprep.subr.mxu0 0.0
      %939 = vmatpush1.msra.mxu0 %v808
      %940 = vmatprep.subr.mxu0 0.0
      %941 = vmatpush1.msra.mxu0 %v807
      %942 = vmatprep.subr.mxu0 0.0
      %943 = vmatpush1.msra.mxu0 %v806
      %944 = vmatprep.subr.mxu0 0.0
      %945 = vmatpush1.msra.mxu0 %v805
      %946 = vmatprep.subr.mxu0 0.0
      %947 = vmatpush1.msra.mxu0 %v804
      %948 = vmatprep.subr.mxu0 0.0
      %949 = vmatpush2.msra.mxu0 %v835
      %950 = vmatprep.subr.mxu0 0.0
      %951 = vmatpush2.msra.mxu0 %v834
      %952 = vmatprep.subr.mxu0 0.0
      %953 = vmatpush2.msra.mxu0 %v833
      %954 = vmatprep.subr.mxu0 0.0
      %955 = vmatpush2.msra.mxu0 %v832
      %956 = vmatprep.subr.mxu0 0.0
      %957 = vmatpush2.msra.mxu0 %v831
      %958 = vmatprep.subr.mxu0 0.0
      %959 = vmatpush2.msra.mxu0 %v830
      %960 = vmatprep.subr.mxu0 0.0
      %961 = vmatpush2.msra.mxu0 %v829
      %962 = vmatprep.subr.mxu0 0.0
      %963 = vmatpush2.msra.mxu0 %v828
      %964 = vmatprep.subr.mxu0 0.0
      %965 = vmatpush2.msra.mxu0 %v827
      %966 = vmatprep.subr.mxu0 0.0
      %967 = vmatpush2.msra.mxu0 %v826
      %968 = vmatprep.subr.mxu0 0.0
      %969 = vmatpush2.msra.mxu0 %v825
      %970 = vmatprep.subr.mxu0 0.0
      %971 = vmatpush2.msra.mxu0 %v824
      %972 = vmatprep.subr.mxu0 0.0
      %973 = vmatpush2.msra.mxu0 %v823
      %974 = vmatprep.subr.mxu0 0.0
      %975 = vmatpush2.msra.mxu0 %v822
      %976 = vmatprep.subr.mxu0 0.0
      %977 = vmatpush2.msra.mxu0 %v821
      %978 = vmatprep.subr.mxu0 0.0
      %979 = vmatpush2.msra.mxu0 %v820
      %980 = vmatprep.mubr.f32.mxu0 %v900
      %981 = vmatmul.mubr.f32.gmra.mxu0 %v892
      %v982 = vpop.f32.mrf.mxu0
      %v983 = vadd.f32 %v881, %v982
      %v984 = vpop.f32.mrf.mxu0
      %985 = vdwg.mxu0
      %986 = vmatprep.subr.mxu0 0.0
      %987 = vmatpush1.msra.mxu0 %v851
      %988 = vmatprep.subr.mxu0 0.0
      %989 = vmatpush1.msra.mxu0 %v850
      %990 = vmatprep.subr.mxu0 0.0
      %991 = vmatpush1.msra.mxu0 %v849
      %992 = vmatprep.subr.mxu0 0.0
      %993 = vmatpush1.msra.mxu0 %v848
      %994 = vmatprep.subr.mxu0 0.0
      %995 = vmatpush1.msra.mxu0 %v847
      %996 = vmatprep.subr.mxu0 0.0
      %997 = vmatpush1.msra.mxu0 %v846
      %998 = vmatprep.subr.mxu0 0.0
      %999 = vmatpush1.msra.mxu0 %v845
      %1000 = vmatprep.subr.mxu0 0.0
      %1001 = vmatpush1.msra.mxu0 %v844
      %1002 = vmatprep.subr.mxu0 0.0
      %1003 = vmatpush1.msra.mxu0 %v843
      %1004 = vmatprep.subr.mxu0 0.0
      %1005 = vmatpush1.msra.mxu0 %v842
      %1006 = vmatprep.subr.mxu0 0.0
      %1007 = vmatpush1.msra.mxu0 %v841
      %1008 = vmatprep.subr.mxu0 0.0
      %1009 = vmatpush1.msra.mxu0 %v840
      %1010 = vmatprep.subr.mxu0 0.0
      %1011 = vmatpush1.msra.mxu0 %v839
      %1012 = vmatprep.subr.mxu0 0.0
      %1013 = vmatpush1.msra.mxu0 %v838
      %1014 = vmatprep.subr.mxu0 0.0
      %1015 = vmatpush1.msra.mxu0 %v837
      %1016 = vmatprep.subr.mxu0 0.0
      %1017 = vmatpush1.msra.mxu0 %v836
      %1018 = vmatprep.subr.mxu0 0.0
      %1019 = vmatpush2.msra.mxu0 %v867
      %1020 = vmatprep.subr.mxu0 0.0
      %1021 = vmatpush2.msra.mxu0 %v866
      %1022 = vmatprep.subr.mxu0 0.0
      %1023 = vmatpush2.msra.mxu0 %v865
      %1024 = vmatprep.subr.mxu0 0.0
      %1025 = vmatpush2.msra.mxu0 %v864
      %1026 = vmatprep.subr.mxu0 0.0
      %1027 = vmatpush2.msra.mxu0 %v863
      %1028 = vmatprep.subr.mxu0 0.0
      %1029 = vmatpush2.msra.mxu0 %v862
      %1030 = vmatprep.subr.mxu0 0.0
      %1031 = vmatpush2.msra.mxu0 %v861
      %1032 = vmatprep.subr.mxu0 0.0
      %1033 = vmatpush2.msra.mxu0 %v860
      %1034 = vmatprep.subr.mxu0 0.0
      %1035 = vmatpush2.msra.mxu0 %v859
      %1036 = vmatprep.subr.mxu0 0.0
      %1037 = vmatpush2.msra.mxu0 %v858
      %1038 = vmatprep.subr.mxu0 0.0
      %1039 = vmatpush2.msra.mxu0 %v857
      %1040 = vmatprep.subr.mxu0 0.0
      %1041 = vmatpush2.msra.mxu0 %v856
      %1042 = vmatprep.subr.mxu0 0.0
      %1043 = vmatpush2.msra.mxu0 %v855
      %1044 = vmatprep.subr.mxu0 0.0
      %1045 = vmatpush2.msra.mxu0 %v854
      %1046 = vmatprep.subr.mxu0 0.0
      %1047 = vmatpush2.msra.mxu0 %v853
      %1048 = vmatprep.subr.mxu0 0.0
      %1049 = vmatpush2.msra.mxu0 %v852
      %1050 = vmatprep.mubr.f32.mxu0 %v901
      %1051 = vmatmul.mubr.f32.gmra.mxu0 %v899
      %v1052 = vpop.f32.mrf.mxu0
      %v1053 = vadd.f32 %v983, %v1052
      %v1054 = vpop.f32.mrf.mxu0
      %1055 = vdwg.mxu0
      %1056 = vmatprep.subr.mxu0 0.0
      %1057 = vmatpush1.msra.mxu0 0.0
      %1058 = vmatprep.subr.mxu0 0.0
      %1059 = vmatpush1.msra.mxu0 0.0
      %1060 = vmatprep.subr.mxu0 0.0
      %1061 = vmatpush1.msra.mxu0 0.0
      %1062 = vmatprep.subr.mxu0 0.0
      %1063 = vmatpush1.msra.mxu0 0.0
      %1064 = vmatprep.subr.mxu0 0.0
      %1065 = vmatpush1.msra.mxu0 0.0
      %1066 = vmatprep.subr.mxu0 0.0
      %1067 = vmatpush1.msra.mxu0 0.0
      %1068 = vmatprep.subr.mxu0 0.0
      %1069 = vmatpush1.msra.mxu0 0.0
      %1070 = vmatprep.subr.mxu0 0.0
      %1071 = vmatpush1.msra.mxu0 0.0
      %1072 = vmatprep.subr.mxu0 0.0
      %1073 = vmatpush1.msra.mxu0 %v875
      %1074 = vmatprep.subr.mxu0 0.0
      %1075 = vmatpush1.msra.mxu0 %v874
      %1076 = vmatprep.subr.mxu0 0.0
      %1077 = vmatpush1.msra.mxu0 %v873
      %1078 = vmatprep.subr.mxu0 0.0
      %1079 = vmatpush1.msra.mxu0 %v872
      %1080 = vmatprep.subr.mxu0 0.0
      %1081 = vmatpush1.msra.mxu0 %v871
      %1082 = vmatprep.subr.mxu0 0.0
      %1083 = vmatpush1.msra.mxu0 %v870
      %1084 = vmatprep.subr.mxu0 0.0
      %1085 = vmatpush1.msra.mxu0 %v869
      %1086 = vmatprep.subr.mxu0 0.0
      %1087 = vmatpush1.msra.mxu0 %v868
      %1088 = vmatprep.subr.mxu0 0.0
      %1089 = vmatpush2.msra.mxu0 0.0
      %1090 = vmatprep.subr.mxu0 0.0
      %1091 = vmatpush2.msra.mxu0 0.0
      %1092 = vmatprep.subr.mxu0 0.0
      %1093 = vmatpush2.msra.mxu0 0.0
      %1094 = vmatprep.subr.mxu0 0.0
      %1095 = vmatpush2.msra.mxu0 0.0
      %1096 = vmatprep.subr.mxu0 0.0
      %1097 = vmatpush2.msra.mxu0 0.0
      %1098 = vmatprep.subr.mxu0 0.0
      %1099 = vmatpush2.msra.mxu0 0.0
      %1100 = vmatprep.subr.mxu0 0.0
      %1101 = vmatpush2.msra.mxu0 0.0
      %1102 = vmatprep.subr.mxu0 0.0
      %1103 = vmatpush2.msra.mxu0 0.0
      %1104 = vmatprep.subr.mxu0 0.0
      %1105 = vmatpush2.msra.mxu0 0.0
      %1106 = vmatprep.subr.mxu0 0.0
      %1107 = vmatpush2.msra.mxu0 0.0
      %1108 = vmatprep.subr.mxu0 0.0
      %1109 = vmatpush2.msra.mxu0 0.0
      %1110 = vmatprep.subr.mxu0 0.0
      %1111 = vmatpush2.msra.mxu0 0.0
      %1112 = vmatprep.subr.mxu0 0.0
      %1113 = vmatpush2.msra.mxu0 0.0
      %1114 = vmatprep.subr.mxu0 0.0
      %1115 = vmatpush2.msra.mxu0 0.0
      %1116 = vmatprep.subr.mxu0 0.0
      %1117 = vmatpush2.msra.mxu0 0.0
      %1118 = vmatprep.subr.mxu0 0.0
      %1119 = vmatpush2.msra.mxu0 0.0
      %1120 = vmatprep.mubr.f32.mxu0 0.0
      %1121 = vmatmul.mubr.f32.gmra.mxu0 %v914
      %v1122 = vpop.f32.mrf.mxu0
      %v1123 = vadd.f32 %v1053, %v1122
      %v1124 = vpop.f32.mrf.mxu0
      %1125 = vdwg.mxu0
      %v1126 = vmax.f32 %v1123, 0.0
      %v1127 = vld [vmem:[%s750] sm:$0xff]
      %v1128 = vld [vmem:[%s750 + $0x8] sm:$0xff]
      %v1129 = vld [vmem:[%s750 + $0x10] sm:$0xff]
      %v1130 = vld [vmem:[%s750 + $0x18] sm:$0xff]
      %v1131 = vld [vmem:[%s750 + $0x20] sm:$0xff]
      %v1132 = vld [vmem:[%s750 + $0x28] sm:$0xff]
      %v1133 = vld [vmem:[%s750 + $0x30] sm:$0xff]
      %v1134 = vld [vmem:[%s750 + $0x38] sm:$0xff]
      %v1135 = vld [vmem:[%s753] sm:$0x1]
      %v1137 = vlaneseq
      %v1138 = vshrl.u32 %v1137, 7
      %v1139 = vsub.s32 0, %v1138
      %v1140 = vrot.slane %v1135, %v1139
      %v1143 = vsel %vm913, %v1126, 0
      %1145 = vmatprep.subr.mxu0 0.0
      %1146 = vmatpush1.msra.mxu0 0.0
      %1147 = vmatprep.subr.mxu0 0.0
      %1148 = vmatpush1.msra.mxu0 0.0
      %1149 = vmatprep.subr.mxu0 0.0
      %1150 = vmatpush1.msra.mxu0 0.0
      %1151 = vmatprep.subr.mxu0 0.0
      %1152 = vmatpush1.msra.mxu0 0.0
      %1153 = vmatprep.subr.mxu0 0.0
      %1154 = vmatpush1.msra.mxu0 0.0
      %1155 = vmatprep.subr.mxu0 0.0
      %1156 = vmatpush1.msra.mxu0 0.0
      %1157 = vmatprep.subr.mxu0 0.0
      %1158 = vmatpush1.msra.mxu0 0.0
      %1159 = vmatprep.subr.mxu0 0.0
      %1160 = vmatpush1.msra.mxu0 0.0
      %1161 = vmatprep.subr.mxu0 0.0
      %1162 = vmatpush1.msra.mxu0 %v1134
      %1163 = vmatprep.subr.mxu0 0.0
      %1164 = vmatpush1.msra.mxu0 %v1133
      %1165 = vmatprep.subr.mxu0 0.0
      %1166 = vmatpush1.msra.mxu0 %v1132
      %1167 = vmatprep.subr.mxu0 0.0
      %1168 = vmatpush1.msra.mxu0 %v1131
      %1169 = vmatprep.subr.mxu0 0.0
      %1170 = vmatpush1.msra.mxu0 %v1130
      %1171 = vmatprep.subr.mxu0 0.0
      %1172 = vmatpush1.msra.mxu0 %v1129
      %1173 = vmatprep.subr.mxu0 0.0
      %1174 = vmatpush1.msra.mxu0 %v1128
      %1175 = vmatprep.subr.mxu0 0.0
      %1176 = vmatpush1.msra.mxu0 %v1127
      %1177 = vmatprep.subr.mxu0 0.0
      %1178 = vmatpush2.msra.mxu0 0.0
      %1179 = vmatprep.subr.mxu0 0.0
      %1180 = vmatpush2.msra.mxu0 0.0
      %1181 = vmatprep.subr.mxu0 0.0
      %1182 = vmatpush2.msra.mxu0 0.0
      %1183 = vmatprep.subr.mxu0 0.0
      %1184 = vmatpush2.msra.mxu0 0.0
      %1185 = vmatprep.subr.mxu0 0.0
      %1186 = vmatpush2.msra.mxu0 0.0
      %1187 = vmatprep.subr.mxu0 0.0
      %1188 = vmatpush2.msra.mxu0 0.0
      %1189 = vmatprep.subr.mxu0 0.0
      %1190 = vmatpush2.msra.mxu0 0.0
      %1191 = vmatprep.subr.mxu0 0.0
      %1192 = vmatpush2.msra.mxu0 0.0
      %1193 = vmatprep.subr.mxu0 0.0
      %1194 = vmatpush2.msra.mxu0 0.0
      %1195 = vmatprep.subr.mxu0 0.0
      %1196 = vmatpush2.msra.mxu0 0.0
      %1197 = vmatprep.subr.mxu0 0.0
      %1198 = vmatpush2.msra.mxu0 0.0
      %1199 = vmatprep.subr.mxu0 0.0
      %1200 = vmatpush2.msra.mxu0 0.0
      %1201 = vmatprep.subr.mxu0 0.0
      %1202 = vmatpush2.msra.mxu0 0.0
      %1203 = vmatprep.subr.mxu0 0.0
      %1204 = vmatpush2.msra.mxu0 0.0
      %1205 = vmatprep.subr.mxu0 0.0
      %1206 = vmatpush2.msra.mxu0 0.0
      %1207 = vmatprep.subr.mxu0 0.0
      %1208 = vmatpush2.msra.mxu0 0.0
      %1209 = vmatprep.mubr.f32.mxu0 0.0
      %1210 = vmatmul.mubr.f32.gmra.mxu0 %v1143
      %v1211 = vpop.f32.mrf.mxu0
      %v1212 = vadd.f32 %v1140, %v1211
      %v1213 = vpop.f32.mrf.mxu0
      %1214 = vdwg.mxu0
      %v1215 = vld [vmem:[%s1] sm:$0x3]
      %v1216 = vld [vmem:[%s757] sm:$0xff]
      %v1217 = vld [vmem:[%s760] sm:$0x1]
      %v1219 = vlaneseq
      %v1220 = vshrl.u32 %v1219, 7
      %v1221 = vsub.s32 0, %v1220
      %v1222 = vrot.slane %v1217, %v1221
      %vm1224 = vcmask 64512
      %v1226 = vsel %vm1224, %v1215, 0
      %1228 = vmatprep.subr.mxu0 0.0
      %1229 = vmatpush1.msra.mxu0 0.0
      %1230 = vmatprep.subr.mxu0 0.0
      %1231 = vmatpush1.msra.mxu0 0.0
      %1232 = vmatprep.subr.mxu0 0.0
      %1233 = vmatpush1.msra.mxu0 0.0
      %1234 = vmatprep.subr.mxu0 0.0
      %1235 = vmatpush1.msra.mxu0 0.0
      %1236 = vmatprep.subr.mxu0 0.0
      %1237 = vmatpush1.msra.mxu0 0.0
      %1238 = vmatprep.subr.mxu0 0.0
      %1239 = vmatpush1.msra.mxu0 0.0
      %1240 = vmatprep.subr.mxu0 0.0
      %1241 = vmatpush1.msra.mxu0 0.0
      %1242 = vmatprep.subr.mxu0 0.0
      %1243 = vmatpush1.msra.mxu0 0.0
      %1244 = vmatprep.subr.mxu0 0.0
      %1245 = vmatpush1.msra.mxu0 0.0
      %1246 = vmatprep.subr.mxu0 0.0
      %1247 = vmatpush1.msra.mxu0 0.0
      %1248 = vmatprep.subr.mxu0 0.0
      %1249 = vmatpush1.msra.mxu0 0.0
      %1250 = vmatprep.subr.mxu0 0.0
      %1251 = vmatpush1.msra.mxu0 0.0
      %1252 = vmatprep.subr.mxu0 0.0
      %1253 = vmatpush1.msra.mxu0 0.0
      %1254 = vmatprep.subr.mxu0 0.0
      %1255 = vmatpush1.msra.mxu0 0.0
      %1256 = vmatprep.subr.mxu0 0.0
      %1257 = vmatpush1.msra.mxu0 0.0
      %1258 = vmatprep.subr.mxu0 0.0
      %1259 = vmatpush1.msra.mxu0 %v1216
      %1260 = vmatprep.subr.mxu0 0.0
      %1261 = vmatpush2.msra.mxu0 0.0
      %1262 = vmatprep.subr.mxu0 0.0
      %1263 = vmatpush2.msra.mxu0 0.0
      %1264 = vmatprep.subr.mxu0 0.0
      %1265 = vmatpush2.msra.mxu0 0.0
      %1266 = vmatprep.subr.mxu0 0.0
      %1267 = vmatpush2.msra.mxu0 0.0
      %1268 = vmatprep.subr.mxu0 0.0
      %1269 = vmatpush2.msra.mxu0 0.0
      %1270 = vmatprep.subr.mxu0 0.0
      %1271 = vmatpush2.msra.mxu0 0.0
      %1272 = vmatprep.subr.mxu0 0.0
      %1273 = vmatpush2.msra.mxu0 0.0
      %1274 = vmatprep.subr.mxu0 0.0
      %1275 = vmatpush2.msra.mxu0 0.0
      %1276 = vmatprep.subr.mxu0 0.0
      %1277 = vmatpush2.msra.mxu0 0.0
      %1278 = vmatprep.subr.mxu0 0.0
      %1279 = vmatpush2.msra.mxu0 0.0
      %1280 = vmatprep.subr.mxu0 0.0
      %1281 = vmatpush2.msra.mxu0 0.0
      %1282 = vmatprep.subr.mxu0 0.0
      %1283 = vmatpush2.msra.mxu0 0.0
      %1284 = vmatprep.subr.mxu0 0.0
      %1285 = vmatpush2.msra.mxu0 0.0
      %1286 = vmatprep.subr.mxu0 0.0
      %1287 = vmatpush2.msra.mxu0 0.0
      %1288 = vmatprep.subr.mxu0 0.0
      %1289 = vmatpush2.msra.mxu0 0.0
      %1290 = vmatprep.subr.mxu0 0.0
      %1291 = vmatpush2.msra.mxu0 0.0
      %1292 = vmatprep.mubr.f32.mxu0 0.0
      %1293 = vmatmul.mubr.f32.gmra.mxu0 %v1226
      %v1294 = vpop.f32.mrf.mxu0
      %v1295 = vadd.f32 %v1222, %v1294
      %v1296 = vpop.f32.mrf.mxu0
      %1297 = vdwg.mxu0
      %v1298 = vmax.f32 %v1295, 0.0
      %v1299 = vld [vmem:[%s765] sm:$0xff]
      %v1300 = vld [vmem:[%s765 + $0x8] sm:$0xff]
      %v1301 = vld [vmem:[%s765 + $0x10] sm:$0xf]
      %v1302 = vld [vmem:[%s770] sm:$0xff]
      %v1303 = vld [vmem:[%s770 + $0x8] sm:$0xff]
      %v1304 = vld [vmem:[%s770 + $0x10] sm:$0xf]
      %vm1305 = vcmask 162816
      %v1307 = vsel %vm1305, %v1298, 0
      %vm1309 = vcmask 1043456
      %v1311 = vsel %vm1309, %v1304, 0
      %1313 = vmatprep.subr.mxu0 0.0
      %1314 = vmatpush1.msra.mxu0 0.0
      %1315 = vmatprep.subr.mxu0 0.0
      %1316 = vmatpush1.msra.mxu0 0.0
      %1317 = vmatprep.subr.mxu0 0.0
      %1318 = vmatpush1.msra.mxu0 0.0
      %1319 = vmatprep.subr.mxu0 0.0
      %1320 = vmatpush1.msra.mxu0 0.0
      %1321 = vmatprep.subr.mxu0 0.0
      %1322 = vmatpush1.msra.mxu0 0.0
      %1323 = vmatprep.subr.mxu0 0.0
      %1324 = vmatpush1.msra.mxu0 0.0
      %1325 = vmatprep.subr.mxu0 0.0
      %1326 = vmatpush1.msra.mxu0 0.0
      %1327 = vmatprep.subr.mxu0 0.0
      %1328 = vmatpush1.msra.mxu0 0.0
      %1329 = vmatprep.subr.mxu0 0.0
      %1330 = vmatpush1.msra.mxu0 0.0
      %1331 = vmatprep.subr.mxu0 0.0
      %1332 = vmatpush1.msra.mxu0 0.0
      %1333 = vmatprep.subr.mxu0 0.0
      %1334 = vmatpush1.msra.mxu0 0.0
      %1335 = vmatprep.subr.mxu0 0.0
      %1336 = vmatpush1.msra.mxu0 0.0
      %1337 = vmatprep.subr.mxu0 0.0
      %1338 = vmatpush1.msra.mxu0 0.0
      %1339 = vmatprep.subr.mxu0 0.0
      %1340 = vmatpush1.msra.mxu0 %v1311
      %1341 = vmatprep.subr.mxu0 0.0
      %1342 = vmatpush1.msra.mxu0 %v1303
      %1343 = vmatprep.subr.mxu0 0.0
      %1344 = vmatpush1.msra.mxu0 %v1302
      %1345 = vmatprep.subr.mxu0 0.0
      %1346 = vmatpush2.msra.mxu0 0.0
      %1347 = vmatprep.subr.mxu0 0.0
      %1348 = vmatpush2.msra.mxu0 0.0
      %1349 = vmatprep.subr.mxu0 0.0
      %1350 = vmatpush2.msra.mxu0 0.0
      %1351 = vmatprep.subr.mxu0 0.0
      %1352 = vmatpush2.msra.mxu0 0.0
      %1353 = vmatprep.subr.mxu0 0.0
      %1354 = vmatpush2.msra.mxu0 0.0
      %1355 = vmatprep.subr.mxu0 0.0
      %1356 = vmatpush2.msra.mxu0 0.0
      %1357 = vmatprep.subr.mxu0 0.0
      %1358 = vmatpush2.msra.mxu0 0.0
      %1359 = vmatprep.subr.mxu0 0.0
      %1360 = vmatpush2.msra.mxu0 0.0
      %1361 = vmatprep.subr.mxu0 0.0
      %1362 = vmatpush2.msra.mxu0 0.0
      %1363 = vmatprep.subr.mxu0 0.0
      %1364 = vmatpush2.msra.mxu0 0.0
      %1365 = vmatprep.subr.mxu0 0.0
      %1366 = vmatpush2.msra.mxu0 0.0
      %1367 = vmatprep.subr.mxu0 0.0
      %1368 = vmatpush2.msra.mxu0 0.0
      %1369 = vmatprep.subr.mxu0 0.0
      %1370 = vmatpush2.msra.mxu0 0.0
      %1371 = vmatprep.subr.mxu0 0.0
      %1372 = vmatpush2.msra.mxu0 0.0
      %1373 = vmatprep.subr.mxu0 0.0
      %1374 = vmatpush2.msra.mxu0 0.0
      %1375 = vmatprep.subr.mxu0 0.0
      %1376 = vmatpush2.msra.mxu0 0.0
      %1377 = vmatprep.mubr.f32.mxu0 0.0
      %1378 = vmatmul.mubr.f32.gmra.mxu0 %v1307
      %v1379 = vpop.f32.mrf.mxu0
      %v1380 = vadd.f32 0.0, %v1379
      %v1381 = vpop.f32.mrf.mxu0
      %1382 = vdwg.mxu0
      %v1384 = vsel %vm1305, %v1212, 0
      %v1387 = vsel %vm1309, %v1301, 0
      %1389 = vmatprep.subr.mxu0 0.0
      %1390 = vmatpush1.msra.mxu0 0.0
      %1391 = vmatprep.subr.mxu0 0.0
      %1392 = vmatpush1.msra.mxu0 0.0
      %1393 = vmatprep.subr.mxu0 0.0
      %1394 = vmatpush1.msra.mxu0 0.0
      %1395 = vmatprep.subr.mxu0 0.0
      %1396 = vmatpush1.msra.mxu0 0.0
      %1397 = vmatprep.subr.mxu0 0.0
      %1398 = vmatpush1.msra.mxu0 0.0
      %1399 = vmatprep.subr.mxu0 0.0
      %1400 = vmatpush1.msra.mxu0 0.0
      %1401 = vmatprep.subr.mxu0 0.0
      %1402 = vmatpush1.msra.mxu0 0.0
      %1403 = vmatprep.subr.mxu0 0.0
      %1404 = vmatpush1.msra.mxu0 0.0
      %1405 = vmatprep.subr.mxu0 0.0
      %1406 = vmatpush1.msra.mxu0 0.0
      %1407 = vmatprep.subr.mxu0 0.0
      %1408 = vmatpush1.msra.mxu0 0.0
      %1409 = vmatprep.subr.mxu0 0.0
      %1410 = vmatpush1.msra.mxu0 0.0
      %1411 = vmatprep.subr.mxu0 0.0
      %1412 = vmatpush1.msra.mxu0 0.0
      %1413 = vmatprep.subr.mxu0 0.0
      %1414 = vmatpush1.msra.mxu0 0.0
      %1415 = vmatprep.subr.mxu0 0.0
      %1416 = vmatpush1.msra.mxu0 %v1387
      %1417 = vmatprep.subr.mxu0 0.0
      %1418 = vmatpush1.msra.mxu0 %v1300
      %1419 = vmatprep.subr.mxu0 0.0
      %1420 = vmatpush1.msra.mxu0 %v1299
      %1421 = vmatprep.subr.mxu0 0.0
      %1422 = vmatpush2.msra.mxu0 0.0
      %1423 = vmatprep.subr.mxu0 0.0
      %1424 = vmatpush2.msra.mxu0 0.0
      %1425 = vmatprep.subr.mxu0 0.0
      %1426 = vmatpush2.msra.mxu0 0.0
      %1427 = vmatprep.subr.mxu0 0.0
      %1428 = vmatpush2.msra.mxu0 0.0
      %1429 = vmatprep.subr.mxu0 0.0
      %1430 = vmatpush2.msra.mxu0 0.0
      %1431 = vmatprep.subr.mxu0 0.0
      %1432 = vmatpush2.msra.mxu0 0.0
      %1433 = vmatprep.subr.mxu0 0.0
      %1434 = vmatpush2.msra.mxu0 0.0
      %1435 = vmatprep.subr.mxu0 0.0
      %1436 = vmatpush2.msra.mxu0 0.0
      %1437 = vmatprep.subr.mxu0 0.0
      %1438 = vmatpush2.msra.mxu0 0.0
      %1439 = vmatprep.subr.mxu0 0.0
      %1440 = vmatpush2.msra.mxu0 0.0
      %1441 = vmatprep.subr.mxu0 0.0
      %1442 = vmatpush2.msra.mxu0 0.0
      %1443 = vmatprep.subr.mxu0 0.0
      %1444 = vmatpush2.msra.mxu0 0.0
      %1445 = vmatprep.subr.mxu0 0.0
      %1446 = vmatpush2.msra.mxu0 0.0
      %1447 = vmatprep.subr.mxu0 0.0
      %1448 = vmatpush2.msra.mxu0 0.0
      %1449 = vmatprep.subr.mxu0 0.0
      %1450 = vmatpush2.msra.mxu0 0.0
      %1451 = vmatprep.subr.mxu0 0.0
      %1452 = vmatpush2.msra.mxu0 0.0
      %1453 = vmatprep.mubr.f32.mxu0 0.0
      %1454 = vmatmul.mubr.f32.gmra.mxu0 %v1384
      %v1455 = vpop.f32.mrf.mxu0
      %v1456 = vadd.f32 %v1380, %v1455
      %v1457 = vpop.f32.mrf.mxu0
      %1458 = vdwg.mxu0
      %v1459 = vld [vmem:[%s773] sm:$0x1]
      %v1461 = vlaneseq
      %v1462 = vshrl.u32 %v1461, 7
      %v1463 = vsub.s32 0, %v1462
      %v1464 = vrot.slane %v1459, %v1463
      %v1466 = vadd.f32 %v1456, %v1464
      %v1467 = vmax.f32 %v1466, 0.0
      %v1468 = vld [vmem:[%s778] sm:$0xff]
      %v1469 = vld [vmem:[%s778 + $0x8] sm:$0xff]
      %v1470 = vld [vmem:[%s778 + $0x10] sm:$0xff]
      %v1471 = vld [vmem:[%s778 + $0x18] sm:$0xff]
      %v1472 = vld [vmem:[%s778 + $0x20] sm:$0xff]
      %v1473 = vld [vmem:[%s778 + $0x28] sm:$0xff]
      %v1474 = vld [vmem:[%s778 + $0x30] sm:$0xff]
      %v1475 = vld [vmem:[%s778 + $0x38] sm:$0xff]
      %v1476 = vld [vmem:[%s778 + $0x40] sm:$0xff]
      %v1477 = vld [vmem:[%s778 + $0x48] sm:$0xff]
      %v1478 = vld [vmem:[%s781] sm:$0x1]
      %v1480 = vlaneseq
      %v1481 = vshrl.u32 %v1480, 7
      %v1482 = vsub.s32 0, %v1481
      %v1483 = vrot.slane %v1478, %v1482
      %vm1485 = vcmask 654336
      %v1487 = vsel %vm1485, %v1467, 0
      %1489 = vmatprep.subr.mxu0 0.0
      %1490 = vmatpush1.msra.mxu0 0.0
      %1491 = vmatprep.subr.mxu0 0.0
      %1492 = vmatpush1.msra.mxu0 0.0
      %1493 = vmatprep.subr.mxu0 0.0
      %1494 = vmatpush1.msra.mxu0 0.0
      %1495 = vmatprep.subr.mxu0 0.0
      %1496 = vmatpush1.msra.mxu0 0.0
      %1497 = vmatprep.subr.mxu0 0.0
      %1498 = vmatpush1.msra.mxu0 0.0
      %1499 = vmatprep.subr.mxu0 0.0
      %1500 = vmatpush1.msra.mxu0 0.0
      %1501 = vmatprep.subr.mxu0 0.0
      %1502 = vmatpush1.msra.mxu0 %v1477
      %1503 = vmatprep.subr.mxu0 0.0
      %1504 = vmatpush1.msra.mxu0 %v1476
      %1505 = vmatprep.subr.mxu0 0.0
      %1506 = vmatpush1.msra.mxu0 %v1475
      %1507 = vmatprep.subr.mxu0 0.0
      %1508 = vmatpush1.msra.mxu0 %v1474
      %1509 = vmatprep.subr.mxu0 0.0
      %1510 = vmatpush1.msra.mxu0 %v1473
      %1511 = vmatprep.subr.mxu0 0.0
      %1512 = vmatpush1.msra.mxu0 %v1472
      %1513 = vmatprep.subr.mxu0 0.0
      %1514 = vmatpush1.msra.mxu0 %v1471
      %1515 = vmatprep.subr.mxu0 0.0
      %1516 = vmatpush1.msra.mxu0 %v1470
      %1517 = vmatprep.subr.mxu0 0.0
      %1518 = vmatpush1.msra.mxu0 %v1469
      %1519 = vmatprep.subr.mxu0 0.0
      %1520 = vmatpush1.msra.mxu0 %v1468
      %1521 = vmatprep.subr.mxu0 0.0
      %1522 = vmatpush2.msra.mxu0 0.0
      %1523 = vmatprep.subr.mxu0 0.0
      %1524 = vmatpush2.msra.mxu0 0.0
      %1525 = vmatprep.subr.mxu0 0.0
      %1526 = vmatpush2.msra.mxu0 0.0
      %1527 = vmatprep.subr.mxu0 0.0
      %1528 = vmatpush2.msra.mxu0 0.0
      %1529 = vmatprep.subr.mxu0 0.0
      %1530 = vmatpush2.msra.mxu0 0.0
      %1531 = vmatprep.subr.mxu0 0.0
      %1532 = vmatpush2.msra.mxu0 0.0
      %1533 = vmatprep.subr.mxu0 0.0
      %1534 = vmatpush2.msra.mxu0 0.0
      %1535 = vmatprep.subr.mxu0 0.0
      %1536 = vmatpush2.msra.mxu0 0.0
      %1537 = vmatprep.subr.mxu0 0.0
      %1538 = vmatpush2.msra.mxu0 0.0
      %1539 = vmatprep.subr.mxu0 0.0
      %1540 = vmatpush2.msra.mxu0 0.0
      %1541 = vmatprep.subr.mxu0 0.0
      %1542 = vmatpush2.msra.mxu0 0.0
      %1543 = vmatprep.subr.mxu0 0.0
      %1544 = vmatpush2.msra.mxu0 0.0
      %1545 = vmatprep.subr.mxu0 0.0
      %1546 = vmatpush2.msra.mxu0 0.0
      %1547 = vmatprep.subr.mxu0 0.0
      %1548 = vmatpush2.msra.mxu0 0.0
      %1549 = vmatprep.subr.mxu0 0.0
      %1550 = vmatpush2.msra.mxu0 0.0
      %1551 = vmatprep.subr.mxu0 0.0
      %1552 = vmatpush2.msra.mxu0 0.0
      %1553 = vmatprep.mubr.f32.mxu0 0.0
      %1554 = vmatmul.mubr.f32.gmra.mxu0 %v1487
      %v1555 = vpop.f32.mrf.mxu0
      %v1556 = vadd.f32 %v1483, %v1555
      %v1557 = vpop.f32.mrf.mxu0
      %1558 = vdwg.mxu0
      %v1559 = vmax.f32 %v1556, 0.0
      %v1560 = vld [vmem:[%s786] sm:$0xff]
      %v1561 = vld [vmem:[%s786 + $0x8] sm:$0xff]
      %v1562 = vld [vmem:[%s786 + $0x10] sm:$0xff]
      %v1563 = vld [vmem:[%s786 + $0x18] sm:$0xff]
      %v1564 = vld [vmem:[%s786 + $0x20] sm:$0xff]
      %v1565 = vld [vmem:[%s789] sm:$0x1]
      %v1567 = vlaneseq
      %v1568 = vshrl.u32 %v1567, 7
      %v1569 = vsub.s32 0, %v1568
      %v1570 = vrot.slane %v1565, %v1569
      %vm1572 = vcmask 326656
      %v1574 = vsel %vm1572, %v1559, 0
      %1576 = vmatprep.subr.mxu0 0.0
      %1577 = vmatpush1.msra.mxu0 0.0
      %1578 = vmatprep.subr.mxu0 0.0
      %1579 = vmatpush1.msra.mxu0 0.0
      %1580 = vmatprep.subr.mxu0 0.0
      %1581 = vmatpush1.msra.mxu0 0.0
      %1582 = vmatprep.subr.mxu0 0.0
      %1583 = vmatpush1.msra.mxu0 0.0
      %1584 = vmatprep.subr.mxu0 0.0
      %1585 = vmatpush1.msra.mxu0 0.0
      %1586 = vmatprep.subr.mxu0 0.0
      %1587 = vmatpush1.msra.mxu0 0.0
      %1588 = vmatprep.subr.mxu0 0.0
      %1589 = vmatpush1.msra.mxu0 0.0
      %1590 = vmatprep.subr.mxu0 0.0
      %1591 = vmatpush1.msra.mxu0 0.0
      %1592 = vmatprep.subr.mxu0 0.0
      %1593 = vmatpush1.msra.mxu0 0.0
      %1594 = vmatprep.subr.mxu0 0.0
      %1595 = vmatpush1.msra.mxu0 0.0
      %1596 = vmatprep.subr.mxu0 0.0
      %1597 = vmatpush1.msra.mxu0 0.0
      %1598 = vmatprep.subr.mxu0 0.0
      %1599 = vmatpush1.msra.mxu0 %v1564
      %1600 = vmatprep.subr.mxu0 0.0
      %1601 = vmatpush1.msra.mxu0 %v1563
      %1602 = vmatprep.subr.mxu0 0.0
      %1603 = vmatpush1.msra.mxu0 %v1562
      %1604 = vmatprep.subr.mxu0 0.0
      %1605 = vmatpush1.msra.mxu0 %v1561
      %1606 = vmatprep.subr.mxu0 0.0
      %1607 = vmatpush1.msra.mxu0 %v1560
      %1608 = vmatprep.subr.mxu0 0.0
      %1609 = vmatpush2.msra.mxu0 0.0
      %1610 = vmatprep.subr.mxu0 0.0
      %1611 = vmatpush2.msra.mxu0 0.0
      %1612 = vmatprep.subr.mxu0 0.0
      %1613 = vmatpush2.msra.mxu0 0.0
      %1614 = vmatprep.subr.mxu0 0.0
      %1615 = vmatpush2.msra.mxu0 0.0
      %1616 = vmatprep.subr.mxu0 0.0
      %1617 = vmatpush2.msra.mxu0 0.0
      %1618 = vmatprep.subr.mxu0 0.0
      %1619 = vmatpush2.msra.mxu0 0.0
      %1620 = vmatprep.subr.mxu0 0.0
      %1621 = vmatpush2.msra.mxu0 0.0
      %1622 = vmatprep.subr.mxu0 0.0
      %1623 = vmatpush2.msra.mxu0 0.0
      %1624 = vmatprep.subr.mxu0 0.0
      %1625 = vmatpush2.msra.mxu0 0.0
      %1626 = vmatprep.subr.mxu0 0.0
      %1627 = vmatpush2.msra.mxu0 0.0
      %1628 = vmatprep.subr.mxu0 0.0
      %1629 = vmatpush2.msra.mxu0 0.0
      %1630 = vmatprep.subr.mxu0 0.0
      %1631 = vmatpush2.msra.mxu0 0.0
      %1632 = vmatprep.subr.mxu0 0.0
      %1633 = vmatpush2.msra.mxu0 0.0
      %1634 = vmatprep.subr.mxu0 0.0
      %1635 = vmatpush2.msra.mxu0 0.0
      %1636 = vmatprep.subr.mxu0 0.0
      %1637 = vmatpush2.msra.mxu0 0.0
      %1638 = vmatprep.subr.mxu0 0.0
      %1639 = vmatpush2.msra.mxu0 0.0
      %1640 = vmatprep.mubr.f32.mxu0 0.0
      %1641 = vmatmul.mubr.f32.gmra.mxu0 %v1574
      %v1642 = vpop.f32.mrf.mxu0
      %v1643 = vadd.f32 %v1570, %v1642
      %v1644 = vpop.f32.mrf.mxu0
      %1645 = vdwg.mxu0
      %v1646 = vmax.f32 %v1643, 0.0
      %v1647 = vld [vmem:[%s794] sm:$0xff]
      %v1648 = vld [vmem:[%s794 + $0x8] sm:$0xff]
      %v1649 = vld [vmem:[%s794 + $0x10] sm:$0xf]
      %v1650 = vld [vmem:[%s797] sm:$0x1]
      %v1652 = vlaneseq
      %v1653 = vshrl.u32 %v1652, 7
      %v1654 = vsub.s32 0, %v1653
      %v1655 = vrot.slane %v1650, %v1654
      %v1658 = vsel %vm1305, %v1646, 0
      %v1661 = vsel %vm1309, %v1649, 0
      %1663 = vmatprep.subr.mxu0 0.0
      %1664 = vmatpush1.msra.mxu0 0.0
      %1665 = vmatprep.subr.mxu0 0.0
      %1666 = vmatpush1.msra.mxu0 0.0
      %1667 = vmatprep.subr.mxu0 0.0
      %1668 = vmatpush1.msra.mxu0 0.0
      %1669 = vmatprep.subr.mxu0 0.0
      %1670 = vmatpush1.msra.mxu0 0.0
      %1671 = vmatprep.subr.mxu0 0.0
      %1672 = vmatpush1.msra.mxu0 0.0
      %1673 = vmatprep.subr.mxu0 0.0
      %1674 = vmatpush1.msra.mxu0 0.0
      %1675 = vmatprep.subr.mxu0 0.0
      %1676 = vmatpush1.msra.mxu0 0.0
      %1677 = vmatprep.subr.mxu0 0.0
      %1678 = vmatpush1.msra.mxu0 0.0
      %1679 = vmatprep.subr.mxu0 0.0
      %1680 = vmatpush1.msra.mxu0 0.0
      %1681 = vmatprep.subr.mxu0 0.0
      %1682 = vmatpush1.msra.mxu0 0.0
      %1683 = vmatprep.subr.mxu0 0.0
      %1684 = vmatpush1.msra.mxu0 0.0
      %1685 = vmatprep.subr.mxu0 0.0
      %1686 = vmatpush1.msra.mxu0 0.0
      %1687 = vmatprep.subr.mxu0 0.0
      %1688 = vmatpush1.msra.mxu0 0.0
      %1689 = vmatprep.subr.mxu0 0.0
      %1690 = vmatpush1.msra.mxu0 %v1661
      %1691 = vmatprep.subr.mxu0 0.0
      %1692 = vmatpush1.msra.mxu0 %v1648
      %1693 = vmatprep.subr.mxu0 0.0
      %1694 = vmatpush1.msra.mxu0 %v1647
      %1695 = vmatprep.subr.mxu0 0.0
      %1696 = vmatpush2.msra.mxu0 0.0
      %1697 = vmatprep.subr.mxu0 0.0
      %1698 = vmatpush2.msra.mxu0 0.0
      %1699 = vmatprep.subr.mxu0 0.0
      %1700 = vmatpush2.msra.mxu0 0.0
      %1701 = vmatprep.subr.mxu0 0.0
      %1702 = vmatpush2.msra.mxu0 0.0
      %1703 = vmatprep.subr.mxu0 0.0
      %1704 = vmatpush2.msra.mxu0 0.0
      %1705 = vmatprep.subr.mxu0 0.0
      %1706 = vmatpush2.msra.mxu0 0.0
      %1707 = vmatprep.subr.mxu0 0.0
      %1708 = vmatpush2.msra.mxu0 0.0
      %1709 = vmatprep.subr.mxu0 0.0
      %1710 = vmatpush2.msra.mxu0 0.0
      %1711 = vmatprep.subr.mxu0 0.0
      %1712 = vmatpush2.msra.mxu0 0.0
      %1713 = vmatprep.subr.mxu0 0.0
      %1714 = vmatpush2.msra.mxu0 0.0
      %1715 = vmatprep.subr.mxu0 0.0
      %1716 = vmatpush2.msra.mxu0 0.0
      %1717 = vmatprep.subr.mxu0 0.0
      %1718 = vmatpush2.msra.mxu0 0.0
      %1719 = vmatprep.subr.mxu0 0.0
      %1720 = vmatpush2.msra.mxu0 0.0
      %1721 = vmatprep.subr.mxu0 0.0
      %1722 = vmatpush2.msra.mxu0 0.0
      %1723 = vmatprep.subr.mxu0 0.0
      %1724 = vmatpush2.msra.mxu0 0.0
      %1725 = vmatprep.subr.mxu0 0.0
      %1726 = vmatpush2.msra.mxu0 0.0
      %1727 = vmatprep.mubr.f32.mxu0 0.0
      %1728 = vmatmul.mubr.f32.gmra.mxu0 %v1658
      %v1729 = vpop.f32.mrf.mxu0
      %v1730 = vadd.f32 %v1655, %v1729
      %v1731 = vpop.f32.mrf.mxu0
      %1732 = vdwg.mxu0
      %p1733 = scmp.eq.s32.totalorder %s28, 0
      // Predicated region
      $region89: #{forward.5} parent=87 // pred_check
        %p1734 = pneg %p1733
      $region90: #{forward.5} parent=87 // pred_check_branch
        %1736 = sbr.rel (%p1734) target = $region92
      $region91: #{forward.5} parent=87 // pred_region
        %v1737 = vtanh.pop %v1730
        %vm1738 = vcmask 25600
        %1739 = vst.msk [vmem:[%s801] sm:$0x3] %vm1738, %v1737
      $region92: #{forward.5} parent=87 // pred_fallthru
        _
      %p1740 = scmp.ne.s32.totalorder %s28, 0
      // Predicated region
      $region93: #{forward.5} parent=87 // pred_check
        %p1741 = pneg %p1740
      $region94: #{forward.5} parent=87 // pred_check_branch
        %1743 = sbr.rel (%p1741) target = $region96
      $region95: #{forward.5} parent=87 // pred_region
        %vm1744 = vcmask 25600
        %1745 = vst.msk [vmem:[%s801] sm:$0x3] %vm1744, %v1730
      $region96: #{forward.5} parent=87 // pred_fallthru
        _
      %p1746 = scmp.lt.s32.totalorder %s28, 1
      %s1747 = scalar_select %p1746, %s28, 1
      %s1748 = smul.addr %s1747, 2
      %s1749 = scalar_lea.vmem %s17, %s1748
      // Predicated region
      $region97: #{forward.5} parent=87 // pred_check
        %p1750 = pneg %p483
      $region98: #{forward.5} parent=87 // pred_check_branch
        %1752 = sbr.rel (%p1750) target = $region100
      $region99: #{forward.5} parent=87 // pred_region
        _
      $region100: #{forward.5} parent=87 // pred_fallthru
        _
    $region88: #{forward.5} parent=5 // pred_fallthru
      _
    %p1753 = scmp.le.s32.totalorder 2, %s23
    // Predicated region
    $region101: #{forward.5} parent=5 // pred_check
      %p1754 = pneg %p1753
    $region102: #{forward.5} parent=5 // pred_check_branch
      %1756 = sbr.rel (%p1754) target = $region104
    $region103: #{forward.5} parent=5 // pred_region
      %s1757 = ssub.s32 %s23, 2
      // Predicated region
      $region105: #{forward.5} parent=103 // pred_check
        %p1758 = pneg %p489
      $region106: #{forward.5} parent=103 // pred_check_branch
        %1760 = sbr.rel (%p1758) target = $region108
      $region107: #{forward.5} parent=103 // pred_region
        %p1761 = scmp.lt.s32.totalorder %s29, 1
        %s1762 = scalar_select %p1761, %s29, 1
        %s1763 = smul.addr %s1762, 2
        %s1764 = scalar_lea.vmem %s17, %s1763
      $region108: #{forward.5} parent=103 // pred_fallthru
        _
    $region104: #{forward.5} parent=5 // pred_fallthru
      _
  $region6: #{forward.5} parent=0 // loop_footer
    %s27 = sadd.s32 1, %s23
  $region7: #{forward.5} parent=0 // loop_footer_branch
    %22 = sbr.rel target = $region3
  $region8: #{forward.5} parent=0 // loop_exit
    _

</llo_original>
